<compile_context>
chip_gen: v7x
topology: tpu7x:2x2x1
jax: 0.10.0
libtpu: 0.0.40
codegen_flags: <defaults>
</compile_context>

<pallas_src>
import functools

import jax
import jax.numpy as jnp
from jax.experimental import pallas as pl
from jax.experimental.pallas import tpu as pltpu


def _conv_tap_kernel(img_ref, w_ref, b_ref, out_ref, *,
                     k, th, wo, cin2, cout2, n_row_tiles):
    # img_ref: (Hp, Wp, 2*Cin)     one padded image (bf16 or f32)
    # w_ref:   (K*K, 2*Cin, 2*Cout) packed complex tap weights
    # b_ref:   (1, 2*Cout) f32      packed complex bias
    # out_ref: (th, Wo, 2*Cout) f32 output row tile
    row0 = 0 if n_row_tiles == 1 else pl.program_id(1) * th
    rows = th * wo
    acc = jnp.zeros((rows, cout2), jnp.float32)
    for kh in range(k):                                   # static, unrolled
        # Input rows feeding output rows [row0, row0+th) for kernel row kh.
        rows_kh = img_ref[pl.ds(row0 + kh, th)]           # (th, Wp, 2*Cin)
        for kw in range(k):                               # static, unrolled
            x_tap = rows_kh[:, kw:kw + wo, :].reshape(rows, cin2)
            acc = acc + jnp.dot(x_tap, w_ref[kh * k + kw],
                                preferred_element_type=jnp.float32)
    acc = acc + b_ref[...]                                # f32 bias, broadcast
    out_ref[...] = acc.reshape(th, wo, cout2).astype(out_ref.dtype)


def _pick_row_tile(ho, wo, target_rows):
    """Largest divisor of `ho` whose tile has at most `target_rows` output rows."""
    best = 1
    for d in range(1, ho + 1):
        if ho % d == 0 and d * wo <= target_rows:
            best = d
    return best


def fourier_complex_conv2d(x, conv_w, conv_b, paddings, *,
                           compute_dtype=jnp.bfloat16, target_tile_rows=1024):
    """Complex conv2d matching torch.nn.functional.conv2d semantics.

    x:       (N, Cin, H, W)    complex64 (NCHW, as in PyTorch)
    conv_w:  (Cout, Cin, K, K) complex64 (OIHW, as in PyTorch)
    conv_b:  (Cout,) complex64 or None
    returns: (N, Cout, Ho, Wo) complex64, Ho = H + 2p - K + 1, stride 1
    """
    n, cin, h, w = x.shape
    cout, cin_w, k, k2 = conv_w.shape
    assert cin_w == cin and k == k2
    p = int(paddings)
    ho = h + 2 * p - k + 1
    wo = w + 2 * p - k + 1
    hp = h + 2 * p
    wp = w + 2 * p
    cin2, cout2 = 2 * cin, 2 * cout

    # ---- image: complex NCHW -> real NHWC [xr | xi] slab, spatially padded ----
    xr = jnp.transpose(jnp.real(x), (0, 2, 3, 1)).astype(compute_dtype)
    xi = jnp.transpose(jnp.imag(x), (0, 2, 3, 1)).astype(compute_dtype)
    ximg = jnp.concatenate([xr, xi], axis=-1)                # (N, H, W, 2Cin)
    ximg = jnp.pad(ximg, ((0, 0), (p, p), (p, p), (0, 0)))   # (N, Hp, Wp, 2Cin)

    # ---- weights: per-tap complex block matrices (K*K, 2Cin, 2Cout) ----
    wr = jnp.transpose(jnp.real(conv_w), (2, 3, 1, 0)).astype(jnp.float32)  # (K,K,Cin,Cout)
    wi = jnp.transpose(jnp.imag(conv_w), (2, 3, 1, 0)).astype(jnp.float32)
    w_top = jnp.concatenate([wr, wi], axis=-1)      # rows hit by xr -> [out_r | out_i]
    w_bot = jnp.concatenate([-wi, wr], axis=-1)     # rows hit by xi
    wb = jnp.concatenate([w_top, w_bot], axis=2).reshape(k * k, cin2, cout2)
    wb = wb.astype(compute_dtype)

    if conv_b is None:
        bb = jnp.zeros((1, cout2), jnp.float32)
    else:
        bb = jnp.concatenate([jnp.real(conv_b), jnp.imag(conv_b)]
                             ).astype(jnp.float32).reshape(1, cout2)

    # ---- row tiling over output rows (amortize per-step overhead) ----
    th = _pick_row_tile(ho, wo, target_tile_rows)
    n_row_tiles = ho // th

    kernel = functools.partial(_conv_tap_kernel, k=k, th=th, wo=wo,
                               cin2=cin2, cout2=cout2, n_row_tiles=n_row_tiles)

    out = pl.pallas_call(
        kernel,
        out_shape=jax.ShapeDtypeStruct((n, ho, wo, cout2), jnp.float32),
        grid_spec=pltpu.PrefetchScalarGridSpec(
            num_scalar_prefetch=0,
            grid=(n, n_row_tiles),
            in_specs=[
                # Whole padded image of batch element b; index map constant in
                # the row axis -> the image is DMA'd from HBM exactly once.
                pl.BlockSpec((None, hp, wp, cin2), lambda b, i: (b, 0, 0, 0)),
                # Packed weights / bias: tiny, constant index map (fetched once).
                pl.BlockSpec((k * k, cin2, cout2), lambda b, i: (0, 0, 0)),
                pl.BlockSpec((1, cout2), lambda b, i: (0, 0)),
            ],
            out_specs=pl.BlockSpec((None, th, wo, cout2),
                                   lambda b, i: (b, i, 0, 0)),
        ),
        compiler_params=pltpu.CompilerParams(
            dimension_semantics=("parallel", "parallel"),
            vmem_limit_bytes=32 * 1024 * 1024),
    )(ximg, wb, bb)

    # ---- unpack: (N, Ho, Wo, [out_r | out_i]) -> complex64 NCHW (one pass) ----
    out_c = jax.lax.complex(out[..., :cout], out[..., cout:])
    return jnp.transpose(out_c, (0, 3, 1, 2))


def _reference(x, conv_w, conv_b, p):
    """Plain-JAX reference using real convolutions (f32)."""
    def conv_real(a, w):
        return jax.lax.conv_general_dilated(
            a, w, window_strides=(1, 1), padding=[(p, p), (p, p)],
            dimension_numbers=('NCHW', 'OIHW', 'NCHW'))

    xr, xi = jnp.real(x), jnp.imag(x)
    wr, wi = jnp.real(conv_w), jnp.imag(conv_w)
    ref_r = conv_real(xr, wr) - conv_real(xi, wi)
    ref_i = conv_real(xr, wi) + conv_real(xi, wr)
    if conv_b is not None:
        ref_r = ref_r + jnp.real(conv_b)[None, :, None, None]
        ref_i = ref_i + jnp.imag(conv_b)[None, :, None, None]
    return jax.lax.complex(ref_r, ref_i)


if __name__ == "__main__":
    # Small shapes consistent with the module's forward pass.
    batch, in_ch, out_ch, hw, ksize, paddings = 2, 4, 8, 16, 3, 1

    key = jax.random.PRNGKey(0)
    k_xr, k_xi, k_wr, k_wi, k_br, k_bi = jax.random.split(key, 6)

    x = jax.lax.complex(
        jax.random.normal(k_xr, (batch, in_ch, hw, hw), jnp.float32),
        jax.random.normal(k_xi, (batch, in_ch, hw, hw), jnp.float32))
    conv_w = jax.lax.complex(
        jax.random.normal(k_wr, (out_ch, in_ch, ksize, ksize), jnp.float32),
        jax.random.normal(k_wi, (out_ch, in_ch, ksize, ksize), jnp.float32))
    conv_b = jax.lax.complex(
        jax.random.normal(k_br, (out_ch,), jnp.float32),
        jax.random.normal(k_bi, (out_ch,), jnp.float32))

    ref = _reference(x, conv_w, conv_b, paddings)

    # 1) f32-operand run: verifies the tap-GEMM decomposition is numerically exact.
    out_f32 = jax.block_until_ready(
        fourier_complex_conv2d(x, conv_w, conv_b, paddings,
                               compute_dtype=jnp.float32))
    assert out_f32.shape == (batch, out_ch, hw, hw), out_f32.shape
    assert out_f32.dtype == jnp.complex64, out_f32.dtype
    assert jnp.allclose(jnp.real(out_f32), jnp.real(ref), atol=1e-3, rtol=1e-3)
    assert jnp.allclose(jnp.imag(out_f32), jnp.imag(ref), atol=1e-3, rtol=1e-3)

    # 2) default bf16-operand run (f32 accumulation): the performance config.
    #    Tolerance reflects bf16 rounding of the 72-term complex dot products.
    out = jax.block_until_ready(
        fourier_complex_conv2d(x, conv_w, conv_b, paddings))
    assert out.shape == (batch, out_ch, hw, hw), out.shape
    assert out.dtype == jnp.complex64, out.dtype
    assert jnp.allclose(jnp.real(out), jnp.real(ref), atol=2e-1, rtol=2e-2)
    assert jnp.allclose(jnp.imag(out), jnp.imag(ref), atol=2e-1, rtol=2e-2)

    print("KERNEL_OK")
</pallas_src>

<mosaic_0001>
module attributes {stable_mosaic.version = 11 : i64} {
  func.func @_conv_tap_kernel(%arg0: i32, %arg1: i32, %arg2: memref<1x18x18x8xf32, #tpu.memory_space<vmem>>, %arg3: memref<9x8x16xf32, #tpu.memory_space<vmem>>, %arg4: memref<1x16xf32, #tpu.memory_space<vmem>>, %arg5: memref<1x16x16x16xf32, #tpu.memory_space<vmem>>) attributes {dimension_semantics = [#tpu.dimension_semantics<parallel>, #tpu.dimension_semantics<parallel>], iteration_bounds = array<i64: 2, 1>, scalar_prefetch = 0 : i64, scratch_operands = 0 : i64, tpu.core_type = #tpu.core_type<tc>, window_params = [{transform_indices = @transform_0, window_bounds = array<i64: 1, 18, 18, 8>}, {pipeline_mode = #tpu.pipeline_mode<synchronous>, transform_indices = @transform_1, window_bounds = array<i64: 9, 8, 16>}, {pipeline_mode = #tpu.pipeline_mode<synchronous>, transform_indices = @transform_2, window_bounds = array<i64: 1, 16>}, {transform_indices = @transform_3, window_bounds = array<i64: 1, 16, 16, 16>}]} {
    %cst = arith.constant 0.000000e+00 : f32
    %0 = vector.broadcast %cst : f32 to vector<256x16xf32>
    %c0 = arith.constant 0 : index
    %c0_0 = arith.constant 0 : index
    %c0_1 = arith.constant 0 : index
    %c0_2 = arith.constant 0 : index
    %1 = vector.load %arg2[%c0, %c0_0, %c0_1, %c0_2] : memref<1x18x18x8xf32, #tpu.memory_space<vmem>>, vector<1x16x18x8xf32>
    %2 = vector.shape_cast %1 : vector<1x16x18x8xf32> to vector<16x18x8xf32>
    %3 = vector.extract_strided_slice %2 {offsets = [0, 0, 0], sizes = [16, 16, 8], strides = [1, 1, 1]} : vector<16x18x8xf32> to vector<16x16x8xf32>
    %4 = vector.shape_cast %3 : vector<16x16x8xf32> to vector<256x8xf32>
    %c0_3 = arith.constant 0 : index
    %c0_4 = arith.constant 0 : index
    %c0_5 = arith.constant 0 : index
    %5 = vector.load %arg3[%c0_3, %c0_4, %c0_5] : memref<9x8x16xf32, #tpu.memory_space<vmem>>, vector<1x8x16xf32>
    %6 = vector.shape_cast %5 : vector<1x8x16xf32> to vector<8x16xf32>
    %cst_6 = arith.constant dense<0.000000e+00> : vector<256x16xf32>
    %7 = tpu.matmul %4, %6, %cst_6 {dimension_numbers = #tpu.dot_dimension_numbers<[1], [0], [0], [1], [0, 0, 1, 1], [], []>} : vector<256x8xf32>, vector<8x16xf32>, vector<256x16xf32> -> vector<256x16xf32>
    %8 = arith.addf %0, %7 : vector<256x16xf32>
    %9 = vector.extract_strided_slice %2 {offsets = [0, 1, 0], sizes = [16, 16, 8], strides = [1, 1, 1]} : vector<16x18x8xf32> to vector<16x16x8xf32>
    %10 = vector.shape_cast %9 : vector<16x16x8xf32> to vector<256x8xf32>
    %c1 = arith.constant 1 : index
    %c0_7 = arith.constant 0 : index
    %c0_8 = arith.constant 0 : index
    %11 = vector.load %arg3[%c1, %c0_7, %c0_8] : memref<9x8x16xf32, #tpu.memory_space<vmem>>, vector<1x8x16xf32>
    %12 = vector.shape_cast %11 : vector<1x8x16xf32> to vector<8x16xf32>
    %cst_9 = arith.constant dense<0.000000e+00> : vector<256x16xf32>
    %13 = tpu.matmul %10, %12, %cst_9 {dimension_numbers = #tpu.dot_dimension_numbers<[1], [0], [0], [1], [0, 0, 1, 1], [], []>} : vector<256x8xf32>, vector<8x16xf32>, vector<256x16xf32> -> vector<256x16xf32>
    %14 = arith.addf %8, %13 : vector<256x16xf32>
    %15 = vector.extract_strided_slice %2 {offsets = [0, 2, 0], sizes = [16, 16, 8], strides = [1, 1, 1]} : vector<16x18x8xf32> to vector<16x16x8xf32>
    %16 = vector.shape_cast %15 : vector<16x16x8xf32> to vector<256x8xf32>
    %c2 = arith.constant 2 : index
    %c0_10 = arith.constant 0 : index
    %c0_11 = arith.constant 0 : index
    %17 = vector.load %arg3[%c2, %c0_10, %c0_11] : memref<9x8x16xf32, #tpu.memory_space<vmem>>, vector<1x8x16xf32>
    %18 = vector.shape_cast %17 : vector<1x8x16xf32> to vector<8x16xf32>
    %cst_12 = arith.constant dense<0.000000e+00> : vector<256x16xf32>
    %19 = tpu.matmul %16, %18, %cst_12 {dimension_numbers = #tpu.dot_dimension_numbers<[1], [0], [0], [1], [0, 0, 1, 1], [], []>} : vector<256x8xf32>, vector<8x16xf32>, vector<256x16xf32> -> vector<256x16xf32>
    %20 = arith.addf %14, %19 : vector<256x16xf32>
    %c0_13 = arith.constant 0 : index
    %c1_14 = arith.constant 1 : index
    %c0_15 = arith.constant 0 : index
    %c0_16 = arith.constant 0 : index
    %21 = vector.load %arg2[%c0_13, %c1_14, %c0_15, %c0_16] : memref<1x18x18x8xf32, #tpu.memory_space<vmem>>, vector<1x16x18x8xf32>
    %22 = vector.shape_cast %21 : vector<1x16x18x8xf32> to vector<16x18x8xf32>
    %23 = vector.extract_strided_slice %22 {offsets = [0, 0, 0], sizes = [16, 16, 8], strides = [1, 1, 1]} : vector<16x18x8xf32> to vector<16x16x8xf32>
    %24 = vector.shape_cast %23 : vector<16x16x8xf32> to vector<256x8xf32>
    %c3 = arith.constant 3 : index
    %c0_17 = arith.constant 0 : index
    %c0_18 = arith.constant 0 : index
    %25 = vector.load %arg3[%c3, %c0_17, %c0_18] : memref<9x8x16xf32, #tpu.memory_space<vmem>>, vector<1x8x16xf32>
    %26 = vector.shape_cast %25 : vector<1x8x16xf32> to vector<8x16xf32>
    %cst_19 = arith.constant dense<0.000000e+00> : vector<256x16xf32>
    %27 = tpu.matmul %24, %26, %cst_19 {dimension_numbers = #tpu.dot_dimension_numbers<[1], [0], [0], [1], [0, 0, 1, 1], [], []>} : vector<256x8xf32>, vector<8x16xf32>, vector<256x16xf32> -> vector<256x16xf32>
    %28 = arith.addf %20, %27 : vector<256x16xf32>
    %29 = vector.extract_strided_slice %22 {offsets = [0, 1, 0], sizes = [16, 16, 8], strides = [1, 1, 1]} : vector<16x18x8xf32> to vector<16x16x8xf32>
    %30 = vector.shape_cast %29 : vector<16x16x8xf32> to vector<256x8xf32>
    %c4 = arith.constant 4 : index
    %c0_20 = arith.constant 0 : index
    %c0_21 = arith.constant 0 : index
    %31 = vector.load %arg3[%c4, %c0_20, %c0_21] : memref<9x8x16xf32, #tpu.memory_space<vmem>>, vector<1x8x16xf32>
    %32 = vector.shape_cast %31 : vector<1x8x16xf32> to vector<8x16xf32>
    %cst_22 = arith.constant dense<0.000000e+00> : vector<256x16xf32>
    %33 = tpu.matmul %30, %32, %cst_22 {dimension_numbers = #tpu.dot_dimension_numbers<[1], [0], [0], [1], [0, 0, 1, 1], [], []>} : vector<256x8xf32>, vector<8x16xf32>, vector<256x16xf32> -> vector<256x16xf32>
    %34 = arith.addf %28, %33 : vector<256x16xf32>
    %35 = vector.extract_strided_slice %22 {offsets = [0, 2, 0], sizes = [16, 16, 8], strides = [1, 1, 1]} : vector<16x18x8xf32> to vector<16x16x8xf32>
    %36 = vector.shape_cast %35 : vector<16x16x8xf32> to vector<256x8xf32>
    %c5 = arith.constant 5 : index
    %c0_23 = arith.constant 0 : index
    %c0_24 = arith.constant 0 : index
    %37 = vector.load %arg3[%c5, %c0_23, %c0_24] : memref<9x8x16xf32, #tpu.memory_space<vmem>>, vector<1x8x16xf32>
    %38 = vector.shape_cast %37 : vector<1x8x16xf32> to vector<8x16xf32>
    %cst_25 = arith.constant dense<0.000000e+00> : vector<256x16xf32>
    %39 = tpu.matmul %36, %38, %cst_25 {dimension_numbers = #tpu.dot_dimension_numbers<[1], [0], [0], [1], [0, 0, 1, 1], [], []>} : vector<256x8xf32>, vector<8x16xf32>, vector<256x16xf32> -> vector<256x16xf32>
    %40 = arith.addf %34, %39 : vector<256x16xf32>
    %c0_26 = arith.constant 0 : index
    %c2_27 = arith.constant 2 : index
    %c0_28 = arith.constant 0 : index
    %c0_29 = arith.constant 0 : index
    %41 = vector.load %arg2[%c0_26, %c2_27, %c0_28, %c0_29] : memref<1x18x18x8xf32, #tpu.memory_space<vmem>>, vector<1x16x18x8xf32>
    %42 = vector.shape_cast %41 : vector<1x16x18x8xf32> to vector<16x18x8xf32>
    %43 = vector.extract_strided_slice %42 {offsets = [0, 0, 0], sizes = [16, 16, 8], strides = [1, 1, 1]} : vector<16x18x8xf32> to vector<16x16x8xf32>
    %44 = vector.shape_cast %43 : vector<16x16x8xf32> to vector<256x8xf32>
    %c6 = arith.constant 6 : index
    %c0_30 = arith.constant 0 : index
    %c0_31 = arith.constant 0 : index
    %45 = vector.load %arg3[%c6, %c0_30, %c0_31] : memref<9x8x16xf32, #tpu.memory_space<vmem>>, vector<1x8x16xf32>
    %46 = vector.shape_cast %45 : vector<1x8x16xf32> to vector<8x16xf32>
    %cst_32 = arith.constant dense<0.000000e+00> : vector<256x16xf32>
    %47 = tpu.matmul %44, %46, %cst_32 {dimension_numbers = #tpu.dot_dimension_numbers<[1], [0], [0], [1], [0, 0, 1, 1], [], []>} : vector<256x8xf32>, vector<8x16xf32>, vector<256x16xf32> -> vector<256x16xf32>
    %48 = arith.addf %40, %47 : vector<256x16xf32>
    %49 = vector.extract_strided_slice %42 {offsets = [0, 1, 0], sizes = [16, 16, 8], strides = [1, 1, 1]} : vector<16x18x8xf32> to vector<16x16x8xf32>
    %50 = vector.shape_cast %49 : vector<16x16x8xf32> to vector<256x8xf32>
    %c7 = arith.constant 7 : index
    %c0_33 = arith.constant 0 : index
    %c0_34 = arith.constant 0 : index
    %51 = vector.load %arg3[%c7, %c0_33, %c0_34] : memref<9x8x16xf32, #tpu.memory_space<vmem>>, vector<1x8x16xf32>
    %52 = vector.shape_cast %51 : vector<1x8x16xf32> to vector<8x16xf32>
    %cst_35 = arith.constant dense<0.000000e+00> : vector<256x16xf32>
    %53 = tpu.matmul %50, %52, %cst_35 {dimension_numbers = #tpu.dot_dimension_numbers<[1], [0], [0], [1], [0, 0, 1, 1], [], []>} : vector<256x8xf32>, vector<8x16xf32>, vector<256x16xf32> -> vector<256x16xf32>
    %54 = arith.addf %48, %53 : vector<256x16xf32>
    %55 = vector.extract_strided_slice %42 {offsets = [0, 2, 0], sizes = [16, 16, 8], strides = [1, 1, 1]} : vector<16x18x8xf32> to vector<16x16x8xf32>
    %56 = vector.shape_cast %55 : vector<16x16x8xf32> to vector<256x8xf32>
    %c8 = arith.constant 8 : index
    %c0_36 = arith.constant 0 : index
    %c0_37 = arith.constant 0 : index
    %57 = vector.load %arg3[%c8, %c0_36, %c0_37] : memref<9x8x16xf32, #tpu.memory_space<vmem>>, vector<1x8x16xf32>
    %58 = vector.shape_cast %57 : vector<1x8x16xf32> to vector<8x16xf32>
    %cst_38 = arith.constant dense<0.000000e+00> : vector<256x16xf32>
    %59 = tpu.matmul %56, %58, %cst_38 {dimension_numbers = #tpu.dot_dimension_numbers<[1], [0], [0], [1], [0, 0, 1, 1], [], []>} : vector<256x8xf32>, vector<8x16xf32>, vector<256x16xf32> -> vector<256x16xf32>
    %60 = arith.addf %54, %59 : vector<256x16xf32>
    %c0_39 = arith.constant 0 : index
    %c0_40 = arith.constant 0 : index
    %61 = vector.load %arg4[%c0_39, %c0_40] : memref<1x16xf32, #tpu.memory_space<vmem>>, vector<1x16xf32>
    %62 = vector.broadcast %61 : vector<1x16xf32> to vector<256x16xf32>
    %63 = arith.addf %60, %62 : vector<256x16xf32>
    %64 = vector.shape_cast %63 : vector<256x16xf32> to vector<16x16x16xf32>
    %c0_41 = arith.constant 0 : index
    %c0_42 = arith.constant 0 : index
    %c0_43 = arith.constant 0 : index
    %c0_44 = arith.constant 0 : index
    %65 = vector.load %arg5[%c0_41, %c0_42, %c0_43, %c0_44] : memref<1x16x16x16xf32, #tpu.memory_space<vmem>>, vector<1x16x16x16xf32>
    %66 = vector.shape_cast %65 : vector<1x16x16x16xf32> to vector<16x16x16xf32>
    %67 = vector.shape_cast %64 : vector<16x16x16xf32> to vector<1x16x16x16xf32>
    tpu.vector_store %arg5[%c0_41, %c0_42, %c0_43, %c0_44], %67 {strides = array<i32>} : memref<1x16x16x16xf32, #tpu.memory_space<vmem>>, vector<1x16x16x16xf32>,
    return
  }
  func.func @transform_0(%arg0: i32, %arg1: i32) -> (i32, i32, i32, i32) {
    %c0_i32 = arith.constant 0 : i32
    %c0_i32_0 = arith.constant 0 : i32
    %c0_i32_1 = arith.constant 0 : i32
    %c0_i32_2 = arith.constant 0 : i32
    return %arg0, %c0_i32, %c0_i32_0, %c0_i32_1 : i32, i32, i32, i32
  }
  func.func @transform_1(%arg0: i32, %arg1: i32) -> (i32, i32, i32) {
    %c0_i32 = arith.constant 0 : i32
    %c0_i32_0 = arith.constant 0 : i32
    %c0_i32_1 = arith.constant 0 : i32
    %c0_i32_2 = arith.constant 0 : i32
    return %c0_i32, %c0_i32_0, %c0_i32_1 : i32, i32, i32
  }
  func.func @transform_2(%arg0: i32, %arg1: i32) -> (i32, i32) {
    %c0_i32 = arith.constant 0 : i32
    %c0_i32_0 = arith.constant 0 : i32
    %c0_i32_1 = arith.constant 0 : i32
    return %c0_i32, %c0_i32_0 : i32, i32
  }
  func.func @transform_3(%arg0: i32, %arg1: i32) -> (i32, i32, i32, i32) {
    %c0_i32 = arith.constant 0 : i32
    %c0_i32_0 = arith.constant 0 : i32
    %c0_i32_1 = arith.constant 0 : i32
    return %arg0, %arg1, %c0_i32, %c0_i32_0 : i32, i32, i32, i32
  }
}

</mosaic_0001>

<llo_original>
// kernel: tpu_custom_call.1
$region0: #{tpu_custom_call.1}
  #allocation0 [shape = 'u32[]', space=smem, size = 0x4, offset = 0x4, fixed_abs, tag = 'smem constant byte address 0x4 - core index']
  #allocation1 [shape = 'u32[144,128]{1,0:T(1,128)}', space=vmem, size = 0x12000, scoped, tag = 'internal scratch']
  %s0 = inlined_call_operand.vmem [shape: f32[2,18,18,8], index: 0, kind: input, shape index: {}]
  %s1 = inlined_call_operand.vmem [shape: f32[9,8,16], index: 1, kind: input, shape index: {}]
  %s2 = inlined_call_operand.vmem [shape: f32[1,16], index: 2, kind: input, shape index: {}]
  %s3 = inlined_call_operand.hbm [shape: f32[2,16,16,16], index: 3, kind: output, shape index: {}]
  %s4 = sld [smem:[#allocation0]]
  $region45: #{tpu_custom_call.1} parent=0
    _
  %s6 = ssub.s32 1, %s4
  %s7 = scalar_select 0, %s6, %s4
  $region1: #{tpu_custom_call.1} parent=0
    #allocation2 [shape = 'u8[262144]{0}', space=vmem, size = 0x40000, scoped, tag = 'output window, operand 0']
    #allocation3 [shape = 's32[2]{0}', space=sflag, size = 0x8, scoped, tag = 'scoped memory for tpu_custom_call.1']
    %8 = vsyncpa [#allocation3], 0
    %s9 = scalar_lea.sflag [#allocation3], 1
    %10 = vsyncpa %s9, 0
    loop: start=0, step=1, limit=4
    $region2: #{tpu_custom_call.1} parent=1 // loop_pre_header
      _
    $region3: #{tpu_custom_call.1} parent=1 // loop_header
      %s12 = sphi 0, %s16
      %p13 = scmp.ge.s32.totalorder %s12, 4
      %s19 = sphi 0, %s31
      %s20 = sphi 0, %s27
      %s21 = sphi 0, %s19
      %s22 = sphi 0, %s20
      %s23 = sphi 0, %s21
      %s24 = sphi 0, %s22
      %s34 = sphi 0, %s36
      %s37 = sphi 0, %s34
      %s38 = sphi 0, %s37
      %s54 = sphi 0, %s38
      %s58 = sphi 0, %s58
      %s60 = sphi 0, %s58
      %s61 = sphi 0, %s60
      %s75 = sphi 0, %s61
      %s79 = sphi 0, %s79
      %s81 = sphi 0, %s79
      %s82 = sphi 0, %s81
      %s96 = sphi 0, %s82
      %s104 = sphi 0, %s106
      %s107 = sphi 0, %s104
      %s108 = sphi 0, %s107
      %s124 = sphi 0, %s108
    $region4: #{tpu_custom_call.1} parent=1 // loop_header_branch
      %15 = sbr.rel (%p13) target = $region8
    $region5: #{tpu_custom_call.1} parent=1 // loop_body
      %s17 = ssub.s32 %s12, 1
      %s18 = ssub.s32 %s12, 2
      %s25 = sadd.s32 1, %s20
      %p26 = scmp.ge.s32.totalorder %s25, 1
      %s27 = scalar_select %p26, 0, %s25
      %s28 = sadd.s32 1, %s19
      %s29 = scalar_select %p26, %s28, %s19
      %p30 = scmp.ge.s32.totalorder %s29, 2
      %s31 = scalar_select %p30, 0, %s29
      %s32 = ssub.s32 %s19, %s31
      %p33 = scmp.eq.s32.totalorder %s32, 0
      %s35 = sadd.s32 %s34, 1
      %s36 = scalar_select %p33, %s34, %s35
      %p39 = pneg %p33
      %p40 = scmp.eq.s32.totalorder %s12, 1
      %p41 = por %p39, %p40
      %p42 = scmp.ne.s32.totalorder %s34, %s37
      %p43 = scmp.eq.s32.totalorder %s12, 0
      %p44 = por %p42, %p43
      %p45 = scmp.ne.s32.totalorder %s34, %s37
      %p46 = scmp.eq.s32.totalorder %s17, 1
      %p47 = por %p45, %p46
      %p48 = scmp.ne.s32.totalorder %s37, %s38
      %p49 = scmp.eq.s32.totalorder %s17, 0
      %p50 = por %p48, %p49
      %p51 = scmp.ne.s32.totalorder %s37, %s38
      %p52 = scmp.eq.s32.totalorder %s18, 1
      %p53 = por %p51, %p52
      %p55 = scmp.ne.s32.totalorder %s38, %s54
      %p56 = scmp.eq.s32.totalorder %s18, 0
      %p57 = por %p55, %p56
      %s59 = sadd.s32 %s58, 1
      %p62 = scmp.eq.s32.totalorder %s12, 1
      %p63 = scmp.ne.s32.totalorder %s58, %s60
      %p64 = scmp.eq.s32.totalorder %s12, 0
      %p65 = por %p63, %p64
      %p66 = scmp.ne.s32.totalorder %s58, %s60
      %p67 = scmp.eq.s32.totalorder %s17, 1
      %p68 = por %p66, %p67
      %p69 = scmp.ne.s32.totalorder %s60, %s61
      %p70 = scmp.eq.s32.totalorder %s17, 0
      %p71 = por %p69, %p70
      %p72 = scmp.ne.s32.totalorder %s60, %s61
      %p73 = scmp.eq.s32.totalorder %s18, 1
      %p74 = por %p72, %p73
      %p76 = scmp.ne.s32.totalorder %s61, %s75
      %p77 = scmp.eq.s32.totalorder %s18, 0
      %p78 = por %p76, %p77
      %s80 = sadd.s32 %s79, 1
      %p83 = scmp.eq.s32.totalorder %s12, 1
      %p84 = scmp.ne.s32.totalorder %s79, %s81
      %p85 = scmp.eq.s32.totalorder %s12, 0
      %p86 = por %p84, %p85
      %p87 = scmp.ne.s32.totalorder %s79, %s81
      %p88 = scmp.eq.s32.totalorder %s17, 1
      %p89 = por %p87, %p88
      %p90 = scmp.ne.s32.totalorder %s81, %s82
      %p91 = scmp.eq.s32.totalorder %s17, 0
      %p92 = por %p90, %p91
      %p93 = scmp.ne.s32.totalorder %s81, %s82
      %p94 = scmp.eq.s32.totalorder %s18, 1
      %p95 = por %p93, %p94
      %p97 = scmp.ne.s32.totalorder %s82, %s96
      %p98 = scmp.eq.s32.totalorder %s18, 0
      %p99 = por %p97, %p98
      %s100 = ssub.s32 %s19, %s31
      %s101 = ssub.s32 %s20, %s27
      %s102 = sor.u32 %s100, %s101
      %p103 = scmp.eq.s32.totalorder %s102, 0
      %s105 = sadd.s32 %s104, 1
      %s106 = scalar_select %p103, %s104, %s105
      %p109 = pneg %p103
      %p110 = scmp.eq.s32.totalorder %s12, 1
      %p111 = por %p109, %p110
      %p112 = scmp.ne.s32.totalorder %s104, %s107
      %p113 = scmp.eq.s32.totalorder %s12, 0
      %p114 = por %p112, %p113
      %p115 = scmp.ne.s32.totalorder %s104, %s107
      %p116 = scmp.eq.s32.totalorder %s17, 1
      %p117 = por %p115, %p116
      %p118 = scmp.ne.s32.totalorder %s107, %s108
      %p119 = scmp.eq.s32.totalorder %s17, 0
      %p120 = por %p118, %p119
      %p121 = scmp.ne.s32.totalorder %s107, %s108
      %p122 = scmp.eq.s32.totalorder %s18, 1
      %p123 = por %p121, %p122
      %p125 = scmp.ne.s32.totalorder %s108, %s124
      %p126 = scmp.eq.s32.totalorder %s18, 0
      %p127 = por %p125, %p126
      %p128 = scmp.le.s32.totalorder 1, %s12
      %p129 = scmp.lt.s32.totalorder %s12, 3
      %p130 = pnand %p128, %p129
      %p131 = pneg %p130
      // Predicated region
      $region9: #{tpu_custom_call.1} parent=5 // pred_check
        _
      $region10: #{tpu_custom_call.1} parent=5 // pred_check_branch
        %133 = sbr.rel (%p130) target = $region12
      $region11: #{tpu_custom_call.1} parent=5 // pred_region
        %s134 = ssub.s32 %s12, 1
        // Predicated region
        $region13: #{tpu_custom_call.1} parent=11 // pred_check
          %p135 = pneg %p71
        $region14: #{tpu_custom_call.1} parent=11 // pred_check_branch
          %137 = sbr.rel (%p135) target = $region16
        $region15: #{tpu_custom_call.1} parent=11 // pred_region
          _
        $region16: #{tpu_custom_call.1} parent=11 // pred_fallthru
          _
        // Predicated region
        $region17: #{tpu_custom_call.1} parent=11 // pred_check
          %p138 = pneg %p92
        $region18: #{tpu_custom_call.1} parent=11 // pred_check_branch
          %140 = sbr.rel (%p138) target = $region20
        $region19: #{tpu_custom_call.1} parent=11 // pred_region
          _
        $region20: #{tpu_custom_call.1} parent=11 // pred_fallthru
          _
      $region12: #{tpu_custom_call.1} parent=5 // pred_fallthru
        _
      %p141 = scmp.lt.s32.totalorder %s12, 2
      // Predicated region
      $region21: #{tpu_custom_call.1} parent=5 // pred_check
        %p142 = pneg %p141
      $region22: #{tpu_custom_call.1} parent=5 // pred_check_branch
        %144 = sbr.rel (%p142) target = $region24
      $region23: #{tpu_custom_call.1} parent=5 // pred_region
        // Predicated region
        $region25: #{tpu_custom_call.1} parent=23 // pred_check
          %p145 = pneg %p44
        $region26: #{tpu_custom_call.1} parent=23 // pred_check_branch
          %147 = sbr.rel (%p145) target = $region28
        $region27: #{tpu_custom_call.1} parent=23 // pred_region
          %p148 = scmp.lt.s32.totalorder %s19, 1
          %s149 = scalar_select %p148, %s19, 1
          %s150 = smul.addr %s149, 54
          %s151 = smul.addr %s150, 8
          %s152 = scalar_lea.vmem %s0, %s151
        $region28: #{tpu_custom_call.1} parent=23 // pred_fallthru
          _
      $region24: #{tpu_custom_call.1} parent=5 // pred_fallthru
        _
      %p153 = scmp.le.s32.totalorder 1, %s12
      %p154 = scmp.lt.s32.totalorder %s12, 3
      %p155 = pnand %p153, %p154
      %p156 = pneg %p155
      // Predicated region
      $region29: #{tpu_custom_call.1} parent=5 // pred_check
        _
      $region30: #{tpu_custom_call.1} parent=5 // pred_check_branch
        %158 = sbr.rel (%p155) target = $region32
      $region31: #{tpu_custom_call.1} parent=5 // pred_region
        %s159 = ssub.s32 %s12, 1
        %p160 = scmp.lt.s32.totalorder %s21, 1
        %s161 = scalar_select %p160, %s21, 1
        %s162 = smul.addr %s161, 54
        %s163 = smul.addr %s162, 8
        %s164 = scalar_lea.vmem %s0, %s163
        %p165 = pneg %p50
        %p166 = pneg %p47
        %p167 = pneg %p71
        %p168 = pneg %p68
        %p169 = pneg %p92
        %p170 = pneg %p89
        %p171 = pneg %p120
        %p172 = pneg %p117
        %s173 = sand.u32 %s107, 1
        %s174 = scalar_lea.sflag [#allocation3], %s173
        %s175 = sand.u32 %s107, 1
        %s176 = smul.addr %s175, 256
        %s177 = scalar_lea.vmem [#allocation2], %s176
        %p178 = scmp.lt.s32.totalorder %s21, 1
        %s179 = scalar_select %p178, %s21, 1
        %s180 = smul.addr %s179, 54
        %s181 = smul.addr %s180, 8
        %s182 = scalar_lea.vmem %s0, %s181
        %s183 = smul.u32 16, %s22
        %v184 = vld [vmem:[%s182] sm:$0xff]
        %v185 = vld [vmem:[%s182 + $0x8] sm:$0xff]
        %v186 = vld [vmem:[%s182 + $0x10] sm:$0x3]
        %v187 = vld [vmem:[%s182 + $0x18] sm:$0xff]
        %v188 = vld [vmem:[%s182 + $0x20] sm:$0xff]
        %v189 = vld [vmem:[%s182 + $0x28] sm:$0x3]
        %v190 = vld [vmem:[%s182 + $0x30] sm:$0xff]
        %v191 = vld [vmem:[%s182 + $0x38] sm:$0xff]
        %v192 = vld [vmem:[%s182 + $0x40] sm:$0x3]
        %v193 = vld [vmem:[%s182 + $0x48] sm:$0xff]
        %v194 = vld [vmem:[%s182 + $0x50] sm:$0xff]
        %v195 = vld [vmem:[%s182 + $0x58] sm:$0x3]
        %v196 = vld [vmem:[%s182 + $0x60] sm:$0xff]
        %v197 = vld [vmem:[%s182 + $0x68] sm:$0xff]
        %v198 = vld [vmem:[%s182 + $0x70] sm:$0x3]
        %v199 = vld [vmem:[%s182 + $0x78] sm:$0xff]
        %v200 = vld [vmem:[%s182 + $0x80] sm:$0xff]
        %v201 = vld [vmem:[%s182 + $0x88] sm:$0x3]
        %v202 = vld [vmem:[%s182 + $0x90] sm:$0xff]
        %v203 = vld [vmem:[%s182 + $0x98] sm:$0xff]
        %v204 = vld [vmem:[%s182 + $0xa0] sm:$0x3]
        %v205 = vld [vmem:[%s182 + $0xa8] sm:$0xff]
        %v206 = vld [vmem:[%s182 + $0xb0] sm:$0xff]
        %v207 = vld [vmem:[%s182 + $0xb8] sm:$0x3]
        %v208 = vld [vmem:[%s182 + $0xc0] sm:$0xff]
        %v209 = vld [vmem:[%s182 + $0xc8] sm:$0xff]
        %v210 = vld [vmem:[%s182 + $0xd0] sm:$0x3]
        %v211 = vld [vmem:[%s182 + $0xd8] sm:$0xff]
        %v212 = vld [vmem:[%s182 + $0xe0] sm:$0xff]
        %v213 = vld [vmem:[%s182 + $0xe8] sm:$0x3]
        %v214 = vld [vmem:[%s182 + $0xf0] sm:$0xff]
        %v215 = vld [vmem:[%s182 + $0xf8] sm:$0xff]
        %v216 = vld [vmem:[%s182 + $0x100] sm:$0x3]
        %v217 = vld [vmem:[%s182 + $0x108] sm:$0xff]
        %v218 = vld [vmem:[%s182 + $0x110] sm:$0xff]
        %v219 = vld [vmem:[%s182 + $0x118] sm:$0x3]
        %v220 = vld [vmem:[%s182 + $0x120] sm:$0xff]
        %v221 = vld [vmem:[%s182 + $0x128] sm:$0xff]
        %v222 = vld [vmem:[%s182 + $0x130] sm:$0x3]
        %v223 = vld [vmem:[%s182 + $0x138] sm:$0xff]
        %v224 = vld [vmem:[%s182 + $0x140] sm:$0xff]
        %v225 = vld [vmem:[%s182 + $0x148] sm:$0x3]
        %v226 = vld [vmem:[%s182 + $0x150] sm:$0xff]
        %v227 = vld [vmem:[%s182 + $0x158] sm:$0xff]
        %v228 = vld [vmem:[%s182 + $0x160] sm:$0x3]
        %v229 = vld [vmem:[%s182 + $0x168] sm:$0xff]
        %v230 = vld [vmem:[%s182 + $0x170] sm:$0xff]
        %v231 = vld [vmem:[%s182 + $0x178] sm:$0x3]
        %v232 = vld [vmem:[%s1] sm:$0xff]
        %vm281 = vcmask 1046528
        %v282 = vrot.slane %v184, 1
        %v283 = vrot.slane %v185, 1
        %v284 = vsel %vm281, %v282, %v283
        %v285 = vrot.slane %v186, 1
        %v286 = vsel %vm281, %v283, %v285
        %v287 = vrot.slane %v187, 1
        %v288 = vrot.slane %v188, 1
        %v289 = vsel %vm281, %v287, %v288
        %v290 = vrot.slane %v189, 1
        %v291 = vsel %vm281, %v288, %v290
        %v292 = vrot.slane %v190, 1
        %v293 = vrot.slane %v191, 1
        %v294 = vsel %vm281, %v292, %v293
        %v295 = vrot.slane %v192, 1
        %v296 = vsel %vm281, %v293, %v295
        %v297 = vrot.slane %v193, 1
        %v298 = vrot.slane %v194, 1
        %v299 = vsel %vm281, %v297, %v298
        %v300 = vrot.slane %v195, 1
        %v301 = vsel %vm281, %v298, %v300
        %v302 = vrot.slane %v196, 1
        %v303 = vrot.slane %v197, 1
        %v304 = vsel %vm281, %v302, %v303
        %v305 = vrot.slane %v198, 1
        %v306 = vsel %vm281, %v303, %v305
        %v307 = vrot.slane %v199, 1
        %v308 = vrot.slane %v200, 1
        %v309 = vsel %vm281, %v307, %v308
        %v310 = vrot.slane %v201, 1
        %v311 = vsel %vm281, %v308, %v310
        %v312 = vrot.slane %v202, 1
        %v313 = vrot.slane %v203, 1
        %v314 = vsel %vm281, %v312, %v313
        %v315 = vrot.slane %v204, 1
        %v316 = vsel %vm281, %v313, %v315
        %v317 = vrot.slane %v205, 1
        %v318 = vrot.slane %v206, 1
        %v319 = vsel %vm281, %v317, %v318
        %v320 = vrot.slane %v207, 1
        %v321 = vsel %vm281, %v318, %v320
        %v322 = vrot.slane %v208, 1
        %v323 = vrot.slane %v209, 1
        %v324 = vsel %vm281, %v322, %v323
        %v325 = vrot.slane %v210, 1
        %v326 = vsel %vm281, %v323, %v325
        %v327 = vrot.slane %v211, 1
        %v328 = vrot.slane %v212, 1
        %v329 = vsel %vm281, %v327, %v328
        %v330 = vrot.slane %v213, 1
        %v331 = vsel %vm281, %v328, %v330
        %v332 = vrot.slane %v214, 1
        %v333 = vrot.slane %v215, 1
        %v334 = vsel %vm281, %v332, %v333
        %v335 = vrot.slane %v216, 1
        %v336 = vsel %vm281, %v333, %v335
        %v337 = vrot.slane %v217, 1
        %v338 = vrot.slane %v218, 1
        %v339 = vsel %vm281, %v337, %v338
        %v340 = vrot.slane %v219, 1
        %v341 = vsel %vm281, %v338, %v340
        %v342 = vrot.slane %v220, 1
        %v343 = vrot.slane %v221, 1
        %v344 = vsel %vm281, %v342, %v343
        %v345 = vrot.slane %v222, 1
        %v346 = vsel %vm281, %v343, %v345
        %v347 = vrot.slane %v223, 1
        %v348 = vrot.slane %v224, 1
        %v349 = vsel %vm281, %v347, %v348
        %v350 = vrot.slane %v225, 1
        %v351 = vsel %vm281, %v348, %v350
        %v352 = vrot.slane %v226, 1
        %v353 = vrot.slane %v227, 1
        %v354 = vsel %vm281, %v352, %v353
        %v355 = vrot.slane %v228, 1
        %v356 = vsel %vm281, %v353, %v355
        %v357 = vrot.slane %v229, 1
        %v358 = vrot.slane %v230, 1
        %v359 = vsel %vm281, %v357, %v358
        %v360 = vrot.slane %v231, 1
        %v361 = vsel %vm281, %v358, %v360
        %s362 = scalar_lea.vmem %s1, 8
        %v363 = vld [vmem:[%s362] sm:$0xff]
        %vm364 = vcmask 64512
        %v365 = vsel %vm364, %v284, 0
        %v367 = vsel %vm364, %v286, 0
        %v369 = vsel %vm364, %v289, 0
        %v371 = vsel %vm364, %v291, 0
        %v373 = vsel %vm364, %v294, 0
        %v375 = vsel %vm364, %v296, 0
        %v377 = vsel %vm364, %v299, 0
        %v379 = vsel %vm364, %v301, 0
        %v381 = vsel %vm364, %v304, 0
        %v383 = vsel %vm364, %v306, 0
        %v385 = vsel %vm364, %v309, 0
        %v387 = vsel %vm364, %v311, 0
        %v389 = vsel %vm364, %v314, 0
        %v391 = vsel %vm364, %v316, 0
        %v393 = vsel %vm364, %v319, 0
        %v395 = vsel %vm364, %v321, 0
        %v397 = vsel %vm364, %v324, 0
        %v399 = vsel %vm364, %v326, 0
        %v401 = vsel %vm364, %v329, 0
        %v403 = vsel %vm364, %v331, 0
        %v405 = vsel %vm364, %v334, 0
        %v407 = vsel %vm364, %v336, 0
        %v409 = vsel %vm364, %v339, 0
        %v411 = vsel %vm364, %v341, 0
        %v413 = vsel %vm364, %v344, 0
        %v415 = vsel %vm364, %v346, 0
        %v417 = vsel %vm364, %v349, 0
        %v419 = vsel %vm364, %v351, 0
        %v421 = vsel %vm364, %v354, 0
        %v423 = vsel %vm364, %v356, 0
        %v425 = vsel %vm364, %v359, 0
        %v427 = vsel %vm364, %v361, 0
        %429 = vmatprep.subr.mxu0 0.0
        %430 = vmatpush1.msra.mxu0 %v363
        %431 = vmatprep.subr.mxu0 0.0
        %432 = vmatpush1.msra.mxu0 0.0
        %433 = vmatprep.subr.mxu0 0.0
        %434 = vmatpush1.msra.mxu0 0.0
        %435 = vmatprep.subr.mxu0 0.0
        %436 = vmatpush1.msra.mxu0 0.0
        %437 = vmatprep.subr.mxu0 0.0
        %438 = vmatpush1.msra.mxu0 0.0
        %439 = vmatprep.subr.mxu0 0.0
        %440 = vmatpush1.msra.mxu0 0.0
        %441 = vmatprep.subr.mxu0 0.0
        %442 = vmatpush1.msra.mxu0 0.0
        %443 = vmatprep.subr.mxu0 0.0
        %444 = vmatpush1.msra.mxu0 0.0
        %445 = vmatprep.subr.mxu0 0.0
        %446 = vmatpush1.msra.mxu0 0.0
        %447 = vmatprep.subr.mxu0 0.0
        %448 = vmatpush1.msra.mxu0 0.0
        %449 = vmatprep.subr.mxu0 0.0
        %450 = vmatpush1.msra.mxu0 0.0
        %451 = vmatprep.subr.mxu0 0.0
        %452 = vmatpush1.msra.mxu0 0.0
        %453 = vmatprep.subr.mxu0 0.0
        %454 = vmatpush1.msra.mxu0 0.0
        %455 = vmatprep.subr.mxu0 0.0
        %456 = vmatpush1.msra.mxu0 0.0
        %457 = vmatprep.subr.mxu0 0.0
        %458 = vmatpush1.msra.mxu0 0.0
        %459 = vmatprep.subr.mxu0 0.0
        %460 = vmatpush1.msra.mxu0 0.0
        %461 = vmatprep.subr.mxu0 0.0
        %462 = vmatpush1.msra.mxu0 0.0
        %463 = vmatprep.subr.mxu0 0.0
        %464 = vmatpush1.msra.mxu0 0.0
        %465 = vmatprep.subr.mxu0 0.0
        %466 = vmatpush1.msra.mxu0 0.0
        %467 = vmatprep.subr.mxu0 0.0
        %468 = vmatpush1.msra.mxu0 0.0
        %469 = vmatprep.subr.mxu0 0.0
        %470 = vmatpush1.msra.mxu0 0.0
        %471 = vmatprep.subr.mxu0 0.0
        %472 = vmatpush1.msra.mxu0 0.0
        %473 = vmatprep.subr.mxu0 0.0
        %474 = vmatpush1.msra.mxu0 0.0
        %475 = vmatprep.subr.mxu0 0.0
        %476 = vmatpush1.msra.mxu0 0.0
        %477 = vmatprep.subr.mxu0 0.0
        %478 = vmatpush1.msra.mxu0 0.0
        %479 = vmatprep.subr.mxu0 0.0
        %480 = vmatpush1.msra.mxu0 0.0
        %481 = vmatprep.subr.mxu0 0.0
        %482 = vmatpush1.msra.mxu0 0.0
        %483 = vmatprep.subr.mxu0 0.0
        %484 = vmatpush1.msra.mxu0 0.0
        %485 = vmatprep.subr.mxu0 0.0
        %486 = vmatpush1.msra.mxu0 0.0
        %487 = vmatprep.subr.mxu0 0.0
        %488 = vmatpush1.msra.mxu0 0.0
        %489 = vmatprep.subr.mxu0 0.0
        %490 = vmatpush1.msra.mxu0 0.0
        %491 = vmatprep.subr.mxu0 0.0
        %492 = vmatpush1.msra.mxu0 0.0
        %493 = vmatprep.mubr.f32.mxu0 0.0
        %494 = vmatmul.mubr.f32.gmra.mrb[0].mxu0 %v365
        %v495 = vpop.f32.mrb[0].mxu0
        %v496 = vadd.f32 0.0, %v495
        %v497 = vpop.f32.mrb[0].mxu0
        %498 = vmatprep.mubr.f32.mxu0 0.0
        %499 = vmatmul.mubr.f32.gmra.mrb[0].mxu0 %v367
        %v500 = vpop.f32.mrb[0].mxu0
        %v501 = vadd.f32 0.0, %v500
        %v502 = vpop.f32.mrb[0].mxu0
        %503 = vmatprep.mubr.f32.mxu0 0.0
        %504 = vmatmul.mubr.f32.gmra.mrb[0].mxu0 %v369
        %v505 = vpop.f32.mrb[0].mxu0
        %v506 = vadd.f32 0.0, %v505
        %v507 = vpop.f32.mrb[0].mxu0
        %508 = vmatprep.mubr.f32.mxu0 0.0
        %509 = vmatmul.mubr.f32.gmra.mrb[0].mxu0 %v371
        %v510 = vpop.f32.mrb[0].mxu0
        %v511 = vadd.f32 0.0, %v510
        %v512 = vpop.f32.mrb[0].mxu0
        %513 = vmatprep.mubr.f32.mxu0 0.0
        %514 = vmatmul.mubr.f32.gmra.mrb[0].mxu0 %v373
        %v515 = vpop.f32.mrb[0].mxu0
        %v516 = vadd.f32 0.0, %v515
        %v517 = vpop.f32.mrb[0].mxu0
        %518 = vmatprep.mubr.f32.mxu0 0.0
        %519 = vmatmul.mubr.f32.gmra.mrb[0].mxu0 %v375
        %v520 = vpop.f32.mrb[0].mxu0
        %v521 = vadd.f32 0.0, %v520
        %v522 = vpop.f32.mrb[0].mxu0
        %523 = vmatprep.mubr.f32.mxu0 0.0
        %524 = vmatmul.mubr.f32.gmra.mrb[0].mxu0 %v377
        %v525 = vpop.f32.mrb[0].mxu0
        %v526 = vadd.f32 0.0, %v525
        %v527 = vpop.f32.mrb[0].mxu0
        %528 = vmatprep.mubr.f32.mxu0 0.0
        %529 = vmatmul.mubr.f32.gmra.mrb[0].mxu0 %v379
        %v530 = vpop.f32.mrb[0].mxu0
        %v531 = vadd.f32 0.0, %v530
        %v532 = vpop.f32.mrb[0].mxu0
        %533 = vmatprep.mubr.f32.mxu0 0.0
        %534 = vmatmul.mubr.f32.gmra.mrb[0].mxu0 %v381
        %v535 = vpop.f32.mrb[0].mxu0
        %v536 = vadd.f32 0.0, %v535
        %v537 = vpop.f32.mrb[0].mxu0
        %538 = vmatprep.mubr.f32.mxu0 0.0
        %539 = vmatmul.mubr.f32.gmra.mrb[0].mxu0 %v383
        %v540 = vpop.f32.mrb[0].mxu0
        %v541 = vadd.f32 0.0, %v540
        %v542 = vpop.f32.mrb[0].mxu0
        %543 = vmatprep.mubr.f32.mxu0 0.0
        %544 = vmatmul.mubr.f32.gmra.mrb[0].mxu0 %v385
        %v545 = vpop.f32.mrb[0].mxu0
        %v546 = vadd.f32 0.0, %v545
        %v547 = vpop.f32.mrb[0].mxu0
        %548 = vmatprep.mubr.f32.mxu0 0.0
        %549 = vmatmul.mubr.f32.gmra.mrb[0].mxu0 %v387
        %v550 = vpop.f32.mrb[0].mxu0
        %v551 = vadd.f32 0.0, %v550
        %v552 = vpop.f32.mrb[0].mxu0
        %553 = vmatprep.mubr.f32.mxu0 0.0
        %554 = vmatmul.mubr.f32.gmra.mrb[0].mxu0 %v389
        %v555 = vpop.f32.mrb[0].mxu0
        %v556 = vadd.f32 0.0, %v555
        %v557 = vpop.f32.mrb[0].mxu0
        %558 = vmatprep.mubr.f32.mxu0 0.0
        %559 = vmatmul.mubr.f32.gmra.mrb[0].mxu0 %v391
        %v560 = vpop.f32.mrb[0].mxu0
        %v561 = vadd.f32 0.0, %v560
        %v562 = vpop.f32.mrb[0].mxu0
        %563 = vmatprep.mubr.f32.mxu0 0.0
        %564 = vmatmul.mubr.f32.gmra.mrb[0].mxu0 %v393
        %v565 = vpop.f32.mrb[0].mxu0
        %v566 = vadd.f32 0.0, %v565
        %v567 = vpop.f32.mrb[0].mxu0
        %568 = vmatprep.mubr.f32.mxu0 0.0
        %569 = vmatmul.mubr.f32.gmra.mrb[0].mxu0 %v395
        %v570 = vpop.f32.mrb[0].mxu0
        %v571 = vadd.f32 0.0, %v570
        %v572 = vpop.f32.mrb[0].mxu0
        %573 = vmatprep.mubr.f32.mxu0 0.0
        %574 = vmatmul.mubr.f32.gmra.mrb[0].mxu0 %v397
        %v575 = vpop.f32.mrb[0].mxu0
        %v576 = vadd.f32 0.0, %v575
        %v577 = vpop.f32.mrb[0].mxu0
        %578 = vmatprep.mubr.f32.mxu0 0.0
        %579 = vmatmul.mubr.f32.gmra.mrb[0].mxu0 %v399
        %v580 = vpop.f32.mrb[0].mxu0
        %v581 = vadd.f32 0.0, %v580
        %v582 = vpop.f32.mrb[0].mxu0
        %583 = vmatprep.mubr.f32.mxu0 0.0
        %584 = vmatmul.mubr.f32.gmra.mrb[0].mxu0 %v401
        %v585 = vpop.f32.mrb[0].mxu0
        %v586 = vadd.f32 0.0, %v585
        %v587 = vpop.f32.mrb[0].mxu0
        %588 = vmatprep.mubr.f32.mxu0 0.0
        %589 = vmatmul.mubr.f32.gmra.mrb[0].mxu0 %v403
        %v590 = vpop.f32.mrb[0].mxu0
        %v591 = vadd.f32 0.0, %v590
        %v592 = vpop.f32.mrb[0].mxu0
        %593 = vmatprep.mubr.f32.mxu0 0.0
        %594 = vmatmul.mubr.f32.gmra.mrb[0].mxu0 %v405
        %v595 = vpop.f32.mrb[0].mxu0
        %v596 = vadd.f32 0.0, %v595
        %v597 = vpop.f32.mrb[0].mxu0
        %598 = vmatprep.mubr.f32.mxu0 0.0
        %599 = vmatmul.mubr.f32.gmra.mrb[0].mxu0 %v407
        %v600 = vpop.f32.mrb[0].mxu0
        %v601 = vadd.f32 0.0, %v600
        %v602 = vpop.f32.mrb[0].mxu0
        %603 = vmatprep.mubr.f32.mxu0 0.0
        %604 = vmatmul.mubr.f32.gmra.mrb[0].mxu0 %v409
        %v605 = vpop.f32.mrb[0].mxu0
        %v606 = vadd.f32 0.0, %v605
        %v607 = vpop.f32.mrb[0].mxu0
        %608 = vmatprep.mubr.f32.mxu0 0.0
        %609 = vmatmul.mubr.f32.gmra.mrb[0].mxu0 %v411
        %v610 = vpop.f32.mrb[0].mxu0
        %v611 = vadd.f32 0.0, %v610
        %v612 = vpop.f32.mrb[0].mxu0
        %613 = vmatprep.mubr.f32.mxu0 0.0
        %614 = vmatmul.mubr.f32.gmra.mrb[0].mxu0 %v413
        %v615 = vpop.f32.mrb[0].mxu0
        %v616 = vadd.f32 0.0, %v615
        %v617 = vpop.f32.mrb[0].mxu0
        %618 = vmatprep.mubr.f32.mxu0 0.0
        %619 = vmatmul.mubr.f32.gmra.mrb[0].mxu0 %v415
        %v620 = vpop.f32.mrb[0].mxu0
        %v621 = vadd.f32 0.0, %v620
        %v622 = vpop.f32.mrb[0].mxu0
        %623 = vmatprep.mubr.f32.mxu0 0.0
        %624 = vmatmul.mubr.f32.gmra.mrb[0].mxu0 %v417
        %v625 = vpop.f32.mrb[0].mxu0
        %v626 = vadd.f32 0.0, %v625
        %v627 = vpop.f32.mrb[0].mxu0
        %628 = vmatprep.mubr.f32.mxu0 0.0
        %629 = vmatmul.mubr.f32.gmra.mrb[0].mxu0 %v419
        %v630 = vpop.f32.mrb[0].mxu0
        %v631 = vadd.f32 0.0, %v630
        %v632 = vpop.f32.mrb[0].mxu0
        %633 = vmatprep.mubr.f32.mxu0 0.0
        %634 = vmatmul.mubr.f32.gmra.mrb[0].mxu0 %v421
        %v635 = vpop.f32.mrb[0].mxu0
        %v636 = vadd.f32 0.0, %v635
        %v637 = vpop.f32.mrb[0].mxu0
        %638 = vmatprep.mubr.f32.mxu0 0.0
        %639 = vmatmul.mubr.f32.gmra.mrb[0].mxu0 %v423
        %v640 = vpop.f32.mrb[0].mxu0
        %v641 = vadd.f32 0.0, %v640
        %v642 = vpop.f32.mrb[0].mxu0
        %643 = vmatprep.mubr.f32.mxu0 0.0
        %644 = vmatmul.mubr.f32.gmra.mrb[0].mxu0 %v425
        %v645 = vpop.f32.mrb[0].mxu0
        %v646 = vadd.f32 0.0, %v645
        %v647 = vpop.f32.mrb[0].mxu0
        %648 = vmatprep.mubr.f32.mxu0 0.0
        %649 = vmatmul.mubr.f32.gmra.mrb[0].mxu0 %v427
        %v650 = vpop.f32.mrb[0].mxu0
        %v651 = vadd.f32 0.0, %v650
        %v652 = vpop.f32.mrb[0].mxu0
        %653 = vdwg.mxu0
        %v654 = vsel %vm364, %v184, 0
        %v656 = vsel %vm364, %v185, 0
        %v658 = vsel %vm364, %v187, 0
        %v660 = vsel %vm364, %v188, 0
        %v662 = vsel %vm364, %v190, 0
        %v664 = vsel %vm364, %v191, 0
        %v666 = vsel %vm364, %v193, 0
        %v668 = vsel %vm364, %v194, 0
        %v670 = vsel %vm364, %v196, 0
        %v672 = vsel %vm364, %v197, 0
        %v674 = vsel %vm364, %v199, 0
        %v676 = vsel %vm364, %v200, 0
        %v678 = vsel %vm364, %v202, 0
        %v680 = vsel %vm364, %v203, 0
        %v682 = vsel %vm364, %v205, 0
        %v684 = vsel %vm364, %v206, 0
        %v686 = vsel %vm364, %v208, 0
        %v688 = vsel %vm364, %v209, 0
        %v690 = vsel %vm364, %v211, 0
        %v692 = vsel %vm364, %v212, 0
        %v694 = vsel %vm364, %v214, 0
        %v696 = vsel %vm364, %v215, 0
        %v698 = vsel %vm364, %v217, 0
        %v700 = vsel %vm364, %v218, 0
        %v702 = vsel %vm364, %v220, 0
        %v704 = vsel %vm364, %v221, 0
        %v706 = vsel %vm364, %v223, 0
        %v708 = vsel %vm364, %v224, 0
        %v710 = vsel %vm364, %v226, 0
        %v712 = vsel %vm364, %v227, 0
        %v714 = vsel %vm364, %v229, 0
        %v716 = vsel %vm364, %v230, 0
        %718 = vmatprep.subr.mxu0 0.0
        %719 = vmatpush1.msra.mxu0 %v232
        %720 = vmatprep.subr.mxu0 0.0
        %721 = vmatpush1.msra.mxu0 0.0
        %722 = vmatprep.subr.mxu0 0.0
        %723 = vmatpush1.msra.mxu0 0.0
        %724 = vmatprep.subr.mxu0 0.0
        %725 = vmatpush1.msra.mxu0 0.0
        %726 = vmatprep.subr.mxu0 0.0
        %727 = vmatpush1.msra.mxu0 0.0
        %728 = vmatprep.subr.mxu0 0.0
        %729 = vmatpush1.msra.mxu0 0.0
        %730 = vmatprep.subr.mxu0 0.0
        %731 = vmatpush1.msra.mxu0 0.0
        %732 = vmatprep.subr.mxu0 0.0
        %733 = vmatpush1.msra.mxu0 0.0
        %734 = vmatprep.subr.mxu0 0.0
        %735 = vmatpush1.msra.mxu0 0.0
        %736 = vmatprep.subr.mxu0 0.0
        %737 = vmatpush1.msra.mxu0 0.0
        %738 = vmatprep.subr.mxu0 0.0
        %739 = vmatpush1.msra.mxu0 0.0
        %740 = vmatprep.subr.mxu0 0.0
        %741 = vmatpush1.msra.mxu0 0.0
        %742 = vmatprep.subr.mxu0 0.0
        %743 = vmatpush1.msra.mxu0 0.0
        %744 = vmatprep.subr.mxu0 0.0
        %745 = vmatpush1.msra.mxu0 0.0
        %746 = vmatprep.subr.mxu0 0.0
        %747 = vmatpush1.msra.mxu0 0.0
        %748 = vmatprep.subr.mxu0 0.0
        %749 = vmatpush1.msra.mxu0 0.0
        %750 = vmatprep.subr.mxu0 0.0
        %751 = vmatpush1.msra.mxu0 0.0
        %752 = vmatprep.subr.mxu0 0.0
        %753 = vmatpush1.msra.mxu0 0.0
        %754 = vmatprep.subr.mxu0 0.0
        %755 = vmatpush1.msra.mxu0 0.0
        %756 = vmatprep.subr.mxu0 0.0
        %757 = vmatpush1.msra.mxu0 0.0
        %758 = vmatprep.subr.mxu0 0.0
        %759 = vmatpush1.msra.mxu0 0.0
        %760 = vmatprep.subr.mxu0 0.0
        %761 = vmatpush1.msra.mxu0 0.0
        %762 = vmatprep.subr.mxu0 0.0
        %763 = vmatpush1.msra.mxu0 0.0
        %764 = vmatprep.subr.mxu0 0.0
        %765 = vmatpush1.msra.mxu0 0.0
        %766 = vmatprep.subr.mxu0 0.0
        %767 = vmatpush1.msra.mxu0 0.0
        %768 = vmatprep.subr.mxu0 0.0
        %769 = vmatpush1.msra.mxu0 0.0
        %770 = vmatprep.subr.mxu0 0.0
        %771 = vmatpush1.msra.mxu0 0.0
        %772 = vmatprep.subr.mxu0 0.0
        %773 = vmatpush1.msra.mxu0 0.0
        %774 = vmatprep.subr.mxu0 0.0
        %775 = vmatpush1.msra.mxu0 0.0
        %776 = vmatprep.subr.mxu0 0.0
        %777 = vmatpush1.msra.mxu0 0.0
        %778 = vmatprep.subr.mxu0 0.0
        %779 = vmatpush1.msra.mxu0 0.0
        %780 = vmatprep.subr.mxu0 0.0
        %781 = vmatpush1.msra.mxu0 0.0
        %782 = vmatprep.mubr.f32.mxu0 0.0
        %783 = vmatmul.mubr.f32.gmra.mrb[0].mxu0 %v654
        %v784 = vpop.f32.mrb[0].mxu0
        %v785 = vadd.f32 %v496, %v784
        %v786 = vpop.f32.mrb[0].mxu0
        %787 = vmatprep.mubr.f32.mxu0 0.0
        %788 = vmatmul.mubr.f32.gmra.mrb[0].mxu0 %v656
        %v789 = vpop.f32.mrb[0].mxu0
        %v790 = vadd.f32 %v501, %v789
        %v791 = vpop.f32.mrb[0].mxu0
        %792 = vmatprep.mubr.f32.mxu0 0.0
        %793 = vmatmul.mubr.f32.gmra.mrb[0].mxu0 %v658
        %v794 = vpop.f32.mrb[0].mxu0
        %v795 = vadd.f32 %v506, %v794
        %v796 = vpop.f32.mrb[0].mxu0
        %797 = vmatprep.mubr.f32.mxu0 0.0
        %798 = vmatmul.mubr.f32.gmra.mrb[0].mxu0 %v660
        %v799 = vpop.f32.mrb[0].mxu0
        %v800 = vadd.f32 %v511, %v799
        %v801 = vpop.f32.mrb[0].mxu0
        %802 = vmatprep.mubr.f32.mxu0 0.0
        %803 = vmatmul.mubr.f32.gmra.mrb[0].mxu0 %v662
        %v804 = vpop.f32.mrb[0].mxu0
        %v805 = vadd.f32 %v516, %v804
        %v806 = vpop.f32.mrb[0].mxu0
        %807 = vmatprep.mubr.f32.mxu0 0.0
        %808 = vmatmul.mubr.f32.gmra.mrb[0].mxu0 %v664
        %v809 = vpop.f32.mrb[0].mxu0
        %v810 = vadd.f32 %v521, %v809
        %v811 = vpop.f32.mrb[0].mxu0
        %812 = vmatprep.mubr.f32.mxu0 0.0
        %813 = vmatmul.mubr.f32.gmra.mrb[0].mxu0 %v666
        %v814 = vpop.f32.mrb[0].mxu0
        %v815 = vadd.f32 %v526, %v814
        %v816 = vpop.f32.mrb[0].mxu0
        %817 = vmatprep.mubr.f32.mxu0 0.0
        %818 = vmatmul.mubr.f32.gmra.mrb[0].mxu0 %v668
        %v819 = vpop.f32.mrb[0].mxu0
        %v820 = vadd.f32 %v531, %v819
        %v821 = vpop.f32.mrb[0].mxu0
        %822 = vmatprep.mubr.f32.mxu0 0.0
        %823 = vmatmul.mubr.f32.gmra.mrb[0].mxu0 %v670
        %v824 = vpop.f32.mrb[0].mxu0
        %v825 = vadd.f32 %v536, %v824
        %v826 = vpop.f32.mrb[0].mxu0
        %827 = vmatprep.mubr.f32.mxu0 0.0
        %828 = vmatmul.mubr.f32.gmra.mrb[0].mxu0 %v672
        %v829 = vpop.f32.mrb[0].mxu0
        %v830 = vadd.f32 %v541, %v829
        %v831 = vpop.f32.mrb[0].mxu0
        %832 = vmatprep.mubr.f32.mxu0 0.0
        %833 = vmatmul.mubr.f32.gmra.mrb[0].mxu0 %v674
        %v834 = vpop.f32.mrb[0].mxu0
        %v835 = vadd.f32 %v546, %v834
        %v836 = vpop.f32.mrb[0].mxu0
        %837 = vmatprep.mubr.f32.mxu0 0.0
        %838 = vmatmul.mubr.f32.gmra.mrb[0].mxu0 %v676
        %v839 = vpop.f32.mrb[0].mxu0
        %v840 = vadd.f32 %v551, %v839
        %v841 = vpop.f32.mrb[0].mxu0
        %842 = vmatprep.mubr.f32.mxu0 0.0
        %843 = vmatmul.mubr.f32.gmra.mrb[0].mxu0 %v678
        %v844 = vpop.f32.mrb[0].mxu0
        %v845 = vadd.f32 %v556, %v844
        %v846 = vpop.f32.mrb[0].mxu0
        %847 = vmatprep.mubr.f32.mxu0 0.0
        %848 = vmatmul.mubr.f32.gmra.mrb[0].mxu0 %v680
        %v849 = vpop.f32.mrb[0].mxu0
        %v850 = vadd.f32 %v561, %v849
        %v851 = vpop.f32.mrb[0].mxu0
        %852 = vmatprep.mubr.f32.mxu0 0.0
        %853 = vmatmul.mubr.f32.gmra.mrb[0].mxu0 %v682
        %v854 = vpop.f32.mrb[0].mxu0
        %v855 = vadd.f32 %v566, %v854
        %v856 = vpop.f32.mrb[0].mxu0
        %857 = vmatprep.mubr.f32.mxu0 0.0
        %858 = vmatmul.mubr.f32.gmra.mrb[0].mxu0 %v684
        %v859 = vpop.f32.mrb[0].mxu0
        %v860 = vadd.f32 %v571, %v859
        %v861 = vpop.f32.mrb[0].mxu0
        %862 = vmatprep.mubr.f32.mxu0 0.0
        %863 = vmatmul.mubr.f32.gmra.mrb[0].mxu0 %v686
        %v864 = vpop.f32.mrb[0].mxu0
        %v865 = vadd.f32 %v576, %v864
        %v866 = vpop.f32.mrb[0].mxu0
        %867 = vmatprep.mubr.f32.mxu0 0.0
        %868 = vmatmul.mubr.f32.gmra.mrb[0].mxu0 %v688
        %v869 = vpop.f32.mrb[0].mxu0
        %v870 = vadd.f32 %v581, %v869
        %v871 = vpop.f32.mrb[0].mxu0
        %872 = vmatprep.mubr.f32.mxu0 0.0
        %873 = vmatmul.mubr.f32.gmra.mrb[0].mxu0 %v690
        %v874 = vpop.f32.mrb[0].mxu0
        %v875 = vadd.f32 %v586, %v874
        %v876 = vpop.f32.mrb[0].mxu0
        %877 = vmatprep.mubr.f32.mxu0 0.0
        %878 = vmatmul.mubr.f32.gmra.mrb[0].mxu0 %v692
        %v879 = vpop.f32.mrb[0].mxu0
        %v880 = vadd.f32 %v591, %v879
        %v881 = vpop.f32.mrb[0].mxu0
        %882 = vmatprep.mubr.f32.mxu0 0.0
        %883 = vmatmul.mubr.f32.gmra.mrb[0].mxu0 %v694
        %v884 = vpop.f32.mrb[0].mxu0
        %v885 = vadd.f32 %v596, %v884
        %v886 = vpop.f32.mrb[0].mxu0
        %887 = vmatprep.mubr.f32.mxu0 0.0
        %888 = vmatmul.mubr.f32.gmra.mrb[0].mxu0 %v696
        %v889 = vpop.f32.mrb[0].mxu0
        %v890 = vadd.f32 %v601, %v889
        %v891 = vpop.f32.mrb[0].mxu0
        %892 = vmatprep.mubr.f32.mxu0 0.0
        %893 = vmatmul.mubr.f32.gmra.mrb[0].mxu0 %v698
        %v894 = vpop.f32.mrb[0].mxu0
        %v895 = vadd.f32 %v606, %v894
        %v896 = vpop.f32.mrb[0].mxu0
        %897 = vmatprep.mubr.f32.mxu0 0.0
        %898 = vmatmul.mubr.f32.gmra.mrb[0].mxu0 %v700
        %v899 = vpop.f32.mrb[0].mxu0
        %v900 = vadd.f32 %v611, %v899
        %v901 = vpop.f32.mrb[0].mxu0
        %902 = vmatprep.mubr.f32.mxu0 0.0
        %903 = vmatmul.mubr.f32.gmra.mrb[0].mxu0 %v702
        %v904 = vpop.f32.mrb[0].mxu0
        %v905 = vadd.f32 %v616, %v904
        %v906 = vpop.f32.mrb[0].mxu0
        %907 = vmatprep.mubr.f32.mxu0 0.0
        %908 = vmatmul.mubr.f32.gmra.mrb[0].mxu0 %v704
        %v909 = vpop.f32.mrb[0].mxu0
        %v910 = vadd.f32 %v621, %v909
        %v911 = vpop.f32.mrb[0].mxu0
        %912 = vmatprep.mubr.f32.mxu0 0.0
        %913 = vmatmul.mubr.f32.gmra.mrb[0].mxu0 %v706
        %v914 = vpop.f32.mrb[0].mxu0
        %v915 = vadd.f32 %v626, %v914
        %v916 = vpop.f32.mrb[0].mxu0
        %917 = vmatprep.mubr.f32.mxu0 0.0
        %918 = vmatmul.mubr.f32.gmra.mrb[0].mxu0 %v708
        %v919 = vpop.f32.mrb[0].mxu0
        %v920 = vadd.f32 %v631, %v919
        %v921 = vpop.f32.mrb[0].mxu0
        %922 = vmatprep.mubr.f32.mxu0 0.0
        %923 = vmatmul.mubr.f32.gmra.mrb[0].mxu0 %v710
        %v924 = vpop.f32.mrb[0].mxu0
        %v925 = vadd.f32 %v636, %v924
        %v926 = vpop.f32.mrb[0].mxu0
        %927 = vmatprep.mubr.f32.mxu0 0.0
        %928 = vmatmul.mubr.f32.gmra.mrb[0].mxu0 %v712
        %v929 = vpop.f32.mrb[0].mxu0
        %v930 = vadd.f32 %v641, %v929
        %v931 = vpop.f32.mrb[0].mxu0
        %932 = vmatprep.mubr.f32.mxu0 0.0
        %933 = vmatmul.mubr.f32.gmra.mrb[0].mxu0 %v714
        %v934 = vpop.f32.mrb[0].mxu0
        %v935 = vadd.f32 %v646, %v934
        %v936 = vpop.f32.mrb[0].mxu0
        %937 = vmatprep.mubr.f32.mxu0 0.0
        %938 = vmatmul.mubr.f32.gmra.mrb[0].mxu0 %v716
        %v939 = vpop.f32.mrb[0].mxu0
        %v940 = vadd.f32 %v651, %v939
        %v941 = vpop.f32.mrb[0].mxu0
        %942 = vdwg.mxu0
        %vm943 = vcmask 1045504
        %v944 = vrot.slane %v184, 2
        %v945 = vrot.slane %v185, 2
        %v946 = vsel %vm943, %v944, %v945
        %v947 = vrot.slane %v186, 2
        %v948 = vsel %vm943, %v945, %v947
        %v949 = vrot.slane %v187, 2
        %v950 = vrot.slane %v188, 2
        %v951 = vsel %vm943, %v949, %v950
        %v952 = vrot.slane %v189, 2
        %v953 = vsel %vm943, %v950, %v952
        %v954 = vrot.slane %v190, 2
        %v955 = vrot.slane %v191, 2
        %v956 = vsel %vm943, %v954, %v955
        %v957 = vrot.slane %v192, 2
        %v958 = vsel %vm943, %v955, %v957
        %v959 = vrot.slane %v193, 2
        %v960 = vrot.slane %v194, 2
        %v961 = vsel %vm943, %v959, %v960
        %v962 = vrot.slane %v195, 2
        %v963 = vsel %vm943, %v960, %v962
        %v964 = vrot.slane %v196, 2
        %v965 = vrot.slane %v197, 2
        %v966 = vsel %vm943, %v964, %v965
        %v967 = vrot.slane %v198, 2
        %v968 = vsel %vm943, %v965, %v967
        %v969 = vrot.slane %v199, 2
        %v970 = vrot.slane %v200, 2
        %v971 = vsel %vm943, %v969, %v970
        %v972 = vrot.slane %v201, 2
        %v973 = vsel %vm943, %v970, %v972
        %v974 = vrot.slane %v202, 2
        %v975 = vrot.slane %v203, 2
        %v976 = vsel %vm943, %v974, %v975
        %v977 = vrot.slane %v204, 2
        %v978 = vsel %vm943, %v975, %v977
        %v979 = vrot.slane %v205, 2
        %v980 = vrot.slane %v206, 2
        %v981 = vsel %vm943, %v979, %v980
        %v982 = vrot.slane %v207, 2
        %v983 = vsel %vm943, %v980, %v982
        %v984 = vrot.slane %v208, 2
        %v985 = vrot.slane %v209, 2
        %v986 = vsel %vm943, %v984, %v985
        %v987 = vrot.slane %v210, 2
        %v988 = vsel %vm943, %v985, %v987
        %v989 = vrot.slane %v211, 2
        %v990 = vrot.slane %v212, 2
        %v991 = vsel %vm943, %v989, %v990
        %v992 = vrot.slane %v213, 2
        %v993 = vsel %vm943, %v990, %v992
        %v994 = vrot.slane %v214, 2
        %v995 = vrot.slane %v215, 2
        %v996 = vsel %vm943, %v994, %v995
        %v997 = vrot.slane %v216, 2
        %v998 = vsel %vm943, %v995, %v997
        %v999 = vrot.slane %v217, 2
        %v1000 = vrot.slane %v218, 2
        %v1001 = vsel %vm943, %v999, %v1000
        %v1002 = vrot.slane %v219, 2
        %v1003 = vsel %vm943, %v1000, %v1002
        %v1004 = vrot.slane %v220, 2
        %v1005 = vrot.slane %v221, 2
        %v1006 = vsel %vm943, %v1004, %v1005
        %v1007 = vrot.slane %v222, 2
        %v1008 = vsel %vm943, %v1005, %v1007
        %v1009 = vrot.slane %v223, 2
        %v1010 = vrot.slane %v224, 2
        %v1011 = vsel %vm943, %v1009, %v1010
        %v1012 = vrot.slane %v225, 2
        %v1013 = vsel %vm943, %v1010, %v1012
        %v1014 = vrot.slane %v226, 2
        %v1015 = vrot.slane %v227, 2
        %v1016 = vsel %vm943, %v1014, %v1015
        %v1017 = vrot.slane %v228, 2
        %v1018 = vsel %vm943, %v1015, %v1017
        %v1019 = vrot.slane %v229, 2
        %v1020 = vrot.slane %v230, 2
        %v1021 = vsel %vm943, %v1019, %v1020
        %v1022 = vrot.slane %v231, 2
        %v1023 = vsel %vm943, %v1020, %v1022
        %s1024 = scalar_lea.vmem %s1, 16
        %v1025 = vld [vmem:[%s1024] sm:$0xff]
        %v1026 = vsel %vm364, %v946, 0
        %v1028 = vsel %vm364, %v948, 0
        %v1030 = vsel %vm364, %v951, 0
        %v1032 = vsel %vm364, %v953, 0
        %v1034 = vsel %vm364, %v956, 0
        %v1036 = vsel %vm364, %v958, 0
        %v1038 = vsel %vm364, %v961, 0
        %v1040 = vsel %vm364, %v963, 0
        %v1042 = vsel %vm364, %v966, 0
        %v1044 = vsel %vm364, %v968, 0
        %v1046 = vsel %vm364, %v971, 0
        %v1048 = vsel %vm364, %v973, 0
        %v1050 = vsel %vm364, %v976, 0
        %v1052 = vsel %vm364, %v978, 0
        %v1054 = vsel %vm364, %v981, 0
        %v1056 = vsel %vm364, %v983, 0
        %v1058 = vsel %vm364, %v986, 0
        %v1060 = vsel %vm364, %v988, 0
        %v1062 = vsel %vm364, %v991, 0
        %v1064 = vsel %vm364, %v993, 0
        %v1066 = vsel %vm364, %v996, 0
        %v1068 = vsel %vm364, %v998, 0
        %v1070 = vsel %vm364, %v1001, 0
        %v1072 = vsel %vm364, %v1003, 0
        %v1074 = vsel %vm364, %v1006, 0
        %v1076 = vsel %vm364, %v1008, 0
        %v1078 = vsel %vm364, %v1011, 0
        %v1080 = vsel %vm364, %v1013, 0
        %v1082 = vsel %vm364, %v1016, 0
        %v1084 = vsel %vm364, %v1018, 0
        %v1086 = vsel %vm364, %v1021, 0
        %v1088 = vsel %vm364, %v1023, 0
        %1090 = vmatprep.subr.mxu0 0.0
        %1091 = vmatpush1.msra.mxu0 %v1025
        %1092 = vmatprep.subr.mxu0 0.0
        %1093 = vmatpush1.msra.mxu0 0.0
        %1094 = vmatprep.subr.mxu0 0.0
        %1095 = vmatpush1.msra.mxu0 0.0
        %1096 = vmatprep.subr.mxu0 0.0
        %1097 = vmatpush1.msra.mxu0 0.0
        %1098 = vmatprep.subr.mxu0 0.0
        %1099 = vmatpush1.msra.mxu0 0.0
        %1100 = vmatprep.subr.mxu0 0.0
        %1101 = vmatpush1.msra.mxu0 0.0
        %1102 = vmatprep.subr.mxu0 0.0
        %1103 = vmatpush1.msra.mxu0 0.0
        %1104 = vmatprep.subr.mxu0 0.0
        %1105 = vmatpush1.msra.mxu0 0.0
        %1106 = vmatprep.subr.mxu0 0.0
        %1107 = vmatpush1.msra.mxu0 0.0
        %1108 = vmatprep.subr.mxu0 0.0
        %1109 = vmatpush1.msra.mxu0 0.0
        %1110 = vmatprep.subr.mxu0 0.0
        %1111 = vmatpush1.msra.mxu0 0.0
        %1112 = vmatprep.subr.mxu0 0.0
        %1113 = vmatpush1.msra.mxu0 0.0
        %1114 = vmatprep.subr.mxu0 0.0
        %1115 = vmatpush1.msra.mxu0 0.0
        %1116 = vmatprep.subr.mxu0 0.0
        %1117 = vmatpush1.msra.mxu0 0.0
        %1118 = vmatprep.subr.mxu0 0.0
        %1119 = vmatpush1.msra.mxu0 0.0
        %1120 = vmatprep.subr.mxu0 0.0
        %1121 = vmatpush1.msra.mxu0 0.0
        %1122 = vmatprep.subr.mxu0 0.0
        %1123 = vmatpush1.msra.mxu0 0.0
        %1124 = vmatprep.subr.mxu0 0.0
        %1125 = vmatpush1.msra.mxu0 0.0
        %1126 = vmatprep.subr.mxu0 0.0
        %1127 = vmatpush1.msra.mxu0 0.0
        %1128 = vmatprep.subr.mxu0 0.0
        %1129 = vmatpush1.msra.mxu0 0.0
        %1130 = vmatprep.subr.mxu0 0.0
        %1131 = vmatpush1.msra.mxu0 0.0
        %1132 = vmatprep.subr.mxu0 0.0
        %1133 = vmatpush1.msra.mxu0 0.0
        %1134 = vmatprep.subr.mxu0 0.0
        %1135 = vmatpush1.msra.mxu0 0.0
        %1136 = vmatprep.subr.mxu0 0.0
        %1137 = vmatpush1.msra.mxu0 0.0
        %1138 = vmatprep.subr.mxu0 0.0
        %1139 = vmatpush1.msra.mxu0 0.0
        %1140 = vmatprep.subr.mxu0 0.0
        %1141 = vmatpush1.msra.mxu0 0.0
        %1142 = vmatprep.subr.mxu0 0.0
        %1143 = vmatpush1.msra.mxu0 0.0
        %1144 = vmatprep.subr.mxu0 0.0
        %1145 = vmatpush1.msra.mxu0 0.0
        %1146 = vmatprep.subr.mxu0 0.0
        %1147 = vmatpush1.msra.mxu0 0.0
        %1148 = vmatprep.subr.mxu0 0.0
        %1149 = vmatpush1.msra.mxu0 0.0
        %1150 = vmatprep.subr.mxu0 0.0
        %1151 = vmatpush1.msra.mxu0 0.0
        %1152 = vmatprep.subr.mxu0 0.0
        %1153 = vmatpush1.msra.mxu0 0.0
        %1154 = vmatprep.mubr.f32.mxu0 0.0
        %1155 = vmatmul.mubr.f32.gmra.mrb[0].mxu0 %v1026
        %v1156 = vpop.f32.mrb[0].mxu0
        %v1157 = vadd.f32 0.0, %v1156
        %v1158 = vpop.f32.mrb[0].mxu0
        %1159 = vmatprep.mubr.f32.mxu0 0.0
        %1160 = vmatmul.mubr.f32.gmra.mrb[0].mxu0 %v1028
        %v1161 = vpop.f32.mrb[0].mxu0
        %v1162 = vadd.f32 0.0, %v1161
        %v1163 = vpop.f32.mrb[0].mxu0
        %1164 = vmatprep.mubr.f32.mxu0 0.0
        %1165 = vmatmul.mubr.f32.gmra.mrb[0].mxu0 %v1030
        %v1166 = vpop.f32.mrb[0].mxu0
        %v1167 = vadd.f32 0.0, %v1166
        %v1168 = vpop.f32.mrb[0].mxu0
        %1169 = vmatprep.mubr.f32.mxu0 0.0
        %1170 = vmatmul.mubr.f32.gmra.mrb[0].mxu0 %v1032
        %v1171 = vpop.f32.mrb[0].mxu0
        %v1172 = vadd.f32 0.0, %v1171
        %v1173 = vpop.f32.mrb[0].mxu0
        %1174 = vmatprep.mubr.f32.mxu0 0.0
        %1175 = vmatmul.mubr.f32.gmra.mrb[0].mxu0 %v1034
        %v1176 = vpop.f32.mrb[0].mxu0
        %v1177 = vadd.f32 0.0, %v1176
        %v1178 = vpop.f32.mrb[0].mxu0
        %1179 = vmatprep.mubr.f32.mxu0 0.0
        %1180 = vmatmul.mubr.f32.gmra.mrb[0].mxu0 %v1036
        %v1181 = vpop.f32.mrb[0].mxu0
        %v1182 = vadd.f32 0.0, %v1181
        %v1183 = vpop.f32.mrb[0].mxu0
        %1184 = vmatprep.mubr.f32.mxu0 0.0
        %1185 = vmatmul.mubr.f32.gmra.mrb[0].mxu0 %v1038
        %v1186 = vpop.f32.mrb[0].mxu0
        %v1187 = vadd.f32 0.0, %v1186
        %v1188 = vpop.f32.mrb[0].mxu0
        %1189 = vmatprep.mubr.f32.mxu0 0.0
        %1190 = vmatmul.mubr.f32.gmra.mrb[0].mxu0 %v1040
        %v1191 = vpop.f32.mrb[0].mxu0
        %v1192 = vadd.f32 0.0, %v1191
        %v1193 = vpop.f32.mrb[0].mxu0
        %1194 = vmatprep.mubr.f32.mxu0 0.0
        %1195 = vmatmul.mubr.f32.gmra.mrb[0].mxu0 %v1042
        %v1196 = vpop.f32.mrb[0].mxu0
        %v1197 = vadd.f32 0.0, %v1196
        %v1198 = vpop.f32.mrb[0].mxu0
        %1199 = vmatprep.mubr.f32.mxu0 0.0
        %1200 = vmatmul.mubr.f32.gmra.mrb[0].mxu0 %v1044
        %v1201 = vpop.f32.mrb[0].mxu0
        %v1202 = vadd.f32 0.0, %v1201
        %v1203 = vpop.f32.mrb[0].mxu0
        %1204 = vmatprep.mubr.f32.mxu0 0.0
        %1205 = vmatmul.mubr.f32.gmra.mrb[0].mxu0 %v1046
        %v1206 = vpop.f32.mrb[0].mxu0
        %v1207 = vadd.f32 0.0, %v1206
        %v1208 = vpop.f32.mrb[0].mxu0
        %1209 = vmatprep.mubr.f32.mxu0 0.0
        %1210 = vmatmul.mubr.f32.gmra.mrb[0].mxu0 %v1048
        %v1211 = vpop.f32.mrb[0].mxu0
        %v1212 = vadd.f32 0.0, %v1211
        %v1213 = vpop.f32.mrb[0].mxu0
        %1214 = vmatprep.mubr.f32.mxu0 0.0
        %1215 = vmatmul.mubr.f32.gmra.mrb[0].mxu0 %v1050
        %v1216 = vpop.f32.mrb[0].mxu0
        %v1217 = vadd.f32 0.0, %v1216
        %v1218 = vpop.f32.mrb[0].mxu0
        %1219 = vmatprep.mubr.f32.mxu0 0.0
        %1220 = vmatmul.mubr.f32.gmra.mrb[0].mxu0 %v1052
        %v1221 = vpop.f32.mrb[0].mxu0
        %v1222 = vadd.f32 0.0, %v1221
        %v1223 = vpop.f32.mrb[0].mxu0
        %1224 = vmatprep.mubr.f32.mxu0 0.0
        %1225 = vmatmul.mubr.f32.gmra.mrb[0].mxu0 %v1054
        %v1226 = vpop.f32.mrb[0].mxu0
        %v1227 = vadd.f32 0.0, %v1226
        %v1228 = vpop.f32.mrb[0].mxu0
        %1229 = vmatprep.mubr.f32.mxu0 0.0
        %1230 = vmatmul.mubr.f32.gmra.mrb[0].mxu0 %v1056
        %v1231 = vpop.f32.mrb[0].mxu0
        %v1232 = vadd.f32 0.0, %v1231
        %v1233 = vpop.f32.mrb[0].mxu0
        %1234 = vmatprep.mubr.f32.mxu0 0.0
        %1235 = vmatmul.mubr.f32.gmra.mrb[0].mxu0 %v1058
        %v1236 = vpop.f32.mrb[0].mxu0
        %v1237 = vadd.f32 0.0, %v1236
        %v1238 = vpop.f32.mrb[0].mxu0
        %1239 = vmatprep.mubr.f32.mxu0 0.0
        %1240 = vmatmul.mubr.f32.gmra.mrb[0].mxu0 %v1060
        %v1241 = vpop.f32.mrb[0].mxu0
        %v1242 = vadd.f32 0.0, %v1241
        %v1243 = vpop.f32.mrb[0].mxu0
        %1244 = vmatprep.mubr.f32.mxu0 0.0
        %1245 = vmatmul.mubr.f32.gmra.mrb[0].mxu0 %v1062
        %v1246 = vpop.f32.mrb[0].mxu0
        %v1247 = vadd.f32 0.0, %v1246
        %v1248 = vpop.f32.mrb[0].mxu0
        %1249 = vmatprep.mubr.f32.mxu0 0.0
        %1250 = vmatmul.mubr.f32.gmra.mrb[0].mxu0 %v1064
        %v1251 = vpop.f32.mrb[0].mxu0
        %v1252 = vadd.f32 0.0, %v1251
        %v1253 = vpop.f32.mrb[0].mxu0
        %1254 = vmatprep.mubr.f32.mxu0 0.0
        %1255 = vmatmul.mubr.f32.gmra.mrb[0].mxu0 %v1066
        %v1256 = vpop.f32.mrb[0].mxu0
        %v1257 = vadd.f32 0.0, %v1256
        %v1258 = vpop.f32.mrb[0].mxu0
        %1259 = vmatprep.mubr.f32.mxu0 0.0
        %1260 = vmatmul.mubr.f32.gmra.mrb[0].mxu0 %v1068
        %v1261 = vpop.f32.mrb[0].mxu0
        %v1262 = vadd.f32 0.0, %v1261
        %v1263 = vpop.f32.mrb[0].mxu0
        %1264 = vmatprep.mubr.f32.mxu0 0.0
        %1265 = vmatmul.mubr.f32.gmra.mrb[0].mxu0 %v1070
        %v1266 = vpop.f32.mrb[0].mxu0
        %v1267 = vadd.f32 0.0, %v1266
        %v1268 = vpop.f32.mrb[0].mxu0
        %1269 = vmatprep.mubr.f32.mxu0 0.0
        %1270 = vmatmul.mubr.f32.gmra.mrb[0].mxu0 %v1072
        %v1271 = vpop.f32.mrb[0].mxu0
        %v1272 = vadd.f32 0.0, %v1271
        %v1273 = vpop.f32.mrb[0].mxu0
        %1274 = vmatprep.mubr.f32.mxu0 0.0
        %1275 = vmatmul.mubr.f32.gmra.mrb[0].mxu0 %v1074
        %v1276 = vpop.f32.mrb[0].mxu0
        %v1277 = vadd.f32 0.0, %v1276
        %v1278 = vpop.f32.mrb[0].mxu0
        %1279 = vmatprep.mubr.f32.mxu0 0.0
        %1280 = vmatmul.mubr.f32.gmra.mrb[0].mxu0 %v1076
        %v1281 = vpop.f32.mrb[0].mxu0
        %v1282 = vadd.f32 0.0, %v1281
        %v1283 = vpop.f32.mrb[0].mxu0
        %1284 = vmatprep.mubr.f32.mxu0 0.0
        %1285 = vmatmul.mubr.f32.gmra.mrb[0].mxu0 %v1078
        %v1286 = vpop.f32.mrb[0].mxu0
        %v1287 = vadd.f32 0.0, %v1286
        %v1288 = vpop.f32.mrb[0].mxu0
        %1289 = vmatprep.mubr.f32.mxu0 0.0
        %1290 = vmatmul.mubr.f32.gmra.mrb[0].mxu0 %v1080
        %v1291 = vpop.f32.mrb[0].mxu0
        %v1292 = vadd.f32 0.0, %v1291
        %v1293 = vpop.f32.mrb[0].mxu0
        %1294 = vmatprep.mubr.f32.mxu0 0.0
        %1295 = vmatmul.mubr.f32.gmra.mrb[0].mxu0 %v1082
        %v1296 = vpop.f32.mrb[0].mxu0
        %v1297 = vadd.f32 0.0, %v1296
        %v1298 = vpop.f32.mrb[0].mxu0
        %1299 = vmatprep.mubr.f32.mxu0 0.0
        %1300 = vmatmul.mubr.f32.gmra.mrb[0].mxu0 %v1084
        %v1301 = vpop.f32.mrb[0].mxu0
        %v1302 = vadd.f32 0.0, %v1301
        %v1303 = vpop.f32.mrb[0].mxu0
        %1304 = vmatprep.mubr.f32.mxu0 0.0
        %1305 = vmatmul.mubr.f32.gmra.mrb[0].mxu0 %v1086
        %v1306 = vpop.f32.mrb[0].mxu0
        %v1307 = vadd.f32 0.0, %v1306
        %v1308 = vpop.f32.mrb[0].mxu0
        %1309 = vmatprep.mubr.f32.mxu0 0.0
        %1310 = vmatmul.mubr.f32.gmra.mrb[0].mxu0 %v1088
        %v1311 = vpop.f32.mrb[0].mxu0
        %v1312 = vadd.f32 0.0, %v1311
        %v1313 = vpop.f32.mrb[0].mxu0
        %1314 = vdwg.mxu0
        %v1315 = vadd.f32 %v785, %v1157
        %v1316 = vadd.f32 %v790, %v1162
        %v1317 = vadd.f32 %v795, %v1167
        %v1318 = vadd.f32 %v800, %v1172
        %v1319 = vadd.f32 %v805, %v1177
        %v1320 = vadd.f32 %v810, %v1182
        %v1321 = vadd.f32 %v815, %v1187
        %v1322 = vadd.f32 %v820, %v1192
        %v1323 = vadd.f32 %v825, %v1197
        %v1324 = vadd.f32 %v830, %v1202
        %v1325 = vadd.f32 %v835, %v1207
        %v1326 = vadd.f32 %v840, %v1212
        %v1327 = vadd.f32 %v845, %v1217
        %v1328 = vadd.f32 %v850, %v1222
        %v1329 = vadd.f32 %v855, %v1227
        %v1330 = vadd.f32 %v860, %v1232
        %v1331 = vadd.f32 %v865, %v1237
        %v1332 = vadd.f32 %v870, %v1242
        %v1333 = vadd.f32 %v875, %v1247
        %v1334 = vadd.f32 %v880, %v1252
        %v1335 = vadd.f32 %v885, %v1257
        %v1336 = vadd.f32 %v890, %v1262
        %v1337 = vadd.f32 %v895, %v1267
        %v1338 = vadd.f32 %v900, %v1272
        %v1339 = vadd.f32 %v905, %v1277
        %v1340 = vadd.f32 %v910, %v1282
        %v1341 = vadd.f32 %v915, %v1287
        %v1342 = vadd.f32 %v920, %v1292
        %v1343 = vadd.f32 %v925, %v1297
        %v1344 = vadd.f32 %v930, %v1302
        %v1345 = vadd.f32 %v935, %v1307
        %v1346 = vadd.f32 %v940, %v1312
        %s1347 = scalar_lea.vmem %s182, 24
        %v1348 = vld [vmem:[%s1347] sm:$0xff]
        %v1349 = vld [vmem:[%s1347 + $0x8] sm:$0xff]
        %v1350 = vld [vmem:[%s1347 + $0x10] sm:$0x3]
        %v1351 = vld [vmem:[%s1347 + $0x18] sm:$0xff]
        %v1352 = vld [vmem:[%s1347 + $0x20] sm:$0xff]
        %v1353 = vld [vmem:[%s1347 + $0x28] sm:$0x3]
        %v1354 = vld [vmem:[%s1347 + $0x30] sm:$0xff]
        %v1355 = vld [vmem:[%s1347 + $0x38] sm:$0xff]
        %v1356 = vld [vmem:[%s1347 + $0x40] sm:$0x3]
        %v1357 = vld [vmem:[%s1347 + $0x48] sm:$0xff]
        %v1358 = vld [vmem:[%s1347 + $0x50] sm:$0xff]
        %v1359 = vld [vmem:[%s1347 + $0x58] sm:$0x3]
        %v1360 = vld [vmem:[%s1347 + $0x60] sm:$0xff]
        %v1361 = vld [vmem:[%s1347 + $0x68] sm:$0xff]
        %v1362 = vld [vmem:[%s1347 + $0x70] sm:$0x3]
        %v1363 = vld [vmem:[%s1347 + $0x78] sm:$0xff]
        %v1364 = vld [vmem:[%s1347 + $0x80] sm:$0xff]
        %v1365 = vld [vmem:[%s1347 + $0x88] sm:$0x3]
        %v1366 = vld [vmem:[%s1347 + $0x90] sm:$0xff]
        %v1367 = vld [vmem:[%s1347 + $0x98] sm:$0xff]
        %v1368 = vld [vmem:[%s1347 + $0xa0] sm:$0x3]
        %v1369 = vld [vmem:[%s1347 + $0xa8] sm:$0xff]
        %v1370 = vld [vmem:[%s1347 + $0xb0] sm:$0xff]
        %v1371 = vld [vmem:[%s1347 + $0xb8] sm:$0x3]
        %v1372 = vld [vmem:[%s1347 + $0xc0] sm:$0xff]
        %v1373 = vld [vmem:[%s1347 + $0xc8] sm:$0xff]
        %v1374 = vld [vmem:[%s1347 + $0xd0] sm:$0x3]
        %v1375 = vld [vmem:[%s1347 + $0xd8] sm:$0xff]
        %v1376 = vld [vmem:[%s1347 + $0xe0] sm:$0xff]
        %v1377 = vld [vmem:[%s1347 + $0xe8] sm:$0x3]
        %v1378 = vld [vmem:[%s1347 + $0xf0] sm:$0xff]
        %v1379 = vld [vmem:[%s1347 + $0xf8] sm:$0xff]
        %v1380 = vld [vmem:[%s1347 + $0x100] sm:$0x3]
        %v1381 = vld [vmem:[%s1347 + $0x108] sm:$0xff]
        %v1382 = vld [vmem:[%s1347 + $0x110] sm:$0xff]
        %v1383 = vld [vmem:[%s1347 + $0x118] sm:$0x3]
        %v1384 = vld [vmem:[%s1347 + $0x120] sm:$0xff]
        %v1385 = vld [vmem:[%s1347 + $0x128] sm:$0xff]
        %v1386 = vld [vmem:[%s1347 + $0x130] sm:$0x3]
        %v1387 = vld [vmem:[%s1347 + $0x138] sm:$0xff]
        %v1388 = vld [vmem:[%s1347 + $0x140] sm:$0xff]
        %v1389 = vld [vmem:[%s1347 + $0x148] sm:$0x3]
        %v1390 = vld [vmem:[%s1347 + $0x150] sm:$0xff]
        %v1391 = vld [vmem:[%s1347 + $0x158] sm:$0xff]
        %v1392 = vld [vmem:[%s1347 + $0x160] sm:$0x3]
        %v1393 = vld [vmem:[%s1347 + $0x168] sm:$0xff]
        %v1394 = vld [vmem:[%s1347 + $0x170] sm:$0xff]
        %v1395 = vld [vmem:[%s1347 + $0x178] sm:$0x3]
        %s1396 = scalar_lea.vmem %s1, 24
        %v1397 = vld [vmem:[%s1396] sm:$0xff]
        %v1399 = vsel %vm364, %v1348, 0
        %v1402 = vsel %vm364, %v1349, 0
        %v1405 = vsel %vm364, %v1351, 0
        %v1408 = vsel %vm364, %v1352, 0
        %v1411 = vsel %vm364, %v1354, 0
        %v1414 = vsel %vm364, %v1355, 0
        %v1417 = vsel %vm364, %v1357, 0
        %v1420 = vsel %vm364, %v1358, 0
        %v1423 = vsel %vm364, %v1360, 0
        %v1426 = vsel %vm364, %v1361, 0
        %v1429 = vsel %vm364, %v1363, 0
        %v1432 = vsel %vm364, %v1364, 0
        %v1435 = vsel %vm364, %v1366, 0
        %v1438 = vsel %vm364, %v1367, 0
        %v1441 = vsel %vm364, %v1369, 0
        %v1444 = vsel %vm364, %v1370, 0
        %v1447 = vsel %vm364, %v1372, 0
        %v1450 = vsel %vm364, %v1373, 0
        %v1453 = vsel %vm364, %v1375, 0
        %v1456 = vsel %vm364, %v1376, 0
        %v1459 = vsel %vm364, %v1378, 0
        %v1462 = vsel %vm364, %v1379, 0
        %v1465 = vsel %vm364, %v1381, 0
        %v1468 = vsel %vm364, %v1382, 0
        %v1471 = vsel %vm364, %v1384, 0
        %v1474 = vsel %vm364, %v1385, 0
        %v1477 = vsel %vm364, %v1387, 0
        %v1480 = vsel %vm364, %v1388, 0
        %v1483 = vsel %vm364, %v1390, 0
        %v1486 = vsel %vm364, %v1391, 0
        %v1489 = vsel %vm364, %v1393, 0
        %v1492 = vsel %vm364, %v1394, 0
        %1494 = vmatprep.subr.mxu0 0.0
        %1495 = vmatpush1.msra.mxu0 %v1397
        %1496 = vmatprep.subr.mxu0 0.0
        %1497 = vmatpush1.msra.mxu0 0.0
        %1498 = vmatprep.subr.mxu0 0.0
        %1499 = vmatpush1.msra.mxu0 0.0
        %1500 = vmatprep.subr.mxu0 0.0
        %1501 = vmatpush1.msra.mxu0 0.0
        %1502 = vmatprep.subr.mxu0 0.0
        %1503 = vmatpush1.msra.mxu0 0.0
        %1504 = vmatprep.subr.mxu0 0.0
        %1505 = vmatpush1.msra.mxu0 0.0
        %1506 = vmatprep.subr.mxu0 0.0
        %1507 = vmatpush1.msra.mxu0 0.0
        %1508 = vmatprep.subr.mxu0 0.0
        %1509 = vmatpush1.msra.mxu0 0.0
        %1510 = vmatprep.subr.mxu0 0.0
        %1511 = vmatpush1.msra.mxu0 0.0
        %1512 = vmatprep.subr.mxu0 0.0
        %1513 = vmatpush1.msra.mxu0 0.0
        %1514 = vmatprep.subr.mxu0 0.0
        %1515 = vmatpush1.msra.mxu0 0.0
        %1516 = vmatprep.subr.mxu0 0.0
        %1517 = vmatpush1.msra.mxu0 0.0
        %1518 = vmatprep.subr.mxu0 0.0
        %1519 = vmatpush1.msra.mxu0 0.0
        %1520 = vmatprep.subr.mxu0 0.0
        %1521 = vmatpush1.msra.mxu0 0.0
        %1522 = vmatprep.subr.mxu0 0.0
        %1523 = vmatpush1.msra.mxu0 0.0
        %1524 = vmatprep.subr.mxu0 0.0
        %1525 = vmatpush1.msra.mxu0 0.0
        %1526 = vmatprep.subr.mxu0 0.0
        %1527 = vmatpush1.msra.mxu0 0.0
        %1528 = vmatprep.subr.mxu0 0.0
        %1529 = vmatpush1.msra.mxu0 0.0
        %1530 = vmatprep.subr.mxu0 0.0
        %1531 = vmatpush1.msra.mxu0 0.0
        %1532 = vmatprep.subr.mxu0 0.0
        %1533 = vmatpush1.msra.mxu0 0.0
        %1534 = vmatprep.subr.mxu0 0.0
        %1535 = vmatpush1.msra.mxu0 0.0
        %1536 = vmatprep.subr.mxu0 0.0
        %1537 = vmatpush1.msra.mxu0 0.0
        %1538 = vmatprep.subr.mxu0 0.0
        %1539 = vmatpush1.msra.mxu0 0.0
        %1540 = vmatprep.subr.mxu0 0.0
        %1541 = vmatpush1.msra.mxu0 0.0
        %1542 = vmatprep.subr.mxu0 0.0
        %1543 = vmatpush1.msra.mxu0 0.0
        %1544 = vmatprep.subr.mxu0 0.0
        %1545 = vmatpush1.msra.mxu0 0.0
        %1546 = vmatprep.subr.mxu0 0.0
        %1547 = vmatpush1.msra.mxu0 0.0
        %1548 = vmatprep.subr.mxu0 0.0
        %1549 = vmatpush1.msra.mxu0 0.0
        %1550 = vmatprep.subr.mxu0 0.0
        %1551 = vmatpush1.msra.mxu0 0.0
        %1552 = vmatprep.subr.mxu0 0.0
        %1553 = vmatpush1.msra.mxu0 0.0
        %1554 = vmatprep.subr.mxu0 0.0
        %1555 = vmatpush1.msra.mxu0 0.0
        %1556 = vmatprep.subr.mxu0 0.0
        %1557 = vmatpush1.msra.mxu0 0.0
        %1558 = vmatprep.mubr.f32.mxu0 0.0
        %1559 = vmatmul.mubr.f32.gmra.mrb[0].mxu0 %v1399
        %v1560 = vpop.f32.mrb[0].mxu0
        %v1561 = vadd.f32 0.0, %v1560
        %v1562 = vpop.f32.mrb[0].mxu0
        %1563 = vmatprep.mubr.f32.mxu0 0.0
        %1564 = vmatmul.mubr.f32.gmra.mrb[0].mxu0 %v1402
        %v1565 = vpop.f32.mrb[0].mxu0
        %v1566 = vadd.f32 0.0, %v1565
        %v1567 = vpop.f32.mrb[0].mxu0
        %1568 = vmatprep.mubr.f32.mxu0 0.0
        %1569 = vmatmul.mubr.f32.gmra.mrb[0].mxu0 %v1405
        %v1570 = vpop.f32.mrb[0].mxu0
        %v1571 = vadd.f32 0.0, %v1570
        %v1572 = vpop.f32.mrb[0].mxu0
        %1573 = vmatprep.mubr.f32.mxu0 0.0
        %1574 = vmatmul.mubr.f32.gmra.mrb[0].mxu0 %v1408
        %v1575 = vpop.f32.mrb[0].mxu0
        %v1576 = vadd.f32 0.0, %v1575
        %v1577 = vpop.f32.mrb[0].mxu0
        %1578 = vmatprep.mubr.f32.mxu0 0.0
        %1579 = vmatmul.mubr.f32.gmra.mrb[0].mxu0 %v1411
        %v1580 = vpop.f32.mrb[0].mxu0
        %v1581 = vadd.f32 0.0, %v1580
        %v1582 = vpop.f32.mrb[0].mxu0
        %1583 = vmatprep.mubr.f32.mxu0 0.0
        %1584 = vmatmul.mubr.f32.gmra.mrb[0].mxu0 %v1414
        %v1585 = vpop.f32.mrb[0].mxu0
        %v1586 = vadd.f32 0.0, %v1585
        %v1587 = vpop.f32.mrb[0].mxu0
        %1588 = vmatprep.mubr.f32.mxu0 0.0
        %1589 = vmatmul.mubr.f32.gmra.mrb[0].mxu0 %v1417
        %v1590 = vpop.f32.mrb[0].mxu0
        %v1591 = vadd.f32 0.0, %v1590
        %v1592 = vpop.f32.mrb[0].mxu0
        %1593 = vmatprep.mubr.f32.mxu0 0.0
        %1594 = vmatmul.mubr.f32.gmra.mrb[0].mxu0 %v1420
        %v1595 = vpop.f32.mrb[0].mxu0
        %v1596 = vadd.f32 0.0, %v1595
        %v1597 = vpop.f32.mrb[0].mxu0
        %1598 = vmatprep.mubr.f32.mxu0 0.0
        %1599 = vmatmul.mubr.f32.gmra.mrb[0].mxu0 %v1423
        %v1600 = vpop.f32.mrb[0].mxu0
        %v1601 = vadd.f32 0.0, %v1600
        %v1602 = vpop.f32.mrb[0].mxu0
        %1603 = vmatprep.mubr.f32.mxu0 0.0
        %1604 = vmatmul.mubr.f32.gmra.mrb[0].mxu0 %v1426
        %v1605 = vpop.f32.mrb[0].mxu0
        %v1606 = vadd.f32 0.0, %v1605
        %v1607 = vpop.f32.mrb[0].mxu0
        %1608 = vmatprep.mubr.f32.mxu0 0.0
        %1609 = vmatmul.mubr.f32.gmra.mrb[0].mxu0 %v1429
        %v1610 = vpop.f32.mrb[0].mxu0
        %v1611 = vadd.f32 0.0, %v1610
        %v1612 = vpop.f32.mrb[0].mxu0
        %1613 = vmatprep.mubr.f32.mxu0 0.0
        %1614 = vmatmul.mubr.f32.gmra.mrb[0].mxu0 %v1432
        %v1615 = vpop.f32.mrb[0].mxu0
        %v1616 = vadd.f32 0.0, %v1615
        %v1617 = vpop.f32.mrb[0].mxu0
        %1618 = vmatprep.mubr.f32.mxu0 0.0
        %1619 = vmatmul.mubr.f32.gmra.mrb[0].mxu0 %v1435
        %v1620 = vpop.f32.mrb[0].mxu0
        %v1621 = vadd.f32 0.0, %v1620
        %v1622 = vpop.f32.mrb[0].mxu0
        %1623 = vmatprep.mubr.f32.mxu0 0.0
        %1624 = vmatmul.mubr.f32.gmra.mrb[0].mxu0 %v1438
        %v1625 = vpop.f32.mrb[0].mxu0
        %v1626 = vadd.f32 0.0, %v1625
        %v1627 = vpop.f32.mrb[0].mxu0
        %1628 = vmatprep.mubr.f32.mxu0 0.0
        %1629 = vmatmul.mubr.f32.gmra.mrb[0].mxu0 %v1441
        %v1630 = vpop.f32.mrb[0].mxu0
        %v1631 = vadd.f32 0.0, %v1630
        %v1632 = vpop.f32.mrb[0].mxu0
        %1633 = vmatprep.mubr.f32.mxu0 0.0
        %1634 = vmatmul.mubr.f32.gmra.mrb[0].mxu0 %v1444
        %v1635 = vpop.f32.mrb[0].mxu0
        %v1636 = vadd.f32 0.0, %v1635
        %v1637 = vpop.f32.mrb[0].mxu0
        %1638 = vmatprep.mubr.f32.mxu0 0.0
        %1639 = vmatmul.mubr.f32.gmra.mrb[0].mxu0 %v1447
        %v1640 = vpop.f32.mrb[0].mxu0
        %v1641 = vadd.f32 0.0, %v1640
        %v1642 = vpop.f32.mrb[0].mxu0
        %1643 = vmatprep.mubr.f32.mxu0 0.0
        %1644 = vmatmul.mubr.f32.gmra.mrb[0].mxu0 %v1450
        %v1645 = vpop.f32.mrb[0].mxu0
        %v1646 = vadd.f32 0.0, %v1645
        %v1647 = vpop.f32.mrb[0].mxu0
        %1648 = vmatprep.mubr.f32.mxu0 0.0
        %1649 = vmatmul.mubr.f32.gmra.mrb[0].mxu0 %v1453
        %v1650 = vpop.f32.mrb[0].mxu0
        %v1651 = vadd.f32 0.0, %v1650
        %v1652 = vpop.f32.mrb[0].mxu0
        %1653 = vmatprep.mubr.f32.mxu0 0.0
        %1654 = vmatmul.mubr.f32.gmra.mrb[0].mxu0 %v1456
        %v1655 = vpop.f32.mrb[0].mxu0
        %v1656 = vadd.f32 0.0, %v1655
        %v1657 = vpop.f32.mrb[0].mxu0
        %1658 = vmatprep.mubr.f32.mxu0 0.0
        %1659 = vmatmul.mubr.f32.gmra.mrb[0].mxu0 %v1459
        %v1660 = vpop.f32.mrb[0].mxu0
        %v1661 = vadd.f32 0.0, %v1660
        %v1662 = vpop.f32.mrb[0].mxu0
        %1663 = vmatprep.mubr.f32.mxu0 0.0
        %1664 = vmatmul.mubr.f32.gmra.mrb[0].mxu0 %v1462
        %v1665 = vpop.f32.mrb[0].mxu0
        %v1666 = vadd.f32 0.0, %v1665
        %v1667 = vpop.f32.mrb[0].mxu0
        %1668 = vmatprep.mubr.f32.mxu0 0.0
        %1669 = vmatmul.mubr.f32.gmra.mrb[0].mxu0 %v1465
        %v1670 = vpop.f32.mrb[0].mxu0
        %v1671 = vadd.f32 0.0, %v1670
        %v1672 = vpop.f32.mrb[0].mxu0
        %1673 = vmatprep.mubr.f32.mxu0 0.0
        %1674 = vmatmul.mubr.f32.gmra.mrb[0].mxu0 %v1468
        %v1675 = vpop.f32.mrb[0].mxu0
        %v1676 = vadd.f32 0.0, %v1675
        %v1677 = vpop.f32.mrb[0].mxu0
        %1678 = vmatprep.mubr.f32.mxu0 0.0
        %1679 = vmatmul.mubr.f32.gmra.mrb[0].mxu0 %v1471
        %v1680 = vpop.f32.mrb[0].mxu0
        %v1681 = vadd.f32 0.0, %v1680
        %v1682 = vpop.f32.mrb[0].mxu0
        %1683 = vmatprep.mubr.f32.mxu0 0.0
        %1684 = vmatmul.mubr.f32.gmra.mrb[0].mxu0 %v1474
        %v1685 = vpop.f32.mrb[0].mxu0
        %v1686 = vadd.f32 0.0, %v1685
        %v1687 = vpop.f32.mrb[0].mxu0
        %1688 = vmatprep.mubr.f32.mxu0 0.0
        %1689 = vmatmul.mubr.f32.gmra.mrb[0].mxu0 %v1477
        %v1690 = vpop.f32.mrb[0].mxu0
        %v1691 = vadd.f32 0.0, %v1690
        %v1692 = vpop.f32.mrb[0].mxu0
        %1693 = vmatprep.mubr.f32.mxu0 0.0
        %1694 = vmatmul.mubr.f32.gmra.mrb[0].mxu0 %v1480
        %v1695 = vpop.f32.mrb[0].mxu0
        %v1696 = vadd.f32 0.0, %v1695
        %v1697 = vpop.f32.mrb[0].mxu0
        %1698 = vmatprep.mubr.f32.mxu0 0.0
        %1699 = vmatmul.mubr.f32.gmra.mrb[0].mxu0 %v1483
        %v1700 = vpop.f32.mrb[0].mxu0
        %v1701 = vadd.f32 0.0, %v1700
        %v1702 = vpop.f32.mrb[0].mxu0
        %1703 = vmatprep.mubr.f32.mxu0 0.0
        %1704 = vmatmul.mubr.f32.gmra.mrb[0].mxu0 %v1486
        %v1705 = vpop.f32.mrb[0].mxu0
        %v1706 = vadd.f32 0.0, %v1705
        %v1707 = vpop.f32.mrb[0].mxu0
        %1708 = vmatprep.mubr.f32.mxu0 0.0
        %1709 = vmatmul.mubr.f32.gmra.mrb[0].mxu0 %v1489
        %v1710 = vpop.f32.mrb[0].mxu0
        %v1711 = vadd.f32 0.0, %v1710
        %v1712 = vpop.f32.mrb[0].mxu0
        %1713 = vmatprep.mubr.f32.mxu0 0.0
        %1714 = vmatmul.mubr.f32.gmra.mrb[0].mxu0 %v1492
        %v1715 = vpop.f32.mrb[0].mxu0
        %v1716 = vadd.f32 0.0, %v1715
        %v1717 = vpop.f32.mrb[0].mxu0
        %1718 = vdwg.mxu0
        %v1719 = vadd.f32 %v1315, %v1561
        %v1720 = vadd.f32 %v1316, %v1566
        %v1721 = vadd.f32 %v1317, %v1571
        %v1722 = vadd.f32 %v1318, %v1576
        %v1723 = vadd.f32 %v1319, %v1581
        %v1724 = vadd.f32 %v1320, %v1586
        %v1725 = vadd.f32 %v1321, %v1591
        %v1726 = vadd.f32 %v1322, %v1596
        %v1727 = vadd.f32 %v1323, %v1601
        %v1728 = vadd.f32 %v1324, %v1606
        %v1729 = vadd.f32 %v1325, %v1611
        %v1730 = vadd.f32 %v1326, %v1616
        %v1731 = vadd.f32 %v1327, %v1621
        %v1732 = vadd.f32 %v1328, %v1626
        %v1733 = vadd.f32 %v1329, %v1631
        %v1734 = vadd.f32 %v1330, %v1636
        %v1735 = vadd.f32 %v1331, %v1641
        %v1736 = vadd.f32 %v1332, %v1646
        %v1737 = vadd.f32 %v1333, %v1651
        %v1738 = vadd.f32 %v1334, %v1656
        %v1739 = vadd.f32 %v1335, %v1661
        %v1740 = vadd.f32 %v1336, %v1666
        %v1741 = vadd.f32 %v1337, %v1671
        %v1742 = vadd.f32 %v1338, %v1676
        %v1743 = vadd.f32 %v1339, %v1681
        %v1744 = vadd.f32 %v1340, %v1686
        %v1745 = vadd.f32 %v1341, %v1691
        %v1746 = vadd.f32 %v1342, %v1696
        %v1747 = vadd.f32 %v1343, %v1701
        %v1748 = vadd.f32 %v1344, %v1706
        %v1749 = vadd.f32 %v1345, %v1711
        %v1750 = vadd.f32 %v1346, %v1716
        %v1767 = vrot.slane %v1348, 1
        %v1768 = vrot.slane %v1349, 1
        %v1769 = vsel %vm281, %v1767, %v1768
        %v1770 = vrot.slane %v1350, 1
        %v1771 = vsel %vm281, %v1768, %v1770
        %v1772 = vrot.slane %v1351, 1
        %v1773 = vrot.slane %v1352, 1
        %v1774 = vsel %vm281, %v1772, %v1773
        %v1775 = vrot.slane %v1353, 1
        %v1776 = vsel %vm281, %v1773, %v1775
        %v1777 = vrot.slane %v1354, 1
        %v1778 = vrot.slane %v1355, 1
        %v1779 = vsel %vm281, %v1777, %v1778
        %v1780 = vrot.slane %v1356, 1
        %v1781 = vsel %vm281, %v1778, %v1780
        %v1782 = vrot.slane %v1357, 1
        %v1783 = vrot.slane %v1358, 1
        %v1784 = vsel %vm281, %v1782, %v1783
        %v1785 = vrot.slane %v1359, 1
        %v1786 = vsel %vm281, %v1783, %v1785
        %v1787 = vrot.slane %v1360, 1
        %v1788 = vrot.slane %v1361, 1
        %v1789 = vsel %vm281, %v1787, %v1788
        %v1790 = vrot.slane %v1362, 1
        %v1791 = vsel %vm281, %v1788, %v1790
        %v1792 = vrot.slane %v1363, 1
        %v1793 = vrot.slane %v1364, 1
        %v1794 = vsel %vm281, %v1792, %v1793
        %v1795 = vrot.slane %v1365, 1
        %v1796 = vsel %vm281, %v1793, %v1795
        %v1797 = vrot.slane %v1366, 1
        %v1798 = vrot.slane %v1367, 1
        %v1799 = vsel %vm281, %v1797, %v1798
        %v1800 = vrot.slane %v1368, 1
        %v1801 = vsel %vm281, %v1798, %v1800
        %v1802 = vrot.slane %v1369, 1
        %v1803 = vrot.slane %v1370, 1
        %v1804 = vsel %vm281, %v1802, %v1803
        %v1805 = vrot.slane %v1371, 1
        %v1806 = vsel %vm281, %v1803, %v1805
        %v1807 = vrot.slane %v1372, 1
        %v1808 = vrot.slane %v1373, 1
        %v1809 = vsel %vm281, %v1807, %v1808
        %v1810 = vrot.slane %v1374, 1
        %v1811 = vsel %vm281, %v1808, %v1810
        %v1812 = vrot.slane %v1375, 1
        %v1813 = vrot.slane %v1376, 1
        %v1814 = vsel %vm281, %v1812, %v1813
        %v1815 = vrot.slane %v1377, 1
        %v1816 = vsel %vm281, %v1813, %v1815
        %v1817 = vrot.slane %v1378, 1
        %v1818 = vrot.slane %v1379, 1
        %v1819 = vsel %vm281, %v1817, %v1818
        %v1820 = vrot.slane %v1380, 1
        %v1821 = vsel %vm281, %v1818, %v1820
        %v1822 = vrot.slane %v1381, 1
        %v1823 = vrot.slane %v1382, 1
        %v1824 = vsel %vm281, %v1822, %v1823
        %v1825 = vrot.slane %v1383, 1
        %v1826 = vsel %vm281, %v1823, %v1825
        %v1827 = vrot.slane %v1384, 1
        %v1828 = vrot.slane %v1385, 1
        %v1829 = vsel %vm281, %v1827, %v1828
        %v1830 = vrot.slane %v1386, 1
        %v1831 = vsel %vm281, %v1828, %v1830
        %v1832 = vrot.slane %v1387, 1
        %v1833 = vrot.slane %v1388, 1
        %v1834 = vsel %vm281, %v1832, %v1833
        %v1835 = vrot.slane %v1389, 1
        %v1836 = vsel %vm281, %v1833, %v1835
        %v1837 = vrot.slane %v1390, 1
        %v1838 = vrot.slane %v1391, 1
        %v1839 = vsel %vm281, %v1837, %v1838
        %v1840 = vrot.slane %v1392, 1
        %v1841 = vsel %vm281, %v1838, %v1840
        %v1842 = vrot.slane %v1393, 1
        %v1843 = vrot.slane %v1394, 1
        %v1844 = vsel %vm281, %v1842, %v1843
        %v1845 = vrot.slane %v1395, 1
        %v1846 = vsel %vm281, %v1843, %v1845
        %s1847 = scalar_lea.vmem %s1, 32
        %v1848 = vld [vmem:[%s1847] sm:$0xff]
        %v1849 = vsel %vm364, %v1769, 0
        %v1851 = vsel %vm364, %v1771, 0
        %v1853 = vsel %vm364, %v1774, 0
        %v1855 = vsel %vm364, %v1776, 0
        %v1857 = vsel %vm364, %v1779, 0
        %v1859 = vsel %vm364, %v1781, 0
        %v1861 = vsel %vm364, %v1784, 0
        %v1863 = vsel %vm364, %v1786, 0
        %v1865 = vsel %vm364, %v1789, 0
        %v1867 = vsel %vm364, %v1791, 0
        %v1869 = vsel %vm364, %v1794, 0
        %v1871 = vsel %vm364, %v1796, 0
        %v1873 = vsel %vm364, %v1799, 0
        %v1875 = vsel %vm364, %v1801, 0
        %v1877 = vsel %vm364, %v1804, 0
        %v1879 = vsel %vm364, %v1806, 0
        %v1881 = vsel %vm364, %v1809, 0
        %v1883 = vsel %vm364, %v1811, 0
        %v1885 = vsel %vm364, %v1814, 0
        %v1887 = vsel %vm364, %v1816, 0
        %v1889 = vsel %vm364, %v1819, 0
        %v1891 = vsel %vm364, %v1821, 0
        %v1893 = vsel %vm364, %v1824, 0
        %v1895 = vsel %vm364, %v1826, 0
        %v1897 = vsel %vm364, %v1829, 0
        %v1899 = vsel %vm364, %v1831, 0
        %v1901 = vsel %vm364, %v1834, 0
        %v1903 = vsel %vm364, %v1836, 0
        %v1905 = vsel %vm364, %v1839, 0
        %v1907 = vsel %vm364, %v1841, 0
        %v1909 = vsel %vm364, %v1844, 0
        %v1911 = vsel %vm364, %v1846, 0
        %1913 = vmatprep.subr.mxu0 0.0
        %1914 = vmatpush1.msra.mxu0 %v1848
        %1915 = vmatprep.subr.mxu0 0.0
        %1916 = vmatpush1.msra.mxu0 0.0
        %1917 = vmatprep.subr.mxu0 0.0
        %1918 = vmatpush1.msra.mxu0 0.0
        %1919 = vmatprep.subr.mxu0 0.0
        %1920 = vmatpush1.msra.mxu0 0.0
        %1921 = vmatprep.subr.mxu0 0.0
        %1922 = vmatpush1.msra.mxu0 0.0
        %1923 = vmatprep.subr.mxu0 0.0
        %1924 = vmatpush1.msra.mxu0 0.0
        %1925 = vmatprep.subr.mxu0 0.0
        %1926 = vmatpush1.msra.mxu0 0.0
        %1927 = vmatprep.subr.mxu0 0.0
        %1928 = vmatpush1.msra.mxu0 0.0
        %1929 = vmatprep.subr.mxu0 0.0
        %1930 = vmatpush1.msra.mxu0 0.0
        %1931 = vmatprep.subr.mxu0 0.0
        %1932 = vmatpush1.msra.mxu0 0.0
        %1933 = vmatprep.subr.mxu0 0.0
        %1934 = vmatpush1.msra.mxu0 0.0
        %1935 = vmatprep.subr.mxu0 0.0
        %1936 = vmatpush1.msra.mxu0 0.0
        %1937 = vmatprep.subr.mxu0 0.0
        %1938 = vmatpush1.msra.mxu0 0.0
        %1939 = vmatprep.subr.mxu0 0.0
        %1940 = vmatpush1.msra.mxu0 0.0
        %1941 = vmatprep.subr.mxu0 0.0
        %1942 = vmatpush1.msra.mxu0 0.0
        %1943 = vmatprep.subr.mxu0 0.0
        %1944 = vmatpush1.msra.mxu0 0.0
        %1945 = vmatprep.subr.mxu0 0.0
        %1946 = vmatpush1.msra.mxu0 0.0
        %1947 = vmatprep.subr.mxu0 0.0
        %1948 = vmatpush1.msra.mxu0 0.0
        %1949 = vmatprep.subr.mxu0 0.0
        %1950 = vmatpush1.msra.mxu0 0.0
        %1951 = vmatprep.subr.mxu0 0.0
        %1952 = vmatpush1.msra.mxu0 0.0
        %1953 = vmatprep.subr.mxu0 0.0
        %1954 = vmatpush1.msra.mxu0 0.0
        %1955 = vmatprep.subr.mxu0 0.0
        %1956 = vmatpush1.msra.mxu0 0.0
        %1957 = vmatprep.subr.mxu0 0.0
        %1958 = vmatpush1.msra.mxu0 0.0
        %1959 = vmatprep.subr.mxu0 0.0
        %1960 = vmatpush1.msra.mxu0 0.0
        %1961 = vmatprep.subr.mxu0 0.0
        %1962 = vmatpush1.msra.mxu0 0.0
        %1963 = vmatprep.subr.mxu0 0.0
        %1964 = vmatpush1.msra.mxu0 0.0
        %1965 = vmatprep.subr.mxu0 0.0
        %1966 = vmatpush1.msra.mxu0 0.0
        %1967 = vmatprep.subr.mxu0 0.0
        %1968 = vmatpush1.msra.mxu0 0.0
        %1969 = vmatprep.subr.mxu0 0.0
        %1970 = vmatpush1.msra.mxu0 0.0
        %1971 = vmatprep.subr.mxu0 0.0
        %1972 = vmatpush1.msra.mxu0 0.0
        %1973 = vmatprep.subr.mxu0 0.0
        %1974 = vmatpush1.msra.mxu0 0.0
        %1975 = vmatprep.subr.mxu0 0.0
        %1976 = vmatpush1.msra.mxu0 0.0
        %1977 = vmatprep.mubr.f32.mxu0 0.0
        %1978 = vmatmul.mubr.f32.gmra.mrb[0].mxu0 %v1849
        %v1979 = vpop.f32.mrb[0].mxu0
        %v1980 = vadd.f32 0.0, %v1979
        %v1981 = vpop.f32.mrb[0].mxu0
        %1982 = vmatprep.mubr.f32.mxu0 0.0
        %1983 = vmatmul.mubr.f32.gmra.mrb[0].mxu0 %v1851
        %v1984 = vpop.f32.mrb[0].mxu0
        %v1985 = vadd.f32 0.0, %v1984
        %v1986 = vpop.f32.mrb[0].mxu0
        %1987 = vmatprep.mubr.f32.mxu0 0.0
        %1988 = vmatmul.mubr.f32.gmra.mrb[0].mxu0 %v1853
        %v1989 = vpop.f32.mrb[0].mxu0
        %v1990 = vadd.f32 0.0, %v1989
        %v1991 = vpop.f32.mrb[0].mxu0
        %1992 = vmatprep.mubr.f32.mxu0 0.0
        %1993 = vmatmul.mubr.f32.gmra.mrb[0].mxu0 %v1855
        %v1994 = vpop.f32.mrb[0].mxu0
        %v1995 = vadd.f32 0.0, %v1994
        %v1996 = vpop.f32.mrb[0].mxu0
        %1997 = vmatprep.mubr.f32.mxu0 0.0
        %1998 = vmatmul.mubr.f32.gmra.mrb[0].mxu0 %v1857
        %v1999 = vpop.f32.mrb[0].mxu0
        %v2000 = vadd.f32 0.0, %v1999
        %v2001 = vpop.f32.mrb[0].mxu0
        %2002 = vmatprep.mubr.f32.mxu0 0.0
        %2003 = vmatmul.mubr.f32.gmra.mrb[0].mxu0 %v1859
        %v2004 = vpop.f32.mrb[0].mxu0
        %v2005 = vadd.f32 0.0, %v2004
        %v2006 = vpop.f32.mrb[0].mxu0
        %2007 = vmatprep.mubr.f32.mxu0 0.0
        %2008 = vmatmul.mubr.f32.gmra.mrb[0].mxu0 %v1861
        %v2009 = vpop.f32.mrb[0].mxu0
        %v2010 = vadd.f32 0.0, %v2009
        %v2011 = vpop.f32.mrb[0].mxu0
        %2012 = vmatprep.mubr.f32.mxu0 0.0
        %2013 = vmatmul.mubr.f32.gmra.mrb[0].mxu0 %v1863
        %v2014 = vpop.f32.mrb[0].mxu0
        %v2015 = vadd.f32 0.0, %v2014
        %v2016 = vpop.f32.mrb[0].mxu0
        %2017 = vmatprep.mubr.f32.mxu0 0.0
        %2018 = vmatmul.mubr.f32.gmra.mrb[0].mxu0 %v1865
        %v2019 = vpop.f32.mrb[0].mxu0
        %v2020 = vadd.f32 0.0, %v2019
        %v2021 = vpop.f32.mrb[0].mxu0
        %2022 = vmatprep.mubr.f32.mxu0 0.0
        %2023 = vmatmul.mubr.f32.gmra.mrb[0].mxu0 %v1867
        %v2024 = vpop.f32.mrb[0].mxu0
        %v2025 = vadd.f32 0.0, %v2024
        %v2026 = vpop.f32.mrb[0].mxu0
        %2027 = vmatprep.mubr.f32.mxu0 0.0
        %2028 = vmatmul.mubr.f32.gmra.mrb[0].mxu0 %v1869
        %v2029 = vpop.f32.mrb[0].mxu0
        %v2030 = vadd.f32 0.0, %v2029
        %v2031 = vpop.f32.mrb[0].mxu0
        %2032 = vmatprep.mubr.f32.mxu0 0.0
        %2033 = vmatmul.mubr.f32.gmra.mrb[0].mxu0 %v1871
        %v2034 = vpop.f32.mrb[0].mxu0
        %v2035 = vadd.f32 0.0, %v2034
        %v2036 = vpop.f32.mrb[0].mxu0
        %2037 = vmatprep.mubr.f32.mxu0 0.0
        %2038 = vmatmul.mubr.f32.gmra.mrb[0].mxu0 %v1873
        %v2039 = vpop.f32.mrb[0].mxu0
        %v2040 = vadd.f32 0.0, %v2039
        %v2041 = vpop.f32.mrb[0].mxu0
        %2042 = vmatprep.mubr.f32.mxu0 0.0
        %2043 = vmatmul.mubr.f32.gmra.mrb[0].mxu0 %v1875
        %v2044 = vpop.f32.mrb[0].mxu0
        %v2045 = vadd.f32 0.0, %v2044
        %v2046 = vpop.f32.mrb[0].mxu0
        %2047 = vmatprep.mubr.f32.mxu0 0.0
        %2048 = vmatmul.mubr.f32.gmra.mrb[0].mxu0 %v1877
        %v2049 = vpop.f32.mrb[0].mxu0
        %v2050 = vadd.f32 0.0, %v2049
        %v2051 = vpop.f32.mrb[0].mxu0
        %2052 = vmatprep.mubr.f32.mxu0 0.0
        %2053 = vmatmul.mubr.f32.gmra.mrb[0].mxu0 %v1879
        %v2054 = vpop.f32.mrb[0].mxu0
        %v2055 = vadd.f32 0.0, %v2054
        %v2056 = vpop.f32.mrb[0].mxu0
        %2057 = vmatprep.mubr.f32.mxu0 0.0
        %2058 = vmatmul.mubr.f32.gmra.mrb[0].mxu0 %v1881
        %v2059 = vpop.f32.mrb[0].mxu0
        %v2060 = vadd.f32 0.0, %v2059
        %v2061 = vpop.f32.mrb[0].mxu0
        %2062 = vmatprep.mubr.f32.mxu0 0.0
        %2063 = vmatmul.mubr.f32.gmra.mrb[0].mxu0 %v1883
        %v2064 = vpop.f32.mrb[0].mxu0
        %v2065 = vadd.f32 0.0, %v2064
        %v2066 = vpop.f32.mrb[0].mxu0
        %2067 = vmatprep.mubr.f32.mxu0 0.0
        %2068 = vmatmul.mubr.f32.gmra.mrb[0].mxu0 %v1885
        %v2069 = vpop.f32.mrb[0].mxu0
        %v2070 = vadd.f32 0.0, %v2069
        %v2071 = vpop.f32.mrb[0].mxu0
        %2072 = vmatprep.mubr.f32.mxu0 0.0
        %2073 = vmatmul.mubr.f32.gmra.mrb[0].mxu0 %v1887
        %v2074 = vpop.f32.mrb[0].mxu0
        %v2075 = vadd.f32 0.0, %v2074
        %v2076 = vpop.f32.mrb[0].mxu0
        %2077 = vmatprep.mubr.f32.mxu0 0.0
        %2078 = vmatmul.mubr.f32.gmra.mrb[0].mxu0 %v1889
        %v2079 = vpop.f32.mrb[0].mxu0
        %v2080 = vadd.f32 0.0, %v2079
        %v2081 = vpop.f32.mrb[0].mxu0
        %2082 = vmatprep.mubr.f32.mxu0 0.0
        %2083 = vmatmul.mubr.f32.gmra.mrb[0].mxu0 %v1891
        %v2084 = vpop.f32.mrb[0].mxu0
        %v2085 = vadd.f32 0.0, %v2084
        %v2086 = vpop.f32.mrb[0].mxu0
        %2087 = vmatprep.mubr.f32.mxu0 0.0
        %2088 = vmatmul.mubr.f32.gmra.mrb[0].mxu0 %v1893
        %v2089 = vpop.f32.mrb[0].mxu0
        %v2090 = vadd.f32 0.0, %v2089
        %v2091 = vpop.f32.mrb[0].mxu0
        %2092 = vmatprep.mubr.f32.mxu0 0.0
        %2093 = vmatmul.mubr.f32.gmra.mrb[0].mxu0 %v1895
        %v2094 = vpop.f32.mrb[0].mxu0
        %v2095 = vadd.f32 0.0, %v2094
        %v2096 = vpop.f32.mrb[0].mxu0
        %2097 = vmatprep.mubr.f32.mxu0 0.0
        %2098 = vmatmul.mubr.f32.gmra.mrb[0].mxu0 %v1897
        %v2099 = vpop.f32.mrb[0].mxu0
        %v2100 = vadd.f32 0.0, %v2099
        %v2101 = vpop.f32.mrb[0].mxu0
        %2102 = vmatprep.mubr.f32.mxu0 0.0
        %2103 = vmatmul.mubr.f32.gmra.mrb[0].mxu0 %v1899
        %v2104 = vpop.f32.mrb[0].mxu0
        %v2105 = vadd.f32 0.0, %v2104
        %v2106 = vpop.f32.mrb[0].mxu0
        %2107 = vmatprep.mubr.f32.mxu0 0.0
        %2108 = vmatmul.mubr.f32.gmra.mrb[0].mxu0 %v1901
        %v2109 = vpop.f32.mrb[0].mxu0
        %v2110 = vadd.f32 0.0, %v2109
        %v2111 = vpop.f32.mrb[0].mxu0
        %2112 = vmatprep.mubr.f32.mxu0 0.0
        %2113 = vmatmul.mubr.f32.gmra.mrb[0].mxu0 %v1903
        %v2114 = vpop.f32.mrb[0].mxu0
        %v2115 = vadd.f32 0.0, %v2114
        %v2116 = vpop.f32.mrb[0].mxu0
        %2117 = vmatprep.mubr.f32.mxu0 0.0
        %2118 = vmatmul.mubr.f32.gmra.mrb[0].mxu0 %v1905
        %v2119 = vpop.f32.mrb[0].mxu0
        %v2120 = vadd.f32 0.0, %v2119
        %v2121 = vpop.f32.mrb[0].mxu0
        %2122 = vmatprep.mubr.f32.mxu0 0.0
        %2123 = vmatmul.mubr.f32.gmra.mrb[0].mxu0 %v1907
        %v2124 = vpop.f32.mrb[0].mxu0
        %v2125 = vadd.f32 0.0, %v2124
        %v2126 = vpop.f32.mrb[0].mxu0
        %2127 = vmatprep.mubr.f32.mxu0 0.0
        %2128 = vmatmul.mubr.f32.gmra.mrb[0].mxu0 %v1909
        %v2129 = vpop.f32.mrb[0].mxu0
        %v2130 = vadd.f32 0.0, %v2129
        %v2131 = vpop.f32.mrb[0].mxu0
        %2132 = vmatprep.mubr.f32.mxu0 0.0
        %2133 = vmatmul.mubr.f32.gmra.mrb[0].mxu0 %v1911
        %v2134 = vpop.f32.mrb[0].mxu0
        %v2135 = vadd.f32 0.0, %v2134
        %v2136 = vpop.f32.mrb[0].mxu0
        %2137 = vdwg.mxu0
        %v2138 = vadd.f32 %v1719, %v1980
        %v2139 = vadd.f32 %v1720, %v1985
        %v2140 = vadd.f32 %v1721, %v1990
        %v2141 = vadd.f32 %v1722, %v1995
        %v2142 = vadd.f32 %v1723, %v2000
        %v2143 = vadd.f32 %v1724, %v2005
        %v2144 = vadd.f32 %v1725, %v2010
        %v2145 = vadd.f32 %v1726, %v2015
        %v2146 = vadd.f32 %v1727, %v2020
        %v2147 = vadd.f32 %v1728, %v2025
        %v2148 = vadd.f32 %v1729, %v2030
        %v2149 = vadd.f32 %v1730, %v2035
        %v2150 = vadd.f32 %v1731, %v2040
        %v2151 = vadd.f32 %v1732, %v2045
        %v2152 = vadd.f32 %v1733, %v2050
        %v2153 = vadd.f32 %v1734, %v2055
        %v2154 = vadd.f32 %v1735, %v2060
        %v2155 = vadd.f32 %v1736, %v2065
        %v2156 = vadd.f32 %v1737, %v2070
        %v2157 = vadd.f32 %v1738, %v2075
        %v2158 = vadd.f32 %v1739, %v2080
        %v2159 = vadd.f32 %v1740, %v2085
        %v2160 = vadd.f32 %v1741, %v2090
        %v2161 = vadd.f32 %v1742, %v2095
        %v2162 = vadd.f32 %v1743, %v2100
        %v2163 = vadd.f32 %v1744, %v2105
        %v2164 = vadd.f32 %v1745, %v2110
        %v2165 = vadd.f32 %v1746, %v2115
        %v2166 = vadd.f32 %v1747, %v2120
        %v2167 = vadd.f32 %v1748, %v2125
        %v2168 = vadd.f32 %v1749, %v2130
        %v2169 = vadd.f32 %v1750, %v2135
        %v2170 = vrot.slane %v1348, 2
        %v2171 = vrot.slane %v1349, 2
        %v2172 = vsel %vm943, %v2170, %v2171
        %v2173 = vrot.slane %v1350, 2
        %v2174 = vsel %vm943, %v2171, %v2173
        %v2175 = vrot.slane %v1351, 2
        %v2176 = vrot.slane %v1352, 2
        %v2177 = vsel %vm943, %v2175, %v2176
        %v2178 = vrot.slane %v1353, 2
        %v2179 = vsel %vm943, %v2176, %v2178
        %v2180 = vrot.slane %v1354, 2
        %v2181 = vrot.slane %v1355, 2
        %v2182 = vsel %vm943, %v2180, %v2181
        %v2183 = vrot.slane %v1356, 2
        %v2184 = vsel %vm943, %v2181, %v2183
        %v2185 = vrot.slane %v1357, 2
        %v2186 = vrot.slane %v1358, 2
        %v2187 = vsel %vm943, %v2185, %v2186
        %v2188 = vrot.slane %v1359, 2
        %v2189 = vsel %vm943, %v2186, %v2188
        %v2190 = vrot.slane %v1360, 2
        %v2191 = vrot.slane %v1361, 2
        %v2192 = vsel %vm943, %v2190, %v2191
        %v2193 = vrot.slane %v1362, 2
        %v2194 = vsel %vm943, %v2191, %v2193
        %v2195 = vrot.slane %v1363, 2
        %v2196 = vrot.slane %v1364, 2
        %v2197 = vsel %vm943, %v2195, %v2196
        %v2198 = vrot.slane %v1365, 2
        %v2199 = vsel %vm943, %v2196, %v2198
        %v2200 = vrot.slane %v1366, 2
        %v2201 = vrot.slane %v1367, 2
        %v2202 = vsel %vm943, %v2200, %v2201
        %v2203 = vrot.slane %v1368, 2
        %v2204 = vsel %vm943, %v2201, %v2203
        %v2205 = vrot.slane %v1369, 2
        %v2206 = vrot.slane %v1370, 2
        %v2207 = vsel %vm943, %v2205, %v2206
        %v2208 = vrot.slane %v1371, 2
        %v2209 = vsel %vm943, %v2206, %v2208
        %v2210 = vrot.slane %v1372, 2
        %v2211 = vrot.slane %v1373, 2
        %v2212 = vsel %vm943, %v2210, %v2211
        %v2213 = vrot.slane %v1374, 2
        %v2214 = vsel %vm943, %v2211, %v2213
        %v2215 = vrot.slane %v1375, 2
        %v2216 = vrot.slane %v1376, 2
        %v2217 = vsel %vm943, %v2215, %v2216
        %v2218 = vrot.slane %v1377, 2
        %v2219 = vsel %vm943, %v2216, %v2218
        %v2220 = vrot.slane %v1378, 2
        %v2221 = vrot.slane %v1379, 2
        %v2222 = vsel %vm943, %v2220, %v2221
        %v2223 = vrot.slane %v1380, 2
        %v2224 = vsel %vm943, %v2221, %v2223
        %v2225 = vrot.slane %v1381, 2
        %v2226 = vrot.slane %v1382, 2
        %v2227 = vsel %vm943, %v2225, %v2226
        %v2228 = vrot.slane %v1383, 2
        %v2229 = vsel %vm943, %v2226, %v2228
        %v2230 = vrot.slane %v1384, 2
        %v2231 = vrot.slane %v1385, 2
        %v2232 = vsel %vm943, %v2230, %v2231
        %v2233 = vrot.slane %v1386, 2
        %v2234 = vsel %vm943, %v2231, %v2233
        %v2235 = vrot.slane %v1387, 2
        %v2236 = vrot.slane %v1388, 2
        %v2237 = vsel %vm943, %v2235, %v2236
        %v2238 = vrot.slane %v1389, 2
        %v2239 = vsel %vm943, %v2236, %v2238
        %v2240 = vrot.slane %v1390, 2
        %v2241 = vrot.slane %v1391, 2
        %v2242 = vsel %vm943, %v2240, %v2241
        %v2243 = vrot.slane %v1392, 2
        %v2244 = vsel %vm943, %v2241, %v2243
        %v2245 = vrot.slane %v1393, 2
        %v2246 = vrot.slane %v1394, 2
        %v2247 = vsel %vm943, %v2245, %v2246
        %v2248 = vrot.slane %v1395, 2
        %v2249 = vsel %vm943, %v2246, %v2248
        %s2250 = scalar_lea.vmem %s1, 40
        %v2251 = vld [vmem:[%s2250] sm:$0xff]
        %v2252 = vsel %vm364, %v2172, 0
        %v2254 = vsel %vm364, %v2174, 0
        %v2256 = vsel %vm364, %v2177, 0
        %v2258 = vsel %vm364, %v2179, 0
        %v2260 = vsel %vm364, %v2182, 0
        %v2262 = vsel %vm364, %v2184, 0
        %v2264 = vsel %vm364, %v2187, 0
        %v2266 = vsel %vm364, %v2189, 0
        %v2268 = vsel %vm364, %v2192, 0
        %v2270 = vsel %vm364, %v2194, 0
        %v2272 = vsel %vm364, %v2197, 0
        %v2274 = vsel %vm364, %v2199, 0
        %v2276 = vsel %vm364, %v2202, 0
        %v2278 = vsel %vm364, %v2204, 0
        %v2280 = vsel %vm364, %v2207, 0
        %v2282 = vsel %vm364, %v2209, 0
        %v2284 = vsel %vm364, %v2212, 0
        %v2286 = vsel %vm364, %v2214, 0
        %v2288 = vsel %vm364, %v2217, 0
        %v2290 = vsel %vm364, %v2219, 0
        %v2292 = vsel %vm364, %v2222, 0
        %v2294 = vsel %vm364, %v2224, 0
        %v2296 = vsel %vm364, %v2227, 0
        %v2298 = vsel %vm364, %v2229, 0
        %v2300 = vsel %vm364, %v2232, 0
        %v2302 = vsel %vm364, %v2234, 0
        %v2304 = vsel %vm364, %v2237, 0
        %v2306 = vsel %vm364, %v2239, 0
        %v2308 = vsel %vm364, %v2242, 0
        %v2310 = vsel %vm364, %v2244, 0
        %v2312 = vsel %vm364, %v2247, 0
        %v2314 = vsel %vm364, %v2249, 0
        %2316 = vmatprep.subr.mxu0 0.0
        %2317 = vmatpush1.msra.mxu0 %v2251
        %2318 = vmatprep.subr.mxu0 0.0
        %2319 = vmatpush1.msra.mxu0 0.0
        %2320 = vmatprep.subr.mxu0 0.0
        %2321 = vmatpush1.msra.mxu0 0.0
        %2322 = vmatprep.subr.mxu0 0.0
        %2323 = vmatpush1.msra.mxu0 0.0
        %2324 = vmatprep.subr.mxu0 0.0
        %2325 = vmatpush1.msra.mxu0 0.0
        %2326 = vmatprep.subr.mxu0 0.0
        %2327 = vmatpush1.msra.mxu0 0.0
        %2328 = vmatprep.subr.mxu0 0.0
        %2329 = vmatpush1.msra.mxu0 0.0
        %2330 = vmatprep.subr.mxu0 0.0
        %2331 = vmatpush1.msra.mxu0 0.0
        %2332 = vmatprep.subr.mxu0 0.0
        %2333 = vmatpush1.msra.mxu0 0.0
        %2334 = vmatprep.subr.mxu0 0.0
        %2335 = vmatpush1.msra.mxu0 0.0
        %2336 = vmatprep.subr.mxu0 0.0
        %2337 = vmatpush1.msra.mxu0 0.0
        %2338 = vmatprep.subr.mxu0 0.0
        %2339 = vmatpush1.msra.mxu0 0.0
        %2340 = vmatprep.subr.mxu0 0.0
        %2341 = vmatpush1.msra.mxu0 0.0
        %2342 = vmatprep.subr.mxu0 0.0
        %2343 = vmatpush1.msra.mxu0 0.0
        %2344 = vmatprep.subr.mxu0 0.0
        %2345 = vmatpush1.msra.mxu0 0.0
        %2346 = vmatprep.subr.mxu0 0.0
        %2347 = vmatpush1.msra.mxu0 0.0
        %2348 = vmatprep.subr.mxu0 0.0
        %2349 = vmatpush1.msra.mxu0 0.0
        %2350 = vmatprep.subr.mxu0 0.0
        %2351 = vmatpush1.msra.mxu0 0.0
        %2352 = vmatprep.subr.mxu0 0.0
        %2353 = vmatpush1.msra.mxu0 0.0
        %2354 = vmatprep.subr.mxu0 0.0
        %2355 = vmatpush1.msra.mxu0 0.0
        %2356 = vmatprep.subr.mxu0 0.0
        %2357 = vmatpush1.msra.mxu0 0.0
        %2358 = vmatprep.subr.mxu0 0.0
        %2359 = vmatpush1.msra.mxu0 0.0
        %2360 = vmatprep.subr.mxu0 0.0
        %2361 = vmatpush1.msra.mxu0 0.0
        %2362 = vmatprep.subr.mxu0 0.0
        %2363 = vmatpush1.msra.mxu0 0.0
        %2364 = vmatprep.subr.mxu0 0.0
        %2365 = vmatpush1.msra.mxu0 0.0
        %2366 = vmatprep.subr.mxu0 0.0
        %2367 = vmatpush1.msra.mxu0 0.0
        %2368 = vmatprep.subr.mxu0 0.0
        %2369 = vmatpush1.msra.mxu0 0.0
        %2370 = vmatprep.subr.mxu0 0.0
        %2371 = vmatpush1.msra.mxu0 0.0
        %2372 = vmatprep.subr.mxu0 0.0
        %2373 = vmatpush1.msra.mxu0 0.0
        %2374 = vmatprep.subr.mxu0 0.0
        %2375 = vmatpush1.msra.mxu0 0.0
        %2376 = vmatprep.subr.mxu0 0.0
        %2377 = vmatpush1.msra.mxu0 0.0
        %2378 = vmatprep.subr.mxu0 0.0
        %2379 = vmatpush1.msra.mxu0 0.0
        %2380 = vmatprep.mubr.f32.mxu0 0.0
        %2381 = vmatmul.mubr.f32.gmra.mrb[0].mxu0 %v2252
        %v2382 = vpop.f32.mrb[0].mxu0
        %v2383 = vadd.f32 0.0, %v2382
        %v2384 = vpop.f32.mrb[0].mxu0
        %2385 = vmatprep.mubr.f32.mxu0 0.0
        %2386 = vmatmul.mubr.f32.gmra.mrb[0].mxu0 %v2254
        %v2387 = vpop.f32.mrb[0].mxu0
        %v2388 = vadd.f32 0.0, %v2387
        %v2389 = vpop.f32.mrb[0].mxu0
        %2390 = vmatprep.mubr.f32.mxu0 0.0
        %2391 = vmatmul.mubr.f32.gmra.mrb[0].mxu0 %v2256
        %v2392 = vpop.f32.mrb[0].mxu0
        %v2393 = vadd.f32 0.0, %v2392
        %v2394 = vpop.f32.mrb[0].mxu0
        %2395 = vmatprep.mubr.f32.mxu0 0.0
        %2396 = vmatmul.mubr.f32.gmra.mrb[0].mxu0 %v2258
        %v2397 = vpop.f32.mrb[0].mxu0
        %v2398 = vadd.f32 0.0, %v2397
        %v2399 = vpop.f32.mrb[0].mxu0
        %2400 = vmatprep.mubr.f32.mxu0 0.0
        %2401 = vmatmul.mubr.f32.gmra.mrb[0].mxu0 %v2260
        %v2402 = vpop.f32.mrb[0].mxu0
        %v2403 = vadd.f32 0.0, %v2402
        %v2404 = vpop.f32.mrb[0].mxu0
        %2405 = vmatprep.mubr.f32.mxu0 0.0
        %2406 = vmatmul.mubr.f32.gmra.mrb[0].mxu0 %v2262
        %v2407 = vpop.f32.mrb[0].mxu0
        %v2408 = vadd.f32 0.0, %v2407
        %v2409 = vpop.f32.mrb[0].mxu0
        %2410 = vmatprep.mubr.f32.mxu0 0.0
        %2411 = vmatmul.mubr.f32.gmra.mrb[0].mxu0 %v2264
        %v2412 = vpop.f32.mrb[0].mxu0
        %v2413 = vadd.f32 0.0, %v2412
        %v2414 = vpop.f32.mrb[0].mxu0
        %2415 = vmatprep.mubr.f32.mxu0 0.0
        %2416 = vmatmul.mubr.f32.gmra.mrb[0].mxu0 %v2266
        %v2417 = vpop.f32.mrb[0].mxu0
        %v2418 = vadd.f32 0.0, %v2417
        %v2419 = vpop.f32.mrb[0].mxu0
        %2420 = vmatprep.mubr.f32.mxu0 0.0
        %2421 = vmatmul.mubr.f32.gmra.mrb[0].mxu0 %v2268
        %v2422 = vpop.f32.mrb[0].mxu0
        %v2423 = vadd.f32 0.0, %v2422
        %v2424 = vpop.f32.mrb[0].mxu0
        %2425 = vmatprep.mubr.f32.mxu0 0.0
        %2426 = vmatmul.mubr.f32.gmra.mrb[0].mxu0 %v2270
        %v2427 = vpop.f32.mrb[0].mxu0
        %v2428 = vadd.f32 0.0, %v2427
        %v2429 = vpop.f32.mrb[0].mxu0
        %2430 = vmatprep.mubr.f32.mxu0 0.0
        %2431 = vmatmul.mubr.f32.gmra.mrb[0].mxu0 %v2272
        %v2432 = vpop.f32.mrb[0].mxu0
        %v2433 = vadd.f32 0.0, %v2432
        %v2434 = vpop.f32.mrb[0].mxu0
        %2435 = vmatprep.mubr.f32.mxu0 0.0
        %2436 = vmatmul.mubr.f32.gmra.mrb[0].mxu0 %v2274
        %v2437 = vpop.f32.mrb[0].mxu0
        %v2438 = vadd.f32 0.0, %v2437
        %v2439 = vpop.f32.mrb[0].mxu0
        %2440 = vmatprep.mubr.f32.mxu0 0.0
        %2441 = vmatmul.mubr.f32.gmra.mrb[0].mxu0 %v2276
        %v2442 = vpop.f32.mrb[0].mxu0
        %v2443 = vadd.f32 0.0, %v2442
        %v2444 = vpop.f32.mrb[0].mxu0
        %2445 = vmatprep.mubr.f32.mxu0 0.0
        %2446 = vmatmul.mubr.f32.gmra.mrb[0].mxu0 %v2278
        %v2447 = vpop.f32.mrb[0].mxu0
        %v2448 = vadd.f32 0.0, %v2447
        %v2449 = vpop.f32.mrb[0].mxu0
        %2450 = vmatprep.mubr.f32.mxu0 0.0
        %2451 = vmatmul.mubr.f32.gmra.mrb[0].mxu0 %v2280
        %v2452 = vpop.f32.mrb[0].mxu0
        %v2453 = vadd.f32 0.0, %v2452
        %v2454 = vpop.f32.mrb[0].mxu0
        %2455 = vmatprep.mubr.f32.mxu0 0.0
        %2456 = vmatmul.mubr.f32.gmra.mrb[0].mxu0 %v2282
        %v2457 = vpop.f32.mrb[0].mxu0
        %v2458 = vadd.f32 0.0, %v2457
        %v2459 = vpop.f32.mrb[0].mxu0
        %2460 = vmatprep.mubr.f32.mxu0 0.0
        %2461 = vmatmul.mubr.f32.gmra.mrb[0].mxu0 %v2284
        %v2462 = vpop.f32.mrb[0].mxu0
        %v2463 = vadd.f32 0.0, %v2462
        %v2464 = vpop.f32.mrb[0].mxu0
        %2465 = vmatprep.mubr.f32.mxu0 0.0
        %2466 = vmatmul.mubr.f32.gmra.mrb[0].mxu0 %v2286
        %v2467 = vpop.f32.mrb[0].mxu0
        %v2468 = vadd.f32 0.0, %v2467
        %v2469 = vpop.f32.mrb[0].mxu0
        %2470 = vmatprep.mubr.f32.mxu0 0.0
        %2471 = vmatmul.mubr.f32.gmra.mrb[0].mxu0 %v2288
        %v2472 = vpop.f32.mrb[0].mxu0
        %v2473 = vadd.f32 0.0, %v2472
        %v2474 = vpop.f32.mrb[0].mxu0
        %2475 = vmatprep.mubr.f32.mxu0 0.0
        %2476 = vmatmul.mubr.f32.gmra.mrb[0].mxu0 %v2290
        %v2477 = vpop.f32.mrb[0].mxu0
        %v2478 = vadd.f32 0.0, %v2477
        %v2479 = vpop.f32.mrb[0].mxu0
        %2480 = vmatprep.mubr.f32.mxu0 0.0
        %2481 = vmatmul.mubr.f32.gmra.mrb[0].mxu0 %v2292
        %v2482 = vpop.f32.mrb[0].mxu0
        %v2483 = vadd.f32 0.0, %v2482
        %v2484 = vpop.f32.mrb[0].mxu0
        %2485 = vmatprep.mubr.f32.mxu0 0.0
        %2486 = vmatmul.mubr.f32.gmra.mrb[0].mxu0 %v2294
        %v2487 = vpop.f32.mrb[0].mxu0
        %v2488 = vadd.f32 0.0, %v2487
        %v2489 = vpop.f32.mrb[0].mxu0
        %2490 = vmatprep.mubr.f32.mxu0 0.0
        %2491 = vmatmul.mubr.f32.gmra.mrb[0].mxu0 %v2296
        %v2492 = vpop.f32.mrb[0].mxu0
        %v2493 = vadd.f32 0.0, %v2492
        %v2494 = vpop.f32.mrb[0].mxu0
        %2495 = vmatprep.mubr.f32.mxu0 0.0
        %2496 = vmatmul.mubr.f32.gmra.mrb[0].mxu0 %v2298
        %v2497 = vpop.f32.mrb[0].mxu0
        %v2498 = vadd.f32 0.0, %v2497
        %v2499 = vpop.f32.mrb[0].mxu0
        %2500 = vmatprep.mubr.f32.mxu0 0.0
        %2501 = vmatmul.mubr.f32.gmra.mrb[0].mxu0 %v2300
        %v2502 = vpop.f32.mrb[0].mxu0
        %v2503 = vadd.f32 0.0, %v2502
        %v2504 = vpop.f32.mrb[0].mxu0
        %2505 = vmatprep.mubr.f32.mxu0 0.0
        %2506 = vmatmul.mubr.f32.gmra.mrb[0].mxu0 %v2302
        %v2507 = vpop.f32.mrb[0].mxu0
        %v2508 = vadd.f32 0.0, %v2507
        %v2509 = vpop.f32.mrb[0].mxu0
        %2510 = vmatprep.mubr.f32.mxu0 0.0
        %2511 = vmatmul.mubr.f32.gmra.mrb[0].mxu0 %v2304
        %v2512 = vpop.f32.mrb[0].mxu0
        %v2513 = vadd.f32 0.0, %v2512
        %v2514 = vpop.f32.mrb[0].mxu0
        %2515 = vmatprep.mubr.f32.mxu0 0.0
        %2516 = vmatmul.mubr.f32.gmra.mrb[0].mxu0 %v2306
        %v2517 = vpop.f32.mrb[0].mxu0
        %v2518 = vadd.f32 0.0, %v2517
        %v2519 = vpop.f32.mrb[0].mxu0
        %2520 = vmatprep.mubr.f32.mxu0 0.0
        %2521 = vmatmul.mubr.f32.gmra.mrb[0].mxu0 %v2308
        %v2522 = vpop.f32.mrb[0].mxu0
        %v2523 = vadd.f32 0.0, %v2522
        %v2524 = vpop.f32.mrb[0].mxu0
        %2525 = vmatprep.mubr.f32.mxu0 0.0
        %2526 = vmatmul.mubr.f32.gmra.mrb[0].mxu0 %v2310
        %v2527 = vpop.f32.mrb[0].mxu0
        %v2528 = vadd.f32 0.0, %v2527
        %v2529 = vpop.f32.mrb[0].mxu0
        %2530 = vmatprep.mubr.f32.mxu0 0.0
        %2531 = vmatmul.mubr.f32.gmra.mrb[0].mxu0 %v2312
        %v2532 = vpop.f32.mrb[0].mxu0
        %v2533 = vadd.f32 0.0, %v2532
        %v2534 = vpop.f32.mrb[0].mxu0
        %2535 = vmatprep.mubr.f32.mxu0 0.0
        %2536 = vmatmul.mubr.f32.gmra.mrb[0].mxu0 %v2314
        %v2537 = vpop.f32.mrb[0].mxu0
        %v2538 = vadd.f32 0.0, %v2537
        %v2539 = vpop.f32.mrb[0].mxu0
        %2540 = vdwg.mxu0
        %v2541 = vadd.f32 %v2138, %v2383
        %v2542 = vadd.f32 %v2139, %v2388
        %v2543 = vadd.f32 %v2140, %v2393
        %v2544 = vadd.f32 %v2141, %v2398
        %v2545 = vadd.f32 %v2142, %v2403
        %v2546 = vadd.f32 %v2143, %v2408
        %v2547 = vadd.f32 %v2144, %v2413
        %v2548 = vadd.f32 %v2145, %v2418
        %v2549 = vadd.f32 %v2146, %v2423
        %v2550 = vadd.f32 %v2147, %v2428
        %v2551 = vadd.f32 %v2148, %v2433
        %v2552 = vadd.f32 %v2149, %v2438
        %v2553 = vadd.f32 %v2150, %v2443
        %v2554 = vadd.f32 %v2151, %v2448
        %v2555 = vadd.f32 %v2152, %v2453
        %v2556 = vadd.f32 %v2153, %v2458
        %v2557 = vadd.f32 %v2154, %v2463
        %v2558 = vadd.f32 %v2155, %v2468
        %v2559 = vadd.f32 %v2156, %v2473
        %v2560 = vadd.f32 %v2157, %v2478
        %v2561 = vadd.f32 %v2158, %v2483
        %v2562 = vadd.f32 %v2159, %v2488
        %v2563 = vadd.f32 %v2160, %v2493
        %v2564 = vadd.f32 %v2161, %v2498
        %v2565 = vadd.f32 %v2162, %v2503
        %v2566 = vadd.f32 %v2163, %v2508
        %v2567 = vadd.f32 %v2164, %v2513
        %v2568 = vadd.f32 %v2165, %v2518
        %v2569 = vadd.f32 %v2166, %v2523
        %v2570 = vadd.f32 %v2167, %v2528
        %v2571 = vadd.f32 %v2168, %v2533
        %v2572 = vadd.f32 %v2169, %v2538
        %s2573 = scalar_lea.vmem %s182, 48
        %v2574 = vld [vmem:[%s2573] sm:$0xff]
        %v2575 = vld [vmem:[%s2573 + $0x8] sm:$0xff]
        %v2576 = vld [vmem:[%s2573 + $0x10] sm:$0x3]
        %v2577 = vld [vmem:[%s2573 + $0x18] sm:$0xff]
        %v2578 = vld [vmem:[%s2573 + $0x20] sm:$0xff]
        %v2579 = vld [vmem:[%s2573 + $0x28] sm:$0x3]
        %v2580 = vld [vmem:[%s2573 + $0x30] sm:$0xff]
        %v2581 = vld [vmem:[%s2573 + $0x38] sm:$0xff]
        %v2582 = vld [vmem:[%s2573 + $0x40] sm:$0x3]
        %v2583 = vld [vmem:[%s2573 + $0x48] sm:$0xff]
        %v2584 = vld [vmem:[%s2573 + $0x50] sm:$0xff]
        %v2585 = vld [vmem:[%s2573 + $0x58] sm:$0x3]
        %v2586 = vld [vmem:[%s2573 + $0x60] sm:$0xff]
        %v2587 = vld [vmem:[%s2573 + $0x68] sm:$0xff]
        %v2588 = vld [vmem:[%s2573 + $0x70] sm:$0x3]
        %v2589 = vld [vmem:[%s2573 + $0x78] sm:$0xff]
        %v2590 = vld [vmem:[%s2573 + $0x80] sm:$0xff]
        %v2591 = vld [vmem:[%s2573 + $0x88] sm:$0x3]
        %v2592 = vld [vmem:[%s2573 + $0x90] sm:$0xff]
        %v2593 = vld [vmem:[%s2573 + $0x98] sm:$0xff]
        %v2594 = vld [vmem:[%s2573 + $0xa0] sm:$0x3]
        %v2595 = vld [vmem:[%s2573 + $0xa8] sm:$0xff]
        %v2596 = vld [vmem:[%s2573 + $0xb0] sm:$0xff]
        %v2597 = vld [vmem:[%s2573 + $0xb8] sm:$0x3]
        %v2598 = vld [vmem:[%s2573 + $0xc0] sm:$0xff]
        %v2599 = vld [vmem:[%s2573 + $0xc8] sm:$0xff]
        %v2600 = vld [vmem:[%s2573 + $0xd0] sm:$0x3]
        %v2601 = vld [vmem:[%s2573 + $0xd8] sm:$0xff]
        %v2602 = vld [vmem:[%s2573 + $0xe0] sm:$0xff]
        %v2603 = vld [vmem:[%s2573 + $0xe8] sm:$0x3]
        %v2604 = vld [vmem:[%s2573 + $0xf0] sm:$0xff]
        %v2605 = vld [vmem:[%s2573 + $0xf8] sm:$0xff]
        %v2606 = vld [vmem:[%s2573 + $0x100] sm:$0x3]
        %v2607 = vld [vmem:[%s2573 + $0x108] sm:$0xff]
        %v2608 = vld [vmem:[%s2573 + $0x110] sm:$0xff]
        %v2609 = vld [vmem:[%s2573 + $0x118] sm:$0x3]
        %v2610 = vld [vmem:[%s2573 + $0x120] sm:$0xff]
        %v2611 = vld [vmem:[%s2573 + $0x128] sm:$0xff]
        %v2612 = vld [vmem:[%s2573 + $0x130] sm:$0x3]
        %v2613 = vld [vmem:[%s2573 + $0x138] sm:$0xff]
        %v2614 = vld [vmem:[%s2573 + $0x140] sm:$0xff]
        %v2615 = vld [vmem:[%s2573 + $0x148] sm:$0x3]
        %v2616 = vld [vmem:[%s2573 + $0x150] sm:$0xff]
        %v2617 = vld [vmem:[%s2573 + $0x158] sm:$0xff]
        %v2618 = vld [vmem:[%s2573 + $0x160] sm:$0x3]
        %v2619 = vld [vmem:[%s2573 + $0x168] sm:$0xff]
        %v2620 = vld [vmem:[%s2573 + $0x170] sm:$0xff]
        %v2621 = vld [vmem:[%s2573 + $0x178] sm:$0x3]
        %s2622 = scalar_lea.vmem %s1, 48
        %v2623 = vld [vmem:[%s2622] sm:$0xff]
        %v2625 = vsel %vm364, %v2574, 0
        %v2628 = vsel %vm364, %v2575, 0
        %v2631 = vsel %vm364, %v2577, 0
        %v2634 = vsel %vm364, %v2578, 0
        %v2637 = vsel %vm364, %v2580, 0
        %v2640 = vsel %vm364, %v2581, 0
        %v2643 = vsel %vm364, %v2583, 0
        %v2646 = vsel %vm364, %v2584, 0
        %v2649 = vsel %vm364, %v2586, 0
        %v2652 = vsel %vm364, %v2587, 0
        %v2655 = vsel %vm364, %v2589, 0
        %v2658 = vsel %vm364, %v2590, 0
        %v2661 = vsel %vm364, %v2592, 0
        %v2664 = vsel %vm364, %v2593, 0
        %v2667 = vsel %vm364, %v2595, 0
        %v2670 = vsel %vm364, %v2596, 0
        %v2673 = vsel %vm364, %v2598, 0
        %v2676 = vsel %vm364, %v2599, 0
        %v2679 = vsel %vm364, %v2601, 0
        %v2682 = vsel %vm364, %v2602, 0
        %v2685 = vsel %vm364, %v2604, 0
        %v2688 = vsel %vm364, %v2605, 0
        %v2691 = vsel %vm364, %v2607, 0
        %v2694 = vsel %vm364, %v2608, 0
        %v2697 = vsel %vm364, %v2610, 0
        %v2700 = vsel %vm364, %v2611, 0
        %v2703 = vsel %vm364, %v2613, 0
        %v2706 = vsel %vm364, %v2614, 0
        %v2709 = vsel %vm364, %v2616, 0
        %v2712 = vsel %vm364, %v2617, 0
        %v2715 = vsel %vm364, %v2619, 0
        %v2718 = vsel %vm364, %v2620, 0
        %2720 = vmatprep.subr.mxu0 0.0
        %2721 = vmatpush1.msra.mxu0 %v2623
        %2722 = vmatprep.subr.mxu0 0.0
        %2723 = vmatpush1.msra.mxu0 0.0
        %2724 = vmatprep.subr.mxu0 0.0
        %2725 = vmatpush1.msra.mxu0 0.0
        %2726 = vmatprep.subr.mxu0 0.0
        %2727 = vmatpush1.msra.mxu0 0.0
        %2728 = vmatprep.subr.mxu0 0.0
        %2729 = vmatpush1.msra.mxu0 0.0
        %2730 = vmatprep.subr.mxu0 0.0
        %2731 = vmatpush1.msra.mxu0 0.0
        %2732 = vmatprep.subr.mxu0 0.0
        %2733 = vmatpush1.msra.mxu0 0.0
        %2734 = vmatprep.subr.mxu0 0.0
        %2735 = vmatpush1.msra.mxu0 0.0
        %2736 = vmatprep.subr.mxu0 0.0
        %2737 = vmatpush1.msra.mxu0 0.0
        %2738 = vmatprep.subr.mxu0 0.0
        %2739 = vmatpush1.msra.mxu0 0.0
        %2740 = vmatprep.subr.mxu0 0.0
        %2741 = vmatpush1.msra.mxu0 0.0
        %2742 = vmatprep.subr.mxu0 0.0
        %2743 = vmatpush1.msra.mxu0 0.0
        %2744 = vmatprep.subr.mxu0 0.0
        %2745 = vmatpush1.msra.mxu0 0.0
        %2746 = vmatprep.subr.mxu0 0.0
        %2747 = vmatpush1.msra.mxu0 0.0
        %2748 = vmatprep.subr.mxu0 0.0
        %2749 = vmatpush1.msra.mxu0 0.0
        %2750 = vmatprep.subr.mxu0 0.0
        %2751 = vmatpush1.msra.mxu0 0.0
        %2752 = vmatprep.subr.mxu0 0.0
        %2753 = vmatpush1.msra.mxu0 0.0
        %2754 = vmatprep.subr.mxu0 0.0
        %2755 = vmatpush1.msra.mxu0 0.0
        %2756 = vmatprep.subr.mxu0 0.0
        %2757 = vmatpush1.msra.mxu0 0.0
        %2758 = vmatprep.subr.mxu0 0.0
        %2759 = vmatpush1.msra.mxu0 0.0
        %2760 = vmatprep.subr.mxu0 0.0
        %2761 = vmatpush1.msra.mxu0 0.0
        %2762 = vmatprep.subr.mxu0 0.0
        %2763 = vmatpush1.msra.mxu0 0.0
        %2764 = vmatprep.subr.mxu0 0.0
        %2765 = vmatpush1.msra.mxu0 0.0
        %2766 = vmatprep.subr.mxu0 0.0
        %2767 = vmatpush1.msra.mxu0 0.0
        %2768 = vmatprep.subr.mxu0 0.0
        %2769 = vmatpush1.msra.mxu0 0.0
        %2770 = vmatprep.subr.mxu0 0.0
        %2771 = vmatpush1.msra.mxu0 0.0
        %2772 = vmatprep.subr.mxu0 0.0
        %2773 = vmatpush1.msra.mxu0 0.0
        %2774 = vmatprep.subr.mxu0 0.0
        %2775 = vmatpush1.msra.mxu0 0.0
        %2776 = vmatprep.subr.mxu0 0.0
        %2777 = vmatpush1.msra.mxu0 0.0
        %2778 = vmatprep.subr.mxu0 0.0
        %2779 = vmatpush1.msra.mxu0 0.0
        %2780 = vmatprep.subr.mxu0 0.0
        %2781 = vmatpush1.msra.mxu0 0.0
        %2782 = vmatprep.subr.mxu0 0.0
        %2783 = vmatpush1.msra.mxu0 0.0
        %2784 = vmatprep.mubr.f32.mxu0 0.0
        %2785 = vmatmul.mubr.f32.gmra.mrb[0].mxu0 %v2625
        %v2786 = vpop.f32.mrb[0].mxu0
        %v2787 = vadd.f32 0.0, %v2786
        %v2788 = vpop.f32.mrb[0].mxu0
        %2789 = vmatprep.mubr.f32.mxu0 0.0
        %2790 = vmatmul.mubr.f32.gmra.mrb[0].mxu0 %v2628
        %v2791 = vpop.f32.mrb[0].mxu0
        %v2792 = vadd.f32 0.0, %v2791
        %v2793 = vpop.f32.mrb[0].mxu0
        %2794 = vmatprep.mubr.f32.mxu0 0.0
        %2795 = vmatmul.mubr.f32.gmra.mrb[0].mxu0 %v2631
        %v2796 = vpop.f32.mrb[0].mxu0
        %v2797 = vadd.f32 0.0, %v2796
        %v2798 = vpop.f32.mrb[0].mxu0
        %2799 = vmatprep.mubr.f32.mxu0 0.0
        %2800 = vmatmul.mubr.f32.gmra.mrb[0].mxu0 %v2634
        %v2801 = vpop.f32.mrb[0].mxu0
        %v2802 = vadd.f32 0.0, %v2801
        %v2803 = vpop.f32.mrb[0].mxu0
        %2804 = vmatprep.mubr.f32.mxu0 0.0
        %2805 = vmatmul.mubr.f32.gmra.mrb[0].mxu0 %v2637
        %v2806 = vpop.f32.mrb[0].mxu0
        %v2807 = vadd.f32 0.0, %v2806
        %v2808 = vpop.f32.mrb[0].mxu0
        %2809 = vmatprep.mubr.f32.mxu0 0.0
        %2810 = vmatmul.mubr.f32.gmra.mrb[0].mxu0 %v2640
        %v2811 = vpop.f32.mrb[0].mxu0
        %v2812 = vadd.f32 0.0, %v2811
        %v2813 = vpop.f32.mrb[0].mxu0
        %2814 = vmatprep.mubr.f32.mxu0 0.0
        %2815 = vmatmul.mubr.f32.gmra.mrb[0].mxu0 %v2643
        %v2816 = vpop.f32.mrb[0].mxu0
        %v2817 = vadd.f32 0.0, %v2816
        %v2818 = vpop.f32.mrb[0].mxu0
        %2819 = vmatprep.mubr.f32.mxu0 0.0
        %2820 = vmatmul.mubr.f32.gmra.mrb[0].mxu0 %v2646
        %v2821 = vpop.f32.mrb[0].mxu0
        %v2822 = vadd.f32 0.0, %v2821
        %v2823 = vpop.f32.mrb[0].mxu0
        %2824 = vmatprep.mubr.f32.mxu0 0.0
        %2825 = vmatmul.mubr.f32.gmra.mrb[0].mxu0 %v2649
        %v2826 = vpop.f32.mrb[0].mxu0
        %v2827 = vadd.f32 0.0, %v2826
        %v2828 = vpop.f32.mrb[0].mxu0
        %2829 = vmatprep.mubr.f32.mxu0 0.0
        %2830 = vmatmul.mubr.f32.gmra.mrb[0].mxu0 %v2652
        %v2831 = vpop.f32.mrb[0].mxu0
        %v2832 = vadd.f32 0.0, %v2831
        %v2833 = vpop.f32.mrb[0].mxu0
        %2834 = vmatprep.mubr.f32.mxu0 0.0
        %2835 = vmatmul.mubr.f32.gmra.mrb[0].mxu0 %v2655
        %v2836 = vpop.f32.mrb[0].mxu0
        %v2837 = vadd.f32 0.0, %v2836
        %v2838 = vpop.f32.mrb[0].mxu0
        %2839 = vmatprep.mubr.f32.mxu0 0.0
        %2840 = vmatmul.mubr.f32.gmra.mrb[0].mxu0 %v2658
        %v2841 = vpop.f32.mrb[0].mxu0
        %v2842 = vadd.f32 0.0, %v2841
        %v2843 = vpop.f32.mrb[0].mxu0
        %2844 = vmatprep.mubr.f32.mxu0 0.0
        %2845 = vmatmul.mubr.f32.gmra.mrb[0].mxu0 %v2661
        %v2846 = vpop.f32.mrb[0].mxu0
        %v2847 = vadd.f32 0.0, %v2846
        %v2848 = vpop.f32.mrb[0].mxu0
        %2849 = vmatprep.mubr.f32.mxu0 0.0
        %2850 = vmatmul.mubr.f32.gmra.mrb[0].mxu0 %v2664
        %v2851 = vpop.f32.mrb[0].mxu0
        %v2852 = vadd.f32 0.0, %v2851
        %v2853 = vpop.f32.mrb[0].mxu0
        %2854 = vmatprep.mubr.f32.mxu0 0.0
        %2855 = vmatmul.mubr.f32.gmra.mrb[0].mxu0 %v2667
        %v2856 = vpop.f32.mrb[0].mxu0
        %v2857 = vadd.f32 0.0, %v2856
        %v2858 = vpop.f32.mrb[0].mxu0
        %2859 = vmatprep.mubr.f32.mxu0 0.0
        %2860 = vmatmul.mubr.f32.gmra.mrb[0].mxu0 %v2670
        %v2861 = vpop.f32.mrb[0].mxu0
        %v2862 = vadd.f32 0.0, %v2861
        %v2863 = vpop.f32.mrb[0].mxu0
        %2864 = vmatprep.mubr.f32.mxu0 0.0
        %2865 = vmatmul.mubr.f32.gmra.mrb[0].mxu0 %v2673
        %v2866 = vpop.f32.mrb[0].mxu0
        %v2867 = vadd.f32 0.0, %v2866
        %v2868 = vpop.f32.mrb[0].mxu0
        %2869 = vmatprep.mubr.f32.mxu0 0.0
        %2870 = vmatmul.mubr.f32.gmra.mrb[0].mxu0 %v2676
        %v2871 = vpop.f32.mrb[0].mxu0
        %v2872 = vadd.f32 0.0, %v2871
        %v2873 = vpop.f32.mrb[0].mxu0
        %2874 = vmatprep.mubr.f32.mxu0 0.0
        %2875 = vmatmul.mubr.f32.gmra.mrb[0].mxu0 %v2679
        %v2876 = vpop.f32.mrb[0].mxu0
        %v2877 = vadd.f32 0.0, %v2876
        %v2878 = vpop.f32.mrb[0].mxu0
        %2879 = vmatprep.mubr.f32.mxu0 0.0
        %2880 = vmatmul.mubr.f32.gmra.mrb[0].mxu0 %v2682
        %v2881 = vpop.f32.mrb[0].mxu0
        %v2882 = vadd.f32 0.0, %v2881
        %v2883 = vpop.f32.mrb[0].mxu0
        %2884 = vmatprep.mubr.f32.mxu0 0.0
        %2885 = vmatmul.mubr.f32.gmra.mrb[0].mxu0 %v2685
        %v2886 = vpop.f32.mrb[0].mxu0
        %v2887 = vadd.f32 0.0, %v2886
        %v2888 = vpop.f32.mrb[0].mxu0
        %2889 = vmatprep.mubr.f32.mxu0 0.0
        %2890 = vmatmul.mubr.f32.gmra.mrb[0].mxu0 %v2688
        %v2891 = vpop.f32.mrb[0].mxu0
        %v2892 = vadd.f32 0.0, %v2891
        %v2893 = vpop.f32.mrb[0].mxu0
        %2894 = vmatprep.mubr.f32.mxu0 0.0
        %2895 = vmatmul.mubr.f32.gmra.mrb[0].mxu0 %v2691
        %v2896 = vpop.f32.mrb[0].mxu0
        %v2897 = vadd.f32 0.0, %v2896
        %v2898 = vpop.f32.mrb[0].mxu0
        %2899 = vmatprep.mubr.f32.mxu0 0.0
        %2900 = vmatmul.mubr.f32.gmra.mrb[0].mxu0 %v2694
        %v2901 = vpop.f32.mrb[0].mxu0
        %v2902 = vadd.f32 0.0, %v2901
        %v2903 = vpop.f32.mrb[0].mxu0
        %2904 = vmatprep.mubr.f32.mxu0 0.0
        %2905 = vmatmul.mubr.f32.gmra.mrb[0].mxu0 %v2697
        %v2906 = vpop.f32.mrb[0].mxu0
        %v2907 = vadd.f32 0.0, %v2906
        %v2908 = vpop.f32.mrb[0].mxu0
        %2909 = vmatprep.mubr.f32.mxu0 0.0
        %2910 = vmatmul.mubr.f32.gmra.mrb[0].mxu0 %v2700
        %v2911 = vpop.f32.mrb[0].mxu0
        %v2912 = vadd.f32 0.0, %v2911
        %v2913 = vpop.f32.mrb[0].mxu0
        %2914 = vmatprep.mubr.f32.mxu0 0.0
        %2915 = vmatmul.mubr.f32.gmra.mrb[0].mxu0 %v2703
        %v2916 = vpop.f32.mrb[0].mxu0
        %v2917 = vadd.f32 0.0, %v2916
        %v2918 = vpop.f32.mrb[0].mxu0
        %2919 = vmatprep.mubr.f32.mxu0 0.0
        %2920 = vmatmul.mubr.f32.gmra.mrb[0].mxu0 %v2706
        %v2921 = vpop.f32.mrb[0].mxu0
        %v2922 = vadd.f32 0.0, %v2921
        %v2923 = vpop.f32.mrb[0].mxu0
        %2924 = vmatprep.mubr.f32.mxu0 0.0
        %2925 = vmatmul.mubr.f32.gmra.mrb[0].mxu0 %v2709
        %v2926 = vpop.f32.mrb[0].mxu0
        %v2927 = vadd.f32 0.0, %v2926
        %v2928 = vpop.f32.mrb[0].mxu0
        %2929 = vmatprep.mubr.f32.mxu0 0.0
        %2930 = vmatmul.mubr.f32.gmra.mrb[0].mxu0 %v2712
        %v2931 = vpop.f32.mrb[0].mxu0
        %v2932 = vadd.f32 0.0, %v2931
        %v2933 = vpop.f32.mrb[0].mxu0
        %2934 = vmatprep.mubr.f32.mxu0 0.0
        %2935 = vmatmul.mubr.f32.gmra.mrb[0].mxu0 %v2715
        %v2936 = vpop.f32.mrb[0].mxu0
        %v2937 = vadd.f32 0.0, %v2936
        %v2938 = vpop.f32.mrb[0].mxu0
        %2939 = vmatprep.mubr.f32.mxu0 0.0
        %2940 = vmatmul.mubr.f32.gmra.mrb[0].mxu0 %v2718
        %v2941 = vpop.f32.mrb[0].mxu0
        %v2942 = vadd.f32 0.0, %v2941
        %v2943 = vpop.f32.mrb[0].mxu0
        %2944 = vdwg.mxu0
        %v2945 = vadd.f32 %v2541, %v2787
        %v2946 = vadd.f32 %v2542, %v2792
        %v2947 = vadd.f32 %v2543, %v2797
        %v2948 = vadd.f32 %v2544, %v2802
        %v2949 = vadd.f32 %v2545, %v2807
        %v2950 = vadd.f32 %v2546, %v2812
        %v2951 = vadd.f32 %v2547, %v2817
        %v2952 = vadd.f32 %v2548, %v2822
        %v2953 = vadd.f32 %v2549, %v2827
        %v2954 = vadd.f32 %v2550, %v2832
        %v2955 = vadd.f32 %v2551, %v2837
        %v2956 = vadd.f32 %v2552, %v2842
        %v2957 = vadd.f32 %v2553, %v2847
        %v2958 = vadd.f32 %v2554, %v2852
        %v2959 = vadd.f32 %v2555, %v2857
        %v2960 = vadd.f32 %v2556, %v2862
        %v2961 = vadd.f32 %v2557, %v2867
        %v2962 = vadd.f32 %v2558, %v2872
        %v2963 = vadd.f32 %v2559, %v2877
        %v2964 = vadd.f32 %v2560, %v2882
        %v2965 = vadd.f32 %v2561, %v2887
        %v2966 = vadd.f32 %v2562, %v2892
        %v2967 = vadd.f32 %v2563, %v2897
        %v2968 = vadd.f32 %v2564, %v2902
        %v2969 = vadd.f32 %v2565, %v2907
        %v2970 = vadd.f32 %v2566, %v2912
        %v2971 = vadd.f32 %v2567, %v2917
        %v2972 = vadd.f32 %v2568, %v2922
        %v2973 = vadd.f32 %v2569, %v2927
        %v2974 = vadd.f32 %v2570, %v2932
        %v2975 = vadd.f32 %v2571, %v2937
        %v2976 = vadd.f32 %v2572, %v2942
        %v2993 = vrot.slane %v2574, 1
        %v2994 = vrot.slane %v2575, 1
        %v2995 = vsel %vm281, %v2993, %v2994
        %v2996 = vrot.slane %v2576, 1
        %v2997 = vsel %vm281, %v2994, %v2996
        %v2998 = vrot.slane %v2577, 1
        %v2999 = vrot.slane %v2578, 1
        %v3000 = vsel %vm281, %v2998, %v2999
        %v3001 = vrot.slane %v2579, 1
        %v3002 = vsel %vm281, %v2999, %v3001
        %v3003 = vrot.slane %v2580, 1
        %v3004 = vrot.slane %v2581, 1
        %v3005 = vsel %vm281, %v3003, %v3004
        %v3006 = vrot.slane %v2582, 1
        %v3007 = vsel %vm281, %v3004, %v3006
        %v3008 = vrot.slane %v2583, 1
        %v3009 = vrot.slane %v2584, 1
        %v3010 = vsel %vm281, %v3008, %v3009
        %v3011 = vrot.slane %v2585, 1
        %v3012 = vsel %vm281, %v3009, %v3011
        %v3013 = vrot.slane %v2586, 1
        %v3014 = vrot.slane %v2587, 1
        %v3015 = vsel %vm281, %v3013, %v3014
        %v3016 = vrot.slane %v2588, 1
        %v3017 = vsel %vm281, %v3014, %v3016
        %v3018 = vrot.slane %v2589, 1
        %v3019 = vrot.slane %v2590, 1
        %v3020 = vsel %vm281, %v3018, %v3019
        %v3021 = vrot.slane %v2591, 1
        %v3022 = vsel %vm281, %v3019, %v3021
        %v3023 = vrot.slane %v2592, 1
        %v3024 = vrot.slane %v2593, 1
        %v3025 = vsel %vm281, %v3023, %v3024
        %v3026 = vrot.slane %v2594, 1
        %v3027 = vsel %vm281, %v3024, %v3026
        %v3028 = vrot.slane %v2595, 1
        %v3029 = vrot.slane %v2596, 1
        %v3030 = vsel %vm281, %v3028, %v3029
        %v3031 = vrot.slane %v2597, 1
        %v3032 = vsel %vm281, %v3029, %v3031
        %v3033 = vrot.slane %v2598, 1
        %v3034 = vrot.slane %v2599, 1
        %v3035 = vsel %vm281, %v3033, %v3034
        %v3036 = vrot.slane %v2600, 1
        %v3037 = vsel %vm281, %v3034, %v3036
        %v3038 = vrot.slane %v2601, 1
        %v3039 = vrot.slane %v2602, 1
        %v3040 = vsel %vm281, %v3038, %v3039
        %v3041 = vrot.slane %v2603, 1
        %v3042 = vsel %vm281, %v3039, %v3041
        %v3043 = vrot.slane %v2604, 1
        %v3044 = vrot.slane %v2605, 1
        %v3045 = vsel %vm281, %v3043, %v3044
        %v3046 = vrot.slane %v2606, 1
        %v3047 = vsel %vm281, %v3044, %v3046
        %v3048 = vrot.slane %v2607, 1
        %v3049 = vrot.slane %v2608, 1
        %v3050 = vsel %vm281, %v3048, %v3049
        %v3051 = vrot.slane %v2609, 1
        %v3052 = vsel %vm281, %v3049, %v3051
        %v3053 = vrot.slane %v2610, 1
        %v3054 = vrot.slane %v2611, 1
        %v3055 = vsel %vm281, %v3053, %v3054
        %v3056 = vrot.slane %v2612, 1
        %v3057 = vsel %vm281, %v3054, %v3056
        %v3058 = vrot.slane %v2613, 1
        %v3059 = vrot.slane %v2614, 1
        %v3060 = vsel %vm281, %v3058, %v3059
        %v3061 = vrot.slane %v2615, 1
        %v3062 = vsel %vm281, %v3059, %v3061
        %v3063 = vrot.slane %v2616, 1
        %v3064 = vrot.slane %v2617, 1
        %v3065 = vsel %vm281, %v3063, %v3064
        %v3066 = vrot.slane %v2618, 1
        %v3067 = vsel %vm281, %v3064, %v3066
        %v3068 = vrot.slane %v2619, 1
        %v3069 = vrot.slane %v2620, 1
        %v3070 = vsel %vm281, %v3068, %v3069
        %v3071 = vrot.slane %v2621, 1
        %v3072 = vsel %vm281, %v3069, %v3071
        %s3073 = scalar_lea.vmem %s1, 56
        %v3074 = vld [vmem:[%s3073] sm:$0xff]
        %v3075 = vsel %vm364, %v2995, 0
        %v3077 = vsel %vm364, %v2997, 0
        %v3079 = vsel %vm364, %v3000, 0
        %v3081 = vsel %vm364, %v3002, 0
        %v3083 = vsel %vm364, %v3005, 0
        %v3085 = vsel %vm364, %v3007, 0
        %v3087 = vsel %vm364, %v3010, 0
        %v3089 = vsel %vm364, %v3012, 0
        %v3091 = vsel %vm364, %v3015, 0
        %v3093 = vsel %vm364, %v3017, 0
        %v3095 = vsel %vm364, %v3020, 0
        %v3097 = vsel %vm364, %v3022, 0
        %v3099 = vsel %vm364, %v3025, 0
        %v3101 = vsel %vm364, %v3027, 0
        %v3103 = vsel %vm364, %v3030, 0
        %v3105 = vsel %vm364, %v3032, 0
        %v3107 = vsel %vm364, %v3035, 0
        %v3109 = vsel %vm364, %v3037, 0
        %v3111 = vsel %vm364, %v3040, 0
        %v3113 = vsel %vm364, %v3042, 0
        %v3115 = vsel %vm364, %v3045, 0
        %v3117 = vsel %vm364, %v3047, 0
        %v3119 = vsel %vm364, %v3050, 0
        %v3121 = vsel %vm364, %v3052, 0
        %v3123 = vsel %vm364, %v3055, 0
        %v3125 = vsel %vm364, %v3057, 0
        %v3127 = vsel %vm364, %v3060, 0
        %v3129 = vsel %vm364, %v3062, 0
        %v3131 = vsel %vm364, %v3065, 0
        %v3133 = vsel %vm364, %v3067, 0
        %v3135 = vsel %vm364, %v3070, 0
        %v3137 = vsel %vm364, %v3072, 0
        %3139 = vmatprep.subr.mxu0 0.0
        %3140 = vmatpush1.msra.mxu0 %v3074
        %3141 = vmatprep.subr.mxu0 0.0
        %3142 = vmatpush1.msra.mxu0 0.0
        %3143 = vmatprep.subr.mxu0 0.0
        %3144 = vmatpush1.msra.mxu0 0.0
        %3145 = vmatprep.subr.mxu0 0.0
        %3146 = vmatpush1.msra.mxu0 0.0
        %3147 = vmatprep.subr.mxu0 0.0
        %3148 = vmatpush1.msra.mxu0 0.0
        %3149 = vmatprep.subr.mxu0 0.0
        %3150 = vmatpush1.msra.mxu0 0.0
        %3151 = vmatprep.subr.mxu0 0.0
        %3152 = vmatpush1.msra.mxu0 0.0
        %3153 = vmatprep.subr.mxu0 0.0
        %3154 = vmatpush1.msra.mxu0 0.0
        %3155 = vmatprep.subr.mxu0 0.0
        %3156 = vmatpush1.msra.mxu0 0.0
        %3157 = vmatprep.subr.mxu0 0.0
        %3158 = vmatpush1.msra.mxu0 0.0
        %3159 = vmatprep.subr.mxu0 0.0
        %3160 = vmatpush1.msra.mxu0 0.0
        %3161 = vmatprep.subr.mxu0 0.0
        %3162 = vmatpush1.msra.mxu0 0.0
        %3163 = vmatprep.subr.mxu0 0.0
        %3164 = vmatpush1.msra.mxu0 0.0
        %3165 = vmatprep.subr.mxu0 0.0
        %3166 = vmatpush1.msra.mxu0 0.0
        %3167 = vmatprep.subr.mxu0 0.0
        %3168 = vmatpush1.msra.mxu0 0.0
        %3169 = vmatprep.subr.mxu0 0.0
        %3170 = vmatpush1.msra.mxu0 0.0
        %3171 = vmatprep.subr.mxu0 0.0
        %3172 = vmatpush1.msra.mxu0 0.0
        %3173 = vmatprep.subr.mxu0 0.0
        %3174 = vmatpush1.msra.mxu0 0.0
        %3175 = vmatprep.subr.mxu0 0.0
        %3176 = vmatpush1.msra.mxu0 0.0
        %3177 = vmatprep.subr.mxu0 0.0
        %3178 = vmatpush1.msra.mxu0 0.0
        %3179 = vmatprep.subr.mxu0 0.0
        %3180 = vmatpush1.msra.mxu0 0.0
        %3181 = vmatprep.subr.mxu0 0.0
        %3182 = vmatpush1.msra.mxu0 0.0
        %3183 = vmatprep.subr.mxu0 0.0
        %3184 = vmatpush1.msra.mxu0 0.0
        %3185 = vmatprep.subr.mxu0 0.0
        %3186 = vmatpush1.msra.mxu0 0.0
        %3187 = vmatprep.subr.mxu0 0.0
        %3188 = vmatpush1.msra.mxu0 0.0
        %3189 = vmatprep.subr.mxu0 0.0
        %3190 = vmatpush1.msra.mxu0 0.0
        %3191 = vmatprep.subr.mxu0 0.0
        %3192 = vmatpush1.msra.mxu0 0.0
        %3193 = vmatprep.subr.mxu0 0.0
        %3194 = vmatpush1.msra.mxu0 0.0
        %3195 = vmatprep.subr.mxu0 0.0
        %3196 = vmatpush1.msra.mxu0 0.0
        %3197 = vmatprep.subr.mxu0 0.0
        %3198 = vmatpush1.msra.mxu0 0.0
        %3199 = vmatprep.subr.mxu0 0.0
        %3200 = vmatpush1.msra.mxu0 0.0
        %3201 = vmatprep.subr.mxu0 0.0
        %3202 = vmatpush1.msra.mxu0 0.0
        %3203 = vmatprep.mubr.f32.mxu0 0.0
        %3204 = vmatmul.mubr.f32.gmra.mrb[0].mxu0 %v3075
        %v3205 = vpop.f32.mrb[0].mxu0
        %v3206 = vadd.f32 0.0, %v3205
        %v3207 = vpop.f32.mrb[0].mxu0
        %3208 = vmatprep.mubr.f32.mxu0 0.0
        %3209 = vmatmul.mubr.f32.gmra.mrb[0].mxu0 %v3077
        %v3210 = vpop.f32.mrb[0].mxu0
        %v3211 = vadd.f32 0.0, %v3210
        %v3212 = vpop.f32.mrb[0].mxu0
        %3213 = vmatprep.mubr.f32.mxu0 0.0
        %3214 = vmatmul.mubr.f32.gmra.mrb[0].mxu0 %v3079
        %v3215 = vpop.f32.mrb[0].mxu0
        %v3216 = vadd.f32 0.0, %v3215
        %v3217 = vpop.f32.mrb[0].mxu0
        %3218 = vmatprep.mubr.f32.mxu0 0.0
        %3219 = vmatmul.mubr.f32.gmra.mrb[0].mxu0 %v3081
        %v3220 = vpop.f32.mrb[0].mxu0
        %v3221 = vadd.f32 0.0, %v3220
        %v3222 = vpop.f32.mrb[0].mxu0
        %3223 = vmatprep.mubr.f32.mxu0 0.0
        %3224 = vmatmul.mubr.f32.gmra.mrb[0].mxu0 %v3083
        %v3225 = vpop.f32.mrb[0].mxu0
        %v3226 = vadd.f32 0.0, %v3225
        %v3227 = vpop.f32.mrb[0].mxu0
        %3228 = vmatprep.mubr.f32.mxu0 0.0
        %3229 = vmatmul.mubr.f32.gmra.mrb[0].mxu0 %v3085
        %v3230 = vpop.f32.mrb[0].mxu0
        %v3231 = vadd.f32 0.0, %v3230
        %v3232 = vpop.f32.mrb[0].mxu0
        %3233 = vmatprep.mubr.f32.mxu0 0.0
        %3234 = vmatmul.mubr.f32.gmra.mrb[0].mxu0 %v3087
        %v3235 = vpop.f32.mrb[0].mxu0
        %v3236 = vadd.f32 0.0, %v3235
        %v3237 = vpop.f32.mrb[0].mxu0
        %3238 = vmatprep.mubr.f32.mxu0 0.0
        %3239 = vmatmul.mubr.f32.gmra.mrb[0].mxu0 %v3089
        %v3240 = vpop.f32.mrb[0].mxu0
        %v3241 = vadd.f32 0.0, %v3240
        %v3242 = vpop.f32.mrb[0].mxu0
        %3243 = vmatprep.mubr.f32.mxu0 0.0
        %3244 = vmatmul.mubr.f32.gmra.mrb[0].mxu0 %v3091
        %v3245 = vpop.f32.mrb[0].mxu0
        %v3246 = vadd.f32 0.0, %v3245
        %v3247 = vpop.f32.mrb[0].mxu0
        %3248 = vmatprep.mubr.f32.mxu0 0.0
        %3249 = vmatmul.mubr.f32.gmra.mrb[0].mxu0 %v3093
        %v3250 = vpop.f32.mrb[0].mxu0
        %v3251 = vadd.f32 0.0, %v3250
        %v3252 = vpop.f32.mrb[0].mxu0
        %3253 = vmatprep.mubr.f32.mxu0 0.0
        %3254 = vmatmul.mubr.f32.gmra.mrb[0].mxu0 %v3095
        %v3255 = vpop.f32.mrb[0].mxu0
        %v3256 = vadd.f32 0.0, %v3255
        %v3257 = vpop.f32.mrb[0].mxu0
        %3258 = vmatprep.mubr.f32.mxu0 0.0
        %3259 = vmatmul.mubr.f32.gmra.mrb[0].mxu0 %v3097
        %v3260 = vpop.f32.mrb[0].mxu0
        %v3261 = vadd.f32 0.0, %v3260
        %v3262 = vpop.f32.mrb[0].mxu0
        %3263 = vmatprep.mubr.f32.mxu0 0.0
        %3264 = vmatmul.mubr.f32.gmra.mrb[0].mxu0 %v3099
        %v3265 = vpop.f32.mrb[0].mxu0
        %v3266 = vadd.f32 0.0, %v3265
        %v3267 = vpop.f32.mrb[0].mxu0
        %3268 = vmatprep.mubr.f32.mxu0 0.0
        %3269 = vmatmul.mubr.f32.gmra.mrb[0].mxu0 %v3101
        %v3270 = vpop.f32.mrb[0].mxu0
        %v3271 = vadd.f32 0.0, %v3270
        %v3272 = vpop.f32.mrb[0].mxu0
        %3273 = vmatprep.mubr.f32.mxu0 0.0
        %3274 = vmatmul.mubr.f32.gmra.mrb[0].mxu0 %v3103
        %v3275 = vpop.f32.mrb[0].mxu0
        %v3276 = vadd.f32 0.0, %v3275
        %v3277 = vpop.f32.mrb[0].mxu0
        %3278 = vmatprep.mubr.f32.mxu0 0.0
        %3279 = vmatmul.mubr.f32.gmra.mrb[0].mxu0 %v3105
        %v3280 = vpop.f32.mrb[0].mxu0
        %v3281 = vadd.f32 0.0, %v3280
        %v3282 = vpop.f32.mrb[0].mxu0
        %3283 = vmatprep.mubr.f32.mxu0 0.0
        %3284 = vmatmul.mubr.f32.gmra.mrb[0].mxu0 %v3107
        %v3285 = vpop.f32.mrb[0].mxu0
        %v3286 = vadd.f32 0.0, %v3285
        %v3287 = vpop.f32.mrb[0].mxu0
        %3288 = vmatprep.mubr.f32.mxu0 0.0
        %3289 = vmatmul.mubr.f32.gmra.mrb[0].mxu0 %v3109
        %v3290 = vpop.f32.mrb[0].mxu0
        %v3291 = vadd.f32 0.0, %v3290
        %v3292 = vpop.f32.mrb[0].mxu0
        %3293 = vmatprep.mubr.f32.mxu0 0.0
        %3294 = vmatmul.mubr.f32.gmra.mrb[0].mxu0 %v3111
        %v3295 = vpop.f32.mrb[0].mxu0
        %v3296 = vadd.f32 0.0, %v3295
        %v3297 = vpop.f32.mrb[0].mxu0
        %3298 = vmatprep.mubr.f32.mxu0 0.0
        %3299 = vmatmul.mubr.f32.gmra.mrb[0].mxu0 %v3113
        %v3300 = vpop.f32.mrb[0].mxu0
        %v3301 = vadd.f32 0.0, %v3300
        %v3302 = vpop.f32.mrb[0].mxu0
        %3303 = vmatprep.mubr.f32.mxu0 0.0
        %3304 = vmatmul.mubr.f32.gmra.mrb[0].mxu0 %v3115
        %v3305 = vpop.f32.mrb[0].mxu0
        %v3306 = vadd.f32 0.0, %v3305
        %v3307 = vpop.f32.mrb[0].mxu0
        %3308 = vmatprep.mubr.f32.mxu0 0.0
        %3309 = vmatmul.mubr.f32.gmra.mrb[0].mxu0 %v3117
        %v3310 = vpop.f32.mrb[0].mxu0
        %v3311 = vadd.f32 0.0, %v3310
        %v3312 = vpop.f32.mrb[0].mxu0
        %3313 = vmatprep.mubr.f32.mxu0 0.0
        %3314 = vmatmul.mubr.f32.gmra.mrb[0].mxu0 %v3119
        %v3315 = vpop.f32.mrb[0].mxu0
        %v3316 = vadd.f32 0.0, %v3315
        %v3317 = vpop.f32.mrb[0].mxu0
        %3318 = vmatprep.mubr.f32.mxu0 0.0
        %3319 = vmatmul.mubr.f32.gmra.mrb[0].mxu0 %v3121
        %v3320 = vpop.f32.mrb[0].mxu0
        %v3321 = vadd.f32 0.0, %v3320
        %v3322 = vpop.f32.mrb[0].mxu0
        %3323 = vmatprep.mubr.f32.mxu0 0.0
        %3324 = vmatmul.mubr.f32.gmra.mrb[0].mxu0 %v3123
        %v3325 = vpop.f32.mrb[0].mxu0
        %v3326 = vadd.f32 0.0, %v3325
        %v3327 = vpop.f32.mrb[0].mxu0
        %3328 = vmatprep.mubr.f32.mxu0 0.0
        %3329 = vmatmul.mubr.f32.gmra.mrb[0].mxu0 %v3125
        %v3330 = vpop.f32.mrb[0].mxu0
        %v3331 = vadd.f32 0.0, %v3330
        %v3332 = vpop.f32.mrb[0].mxu0
        %3333 = vmatprep.mubr.f32.mxu0 0.0
        %3334 = vmatmul.mubr.f32.gmra.mrb[0].mxu0 %v3127
        %v3335 = vpop.f32.mrb[0].mxu0
        %v3336 = vadd.f32 0.0, %v3335
        %v3337 = vpop.f32.mrb[0].mxu0
        %3338 = vmatprep.mubr.f32.mxu0 0.0
        %3339 = vmatmul.mubr.f32.gmra.mrb[0].mxu0 %v3129
        %v3340 = vpop.f32.mrb[0].mxu0
        %v3341 = vadd.f32 0.0, %v3340
        %v3342 = vpop.f32.mrb[0].mxu0
        %3343 = vmatprep.mubr.f32.mxu0 0.0
        %3344 = vmatmul.mubr.f32.gmra.mrb[0].mxu0 %v3131
        %v3345 = vpop.f32.mrb[0].mxu0
        %v3346 = vadd.f32 0.0, %v3345
        %v3347 = vpop.f32.mrb[0].mxu0
        %3348 = vmatprep.mubr.f32.mxu0 0.0
        %3349 = vmatmul.mubr.f32.gmra.mrb[0].mxu0 %v3133
        %v3350 = vpop.f32.mrb[0].mxu0
        %v3351 = vadd.f32 0.0, %v3350
        %v3352 = vpop.f32.mrb[0].mxu0
        %3353 = vmatprep.mubr.f32.mxu0 0.0
        %3354 = vmatmul.mubr.f32.gmra.mrb[0].mxu0 %v3135
        %v3355 = vpop.f32.mrb[0].mxu0
        %v3356 = vadd.f32 0.0, %v3355
        %v3357 = vpop.f32.mrb[0].mxu0
        %3358 = vmatprep.mubr.f32.mxu0 0.0
        %3359 = vmatmul.mubr.f32.gmra.mrb[0].mxu0 %v3137
        %v3360 = vpop.f32.mrb[0].mxu0
        %v3361 = vadd.f32 0.0, %v3360
        %v3362 = vpop.f32.mrb[0].mxu0
        %3363 = vdwg.mxu0
        %v3364 = vadd.f32 %v2945, %v3206
        %v3365 = vadd.f32 %v2946, %v3211
        %v3366 = vadd.f32 %v2947, %v3216
        %v3367 = vadd.f32 %v2948, %v3221
        %v3368 = vadd.f32 %v2949, %v3226
        %v3369 = vadd.f32 %v2950, %v3231
        %v3370 = vadd.f32 %v2951, %v3236
        %v3371 = vadd.f32 %v2952, %v3241
        %v3372 = vadd.f32 %v2953, %v3246
        %v3373 = vadd.f32 %v2954, %v3251
        %v3374 = vadd.f32 %v2955, %v3256
        %v3375 = vadd.f32 %v2956, %v3261
        %v3376 = vadd.f32 %v2957, %v3266
        %v3377 = vadd.f32 %v2958, %v3271
        %v3378 = vadd.f32 %v2959, %v3276
        %v3379 = vadd.f32 %v2960, %v3281
        %v3380 = vadd.f32 %v2961, %v3286
        %v3381 = vadd.f32 %v2962, %v3291
        %v3382 = vadd.f32 %v2963, %v3296
        %v3383 = vadd.f32 %v2964, %v3301
        %v3384 = vadd.f32 %v2965, %v3306
        %v3385 = vadd.f32 %v2966, %v3311
        %v3386 = vadd.f32 %v2967, %v3316
        %v3387 = vadd.f32 %v2968, %v3321
        %v3388 = vadd.f32 %v2969, %v3326
        %v3389 = vadd.f32 %v2970, %v3331
        %v3390 = vadd.f32 %v2971, %v3336
        %v3391 = vadd.f32 %v2972, %v3341
        %v3392 = vadd.f32 %v2973, %v3346
        %v3393 = vadd.f32 %v2974, %v3351
        %v3394 = vadd.f32 %v2975, %v3356
        %v3395 = vadd.f32 %v2976, %v3361
        %v3396 = vrot.slane %v2574, 2
        %v3397 = vrot.slane %v2575, 2
        %v3398 = vsel %vm943, %v3396, %v3397
        %v3399 = vrot.slane %v2576, 2
        %v3400 = vsel %vm943, %v3397, %v3399
        %v3401 = vrot.slane %v2577, 2
        %v3402 = vrot.slane %v2578, 2
        %v3403 = vsel %vm943, %v3401, %v3402
        %v3404 = vrot.slane %v2579, 2
        %v3405 = vsel %vm943, %v3402, %v3404
        %v3406 = vrot.slane %v2580, 2
        %v3407 = vrot.slane %v2581, 2
        %v3408 = vsel %vm943, %v3406, %v3407
        %v3409 = vrot.slane %v2582, 2
        %v3410 = vsel %vm943, %v3407, %v3409
        %v3411 = vrot.slane %v2583, 2
        %v3412 = vrot.slane %v2584, 2
        %v3413 = vsel %vm943, %v3411, %v3412
        %v3414 = vrot.slane %v2585, 2
        %v3415 = vsel %vm943, %v3412, %v3414
        %v3416 = vrot.slane %v2586, 2
        %v3417 = vrot.slane %v2587, 2
        %v3418 = vsel %vm943, %v3416, %v3417
        %v3419 = vrot.slane %v2588, 2
        %v3420 = vsel %vm943, %v3417, %v3419
        %v3421 = vrot.slane %v2589, 2
        %v3422 = vrot.slane %v2590, 2
        %v3423 = vsel %vm943, %v3421, %v3422
        %v3424 = vrot.slane %v2591, 2
        %v3425 = vsel %vm943, %v3422, %v3424
        %v3426 = vrot.slane %v2592, 2
        %v3427 = vrot.slane %v2593, 2
        %v3428 = vsel %vm943, %v3426, %v3427
        %v3429 = vrot.slane %v2594, 2
        %v3430 = vsel %vm943, %v3427, %v3429
        %v3431 = vrot.slane %v2595, 2
        %v3432 = vrot.slane %v2596, 2
        %v3433 = vsel %vm943, %v3431, %v3432
        %v3434 = vrot.slane %v2597, 2
        %v3435 = vsel %vm943, %v3432, %v3434
        %v3436 = vrot.slane %v2598, 2
        %v3437 = vrot.slane %v2599, 2
        %v3438 = vsel %vm943, %v3436, %v3437
        %v3439 = vrot.slane %v2600, 2
        %v3440 = vsel %vm943, %v3437, %v3439
        %v3441 = vrot.slane %v2601, 2
        %v3442 = vrot.slane %v2602, 2
        %v3443 = vsel %vm943, %v3441, %v3442
        %v3444 = vrot.slane %v2603, 2
        %v3445 = vsel %vm943, %v3442, %v3444
        %v3446 = vrot.slane %v2604, 2
        %v3447 = vrot.slane %v2605, 2
        %v3448 = vsel %vm943, %v3446, %v3447
        %v3449 = vrot.slane %v2606, 2
        %v3450 = vsel %vm943, %v3447, %v3449
        %v3451 = vrot.slane %v2607, 2
        %v3452 = vrot.slane %v2608, 2
        %v3453 = vsel %vm943, %v3451, %v3452
        %v3454 = vrot.slane %v2609, 2
        %v3455 = vsel %vm943, %v3452, %v3454
        %v3456 = vrot.slane %v2610, 2
        %v3457 = vrot.slane %v2611, 2
        %v3458 = vsel %vm943, %v3456, %v3457
        %v3459 = vrot.slane %v2612, 2
        %v3460 = vsel %vm943, %v3457, %v3459
        %v3461 = vrot.slane %v2613, 2
        %v3462 = vrot.slane %v2614, 2
        %v3463 = vsel %vm943, %v3461, %v3462
        %v3464 = vrot.slane %v2615, 2
        %v3465 = vsel %vm943, %v3462, %v3464
        %v3466 = vrot.slane %v2616, 2
        %v3467 = vrot.slane %v2617, 2
        %v3468 = vsel %vm943, %v3466, %v3467
        %v3469 = vrot.slane %v2618, 2
        %v3470 = vsel %vm943, %v3467, %v3469
        %v3471 = vrot.slane %v2619, 2
        %v3472 = vrot.slane %v2620, 2
        %v3473 = vsel %vm943, %v3471, %v3472
        %v3474 = vrot.slane %v2621, 2
        %v3475 = vsel %vm943, %v3472, %v3474
        %s3476 = scalar_lea.vmem %s1, 64
        %v3477 = vld [vmem:[%s3476] sm:$0xff]
        %v3478 = vsel %vm364, %v3398, 0
        %v3480 = vsel %vm364, %v3400, 0
        %v3482 = vsel %vm364, %v3403, 0
        %v3484 = vsel %vm364, %v3405, 0
        %v3486 = vsel %vm364, %v3408, 0
        %v3488 = vsel %vm364, %v3410, 0
        %v3490 = vsel %vm364, %v3413, 0
        %v3492 = vsel %vm364, %v3415, 0
        %v3494 = vsel %vm364, %v3418, 0
        %v3496 = vsel %vm364, %v3420, 0
        %v3498 = vsel %vm364, %v3423, 0
        %v3500 = vsel %vm364, %v3425, 0
        %v3502 = vsel %vm364, %v3428, 0
        %v3504 = vsel %vm364, %v3430, 0
        %v3506 = vsel %vm364, %v3433, 0
        %v3508 = vsel %vm364, %v3435, 0
        %v3510 = vsel %vm364, %v3438, 0
        %v3512 = vsel %vm364, %v3440, 0
        %v3514 = vsel %vm364, %v3443, 0
        %v3516 = vsel %vm364, %v3445, 0
        %v3518 = vsel %vm364, %v3448, 0
        %v3520 = vsel %vm364, %v3450, 0
        %v3522 = vsel %vm364, %v3453, 0
        %v3524 = vsel %vm364, %v3455, 0
        %v3526 = vsel %vm364, %v3458, 0
        %v3528 = vsel %vm364, %v3460, 0
        %v3530 = vsel %vm364, %v3463, 0
        %v3532 = vsel %vm364, %v3465, 0
        %v3534 = vsel %vm364, %v3468, 0
        %v3536 = vsel %vm364, %v3470, 0
        %v3538 = vsel %vm364, %v3473, 0
        %v3540 = vsel %vm364, %v3475, 0
        %3542 = vmatprep.subr.mxu0 0.0
        %3543 = vmatpush1.msra.mxu0 %v3477
        %3544 = vmatprep.subr.mxu0 0.0
        %3545 = vmatpush1.msra.mxu0 0.0
        %3546 = vmatprep.subr.mxu0 0.0
        %3547 = vmatpush1.msra.mxu0 0.0
        %3548 = vmatprep.subr.mxu0 0.0
        %3549 = vmatpush1.msra.mxu0 0.0
        %3550 = vmatprep.subr.mxu0 0.0
        %3551 = vmatpush1.msra.mxu0 0.0
        %3552 = vmatprep.subr.mxu0 0.0
        %3553 = vmatpush1.msra.mxu0 0.0
        %3554 = vmatprep.subr.mxu0 0.0
        %3555 = vmatpush1.msra.mxu0 0.0
        %3556 = vmatprep.subr.mxu0 0.0
        %3557 = vmatpush1.msra.mxu0 0.0
        %3558 = vmatprep.subr.mxu0 0.0
        %3559 = vmatpush1.msra.mxu0 0.0
        %3560 = vmatprep.subr.mxu0 0.0
        %3561 = vmatpush1.msra.mxu0 0.0
        %3562 = vmatprep.subr.mxu0 0.0
        %3563 = vmatpush1.msra.mxu0 0.0
        %3564 = vmatprep.subr.mxu0 0.0
        %3565 = vmatpush1.msra.mxu0 0.0
        %3566 = vmatprep.subr.mxu0 0.0
        %3567 = vmatpush1.msra.mxu0 0.0
        %3568 = vmatprep.subr.mxu0 0.0
        %3569 = vmatpush1.msra.mxu0 0.0
        %3570 = vmatprep.subr.mxu0 0.0
        %3571 = vmatpush1.msra.mxu0 0.0
        %3572 = vmatprep.subr.mxu0 0.0
        %3573 = vmatpush1.msra.mxu0 0.0
        %3574 = vmatprep.subr.mxu0 0.0
        %3575 = vmatpush1.msra.mxu0 0.0
        %3576 = vmatprep.subr.mxu0 0.0
        %3577 = vmatpush1.msra.mxu0 0.0
        %3578 = vmatprep.subr.mxu0 0.0
        %3579 = vmatpush1.msra.mxu0 0.0
        %3580 = vmatprep.subr.mxu0 0.0
        %3581 = vmatpush1.msra.mxu0 0.0
        %3582 = vmatprep.subr.mxu0 0.0
        %3583 = vmatpush1.msra.mxu0 0.0
        %3584 = vmatprep.subr.mxu0 0.0
        %3585 = vmatpush1.msra.mxu0 0.0
        %3586 = vmatprep.subr.mxu0 0.0
        %3587 = vmatpush1.msra.mxu0 0.0
        %3588 = vmatprep.subr.mxu0 0.0
        %3589 = vmatpush1.msra.mxu0 0.0
        %3590 = vmatprep.subr.mxu0 0.0
        %3591 = vmatpush1.msra.mxu0 0.0
        %3592 = vmatprep.subr.mxu0 0.0
        %3593 = vmatpush1.msra.mxu0 0.0
        %3594 = vmatprep.subr.mxu0 0.0
        %3595 = vmatpush1.msra.mxu0 0.0
        %3596 = vmatprep.subr.mxu0 0.0
        %3597 = vmatpush1.msra.mxu0 0.0
        %3598 = vmatprep.subr.mxu0 0.0
        %3599 = vmatpush1.msra.mxu0 0.0
        %3600 = vmatprep.subr.mxu0 0.0
        %3601 = vmatpush1.msra.mxu0 0.0
        %3602 = vmatprep.subr.mxu0 0.0
        %3603 = vmatpush1.msra.mxu0 0.0
        %3604 = vmatprep.subr.mxu0 0.0
        %3605 = vmatpush1.msra.mxu0 0.0
        %3606 = vmatprep.mubr.f32.mxu0 0.0
        %3607 = vmatmul.mubr.f32.gmra.mrb[0].mxu0 %v3478
        %v3608 = vpop.f32.mrb[0].mxu0
        %v3609 = vadd.f32 0.0, %v3608
        %v3610 = vpop.f32.mrb[0].mxu0
        %3611 = vmatprep.mubr.f32.mxu0 0.0
        %3612 = vmatmul.mubr.f32.gmra.mrb[0].mxu0 %v3480
        %v3613 = vpop.f32.mrb[0].mxu0
        %v3614 = vadd.f32 0.0, %v3613
        %v3615 = vpop.f32.mrb[0].mxu0
        %3616 = vmatprep.mubr.f32.mxu0 0.0
        %3617 = vmatmul.mubr.f32.gmra.mrb[0].mxu0 %v3482
        %v3618 = vpop.f32.mrb[0].mxu0
        %v3619 = vadd.f32 0.0, %v3618
        %v3620 = vpop.f32.mrb[0].mxu0
        %3621 = vmatprep.mubr.f32.mxu0 0.0
        %3622 = vmatmul.mubr.f32.gmra.mrb[0].mxu0 %v3484
        %v3623 = vpop.f32.mrb[0].mxu0
        %v3624 = vadd.f32 0.0, %v3623
        %v3625 = vpop.f32.mrb[0].mxu0
        %3626 = vmatprep.mubr.f32.mxu0 0.0
        %3627 = vmatmul.mubr.f32.gmra.mrb[0].mxu0 %v3486
        %v3628 = vpop.f32.mrb[0].mxu0
        %v3629 = vadd.f32 0.0, %v3628
        %v3630 = vpop.f32.mrb[0].mxu0
        %3631 = vmatprep.mubr.f32.mxu0 0.0
        %3632 = vmatmul.mubr.f32.gmra.mrb[0].mxu0 %v3488
        %v3633 = vpop.f32.mrb[0].mxu0
        %v3634 = vadd.f32 0.0, %v3633
        %v3635 = vpop.f32.mrb[0].mxu0
        %3636 = vmatprep.mubr.f32.mxu0 0.0
        %3637 = vmatmul.mubr.f32.gmra.mrb[0].mxu0 %v3490
        %v3638 = vpop.f32.mrb[0].mxu0
        %v3639 = vadd.f32 0.0, %v3638
        %v3640 = vpop.f32.mrb[0].mxu0
        %3641 = vmatprep.mubr.f32.mxu0 0.0
        %3642 = vmatmul.mubr.f32.gmra.mrb[0].mxu0 %v3492
        %v3643 = vpop.f32.mrb[0].mxu0
        %v3644 = vadd.f32 0.0, %v3643
        %v3645 = vpop.f32.mrb[0].mxu0
        %3646 = vmatprep.mubr.f32.mxu0 0.0
        %3647 = vmatmul.mubr.f32.gmra.mrb[0].mxu0 %v3494
        %v3648 = vpop.f32.mrb[0].mxu0
        %v3649 = vadd.f32 0.0, %v3648
        %v3650 = vpop.f32.mrb[0].mxu0
        %3651 = vmatprep.mubr.f32.mxu0 0.0
        %3652 = vmatmul.mubr.f32.gmra.mrb[0].mxu0 %v3496
        %v3653 = vpop.f32.mrb[0].mxu0
        %v3654 = vadd.f32 0.0, %v3653
        %v3655 = vpop.f32.mrb[0].mxu0
        %3656 = vmatprep.mubr.f32.mxu0 0.0
        %3657 = vmatmul.mubr.f32.gmra.mrb[0].mxu0 %v3498
        %v3658 = vpop.f32.mrb[0].mxu0
        %v3659 = vadd.f32 0.0, %v3658
        %v3660 = vpop.f32.mrb[0].mxu0
        %3661 = vmatprep.mubr.f32.mxu0 0.0
        %3662 = vmatmul.mubr.f32.gmra.mrb[0].mxu0 %v3500
        %v3663 = vpop.f32.mrb[0].mxu0
        %v3664 = vadd.f32 0.0, %v3663
        %v3665 = vpop.f32.mrb[0].mxu0
        %3666 = vmatprep.mubr.f32.mxu0 0.0
        %3667 = vmatmul.mubr.f32.gmra.mrb[0].mxu0 %v3502
        %v3668 = vpop.f32.mrb[0].mxu0
        %v3669 = vadd.f32 0.0, %v3668
        %v3670 = vpop.f32.mrb[0].mxu0
        %3671 = vmatprep.mubr.f32.mxu0 0.0
        %3672 = vmatmul.mubr.f32.gmra.mrb[0].mxu0 %v3504
        %v3673 = vpop.f32.mrb[0].mxu0
        %v3674 = vadd.f32 0.0, %v3673
        %v3675 = vpop.f32.mrb[0].mxu0
        %3676 = vmatprep.mubr.f32.mxu0 0.0
        %3677 = vmatmul.mubr.f32.gmra.mrb[0].mxu0 %v3506
        %v3678 = vpop.f32.mrb[0].mxu0
        %v3679 = vadd.f32 0.0, %v3678
        %v3680 = vpop.f32.mrb[0].mxu0
        %3681 = vmatprep.mubr.f32.mxu0 0.0
        %3682 = vmatmul.mubr.f32.gmra.mrb[0].mxu0 %v3508
        %v3683 = vpop.f32.mrb[0].mxu0
        %v3684 = vadd.f32 0.0, %v3683
        %v3685 = vpop.f32.mrb[0].mxu0
        %3686 = vmatprep.mubr.f32.mxu0 0.0
        %3687 = vmatmul.mubr.f32.gmra.mrb[0].mxu0 %v3510
        %v3688 = vpop.f32.mrb[0].mxu0
        %v3689 = vadd.f32 0.0, %v3688
        %v3690 = vpop.f32.mrb[0].mxu0
        %3691 = vmatprep.mubr.f32.mxu0 0.0
        %3692 = vmatmul.mubr.f32.gmra.mrb[0].mxu0 %v3512
        %v3693 = vpop.f32.mrb[0].mxu0
        %v3694 = vadd.f32 0.0, %v3693
        %v3695 = vpop.f32.mrb[0].mxu0
        %3696 = vmatprep.mubr.f32.mxu0 0.0
        %3697 = vmatmul.mubr.f32.gmra.mrb[0].mxu0 %v3514
        %v3698 = vpop.f32.mrb[0].mxu0
        %v3699 = vadd.f32 0.0, %v3698
        %v3700 = vpop.f32.mrb[0].mxu0
        %3701 = vmatprep.mubr.f32.mxu0 0.0
        %3702 = vmatmul.mubr.f32.gmra.mrb[0].mxu0 %v3516
        %v3703 = vpop.f32.mrb[0].mxu0
        %v3704 = vadd.f32 0.0, %v3703
        %v3705 = vpop.f32.mrb[0].mxu0
        %3706 = vmatprep.mubr.f32.mxu0 0.0
        %3707 = vmatmul.mubr.f32.gmra.mrb[0].mxu0 %v3518
        %v3708 = vpop.f32.mrb[0].mxu0
        %v3709 = vadd.f32 0.0, %v3708
        %v3710 = vpop.f32.mrb[0].mxu0
        %3711 = vmatprep.mubr.f32.mxu0 0.0
        %3712 = vmatmul.mubr.f32.gmra.mrb[0].mxu0 %v3520
        %v3713 = vpop.f32.mrb[0].mxu0
        %v3714 = vadd.f32 0.0, %v3713
        %v3715 = vpop.f32.mrb[0].mxu0
        %3716 = vmatprep.mubr.f32.mxu0 0.0
        %3717 = vmatmul.mubr.f32.gmra.mrb[0].mxu0 %v3522
        %v3718 = vpop.f32.mrb[0].mxu0
        %v3719 = vadd.f32 0.0, %v3718
        %v3720 = vpop.f32.mrb[0].mxu0
        %3721 = vmatprep.mubr.f32.mxu0 0.0
        %3722 = vmatmul.mubr.f32.gmra.mrb[0].mxu0 %v3524
        %v3723 = vpop.f32.mrb[0].mxu0
        %v3724 = vadd.f32 0.0, %v3723
        %v3725 = vpop.f32.mrb[0].mxu0
        %3726 = vmatprep.mubr.f32.mxu0 0.0
        %3727 = vmatmul.mubr.f32.gmra.mrb[0].mxu0 %v3526
        %v3728 = vpop.f32.mrb[0].mxu0
        %v3729 = vadd.f32 0.0, %v3728
        %v3730 = vpop.f32.mrb[0].mxu0
        %3731 = vmatprep.mubr.f32.mxu0 0.0
        %3732 = vmatmul.mubr.f32.gmra.mrb[0].mxu0 %v3528
        %v3733 = vpop.f32.mrb[0].mxu0
        %v3734 = vadd.f32 0.0, %v3733
        %v3735 = vpop.f32.mrb[0].mxu0
        %3736 = vmatprep.mubr.f32.mxu0 0.0
        %3737 = vmatmul.mubr.f32.gmra.mrb[0].mxu0 %v3530
        %v3738 = vpop.f32.mrb[0].mxu0
        %v3739 = vadd.f32 0.0, %v3738
        %v3740 = vpop.f32.mrb[0].mxu0
        %3741 = vmatprep.mubr.f32.mxu0 0.0
        %3742 = vmatmul.mubr.f32.gmra.mrb[0].mxu0 %v3532
        %v3743 = vpop.f32.mrb[0].mxu0
        %v3744 = vadd.f32 0.0, %v3743
        %v3745 = vpop.f32.mrb[0].mxu0
        %3746 = vmatprep.mubr.f32.mxu0 0.0
        %3747 = vmatmul.mubr.f32.gmra.mrb[0].mxu0 %v3534
        %v3748 = vpop.f32.mrb[0].mxu0
        %v3749 = vadd.f32 0.0, %v3748
        %v3750 = vpop.f32.mrb[0].mxu0
        %3751 = vmatprep.mubr.f32.mxu0 0.0
        %3752 = vmatmul.mubr.f32.gmra.mrb[0].mxu0 %v3536
        %v3753 = vpop.f32.mrb[0].mxu0
        %v3754 = vadd.f32 0.0, %v3753
        %v3755 = vpop.f32.mrb[0].mxu0
        %3756 = vmatprep.mubr.f32.mxu0 0.0
        %3757 = vmatmul.mubr.f32.gmra.mrb[0].mxu0 %v3538
        %v3758 = vpop.f32.mrb[0].mxu0
        %v3759 = vadd.f32 0.0, %v3758
        %v3760 = vpop.f32.mrb[0].mxu0
        %3761 = vmatprep.mubr.f32.mxu0 0.0
        %3762 = vmatmul.mubr.f32.gmra.mrb[0].mxu0 %v3540
        %v3763 = vpop.f32.mrb[0].mxu0
        %v3764 = vadd.f32 0.0, %v3763
        %v3765 = vpop.f32.mrb[0].mxu0
        %3766 = vdwg.mxu0
        %v3767 = vadd.f32 %v3364, %v3609
        %v3768 = vadd.f32 %v3365, %v3614
        %v3769 = vadd.f32 %v3366, %v3619
        %v3770 = vadd.f32 %v3367, %v3624
        %v3771 = vadd.f32 %v3368, %v3629
        %v3772 = vadd.f32 %v3369, %v3634
        %v3773 = vadd.f32 %v3370, %v3639
        %v3774 = vadd.f32 %v3371, %v3644
        %v3775 = vadd.f32 %v3372, %v3649
        %v3776 = vadd.f32 %v3373, %v3654
        %v3777 = vadd.f32 %v3374, %v3659
        %v3778 = vadd.f32 %v3375, %v3664
        %v3779 = vadd.f32 %v3376, %v3669
        %v3780 = vadd.f32 %v3377, %v3674
        %v3781 = vadd.f32 %v3378, %v3679
        %v3782 = vadd.f32 %v3379, %v3684
        %v3783 = vadd.f32 %v3380, %v3689
        %v3784 = vadd.f32 %v3381, %v3694
        %v3785 = vadd.f32 %v3382, %v3699
        %v3786 = vadd.f32 %v3383, %v3704
        %v3787 = vadd.f32 %v3384, %v3709
        %v3788 = vadd.f32 %v3385, %v3714
        %v3789 = vadd.f32 %v3386, %v3719
        %v3790 = vadd.f32 %v3387, %v3724
        %v3791 = vadd.f32 %v3388, %v3729
        %v3792 = vadd.f32 %v3389, %v3734
        %v3793 = vadd.f32 %v3390, %v3739
        %v3794 = vadd.f32 %v3391, %v3744
        %v3795 = vadd.f32 %v3392, %v3749
        %v3796 = vadd.f32 %v3393, %v3754
        %v3797 = vadd.f32 %v3394, %v3759
        %v3798 = vadd.f32 %v3395, %v3764
        %v3799 = vld [vmem:[%s2] sm:$0x1]
        %v3801 = vlaneseq
        %v3802 = vshrl.u32 %v3801, 7
        %v3803 = vsub.s32 0, %v3802
        %v3804 = vrot.slane %v3799, %v3803
        %v3806 = vadd.f32 %v3767, %v3804
        %v3807 = vadd.f32 %v3768, %v3804
        %v3808 = vadd.f32 %v3769, %v3804
        %v3809 = vadd.f32 %v3770, %v3804
        %v3810 = vadd.f32 %v3771, %v3804
        %v3811 = vadd.f32 %v3772, %v3804
        %v3812 = vadd.f32 %v3773, %v3804
        %v3813 = vadd.f32 %v3774, %v3804
        %v3814 = vadd.f32 %v3775, %v3804
        %v3815 = vadd.f32 %v3776, %v3804
        %v3816 = vadd.f32 %v3777, %v3804
        %v3817 = vadd.f32 %v3778, %v3804
        %v3818 = vadd.f32 %v3779, %v3804
        %v3819 = vadd.f32 %v3780, %v3804
        %v3820 = vadd.f32 %v3781, %v3804
        %v3821 = vadd.f32 %v3782, %v3804
        %v3822 = vadd.f32 %v3783, %v3804
        %v3823 = vadd.f32 %v3784, %v3804
        %v3824 = vadd.f32 %v3785, %v3804
        %v3825 = vadd.f32 %v3786, %v3804
        %v3826 = vadd.f32 %v3787, %v3804
        %v3827 = vadd.f32 %v3788, %v3804
        %v3828 = vadd.f32 %v3789, %v3804
        %v3829 = vadd.f32 %v3790, %v3804
        %v3830 = vadd.f32 %v3791, %v3804
        %v3831 = vadd.f32 %v3792, %v3804
        %v3832 = vadd.f32 %v3793, %v3804
        %v3833 = vadd.f32 %v3794, %v3804
        %v3834 = vadd.f32 %v3795, %v3804
        %v3835 = vadd.f32 %v3796, %v3804
        %v3836 = vadd.f32 %v3797, %v3804
        %v3837 = vadd.f32 %v3798, %v3804
        %vm3838 = vcmask 130048
        %3839 = vst.msk [vmem:[%s177] sm:$0xff] %vm3838, %v3806
        %3840 = vst.msk [vmem:[%s177 + $0x8] sm:$0xff] %vm3838, %v3807
        %3841 = vst.msk [vmem:[%s177 + $0x10] sm:$0xff] %vm3838, %v3808
        %3842 = vst.msk [vmem:[%s177 + $0x18] sm:$0xff] %vm3838, %v3809
        %3843 = vst.msk [vmem:[%s177 + $0x20] sm:$0xff] %vm3838, %v3810
        %3844 = vst.msk [vmem:[%s177 + $0x28] sm:$0xff] %vm3838, %v3811
        %3845 = vst.msk [vmem:[%s177 + $0x30] sm:$0xff] %vm3838, %v3812
        %3846 = vst.msk [vmem:[%s177 + $0x38] sm:$0xff] %vm3838, %v3813
        %3847 = vst.msk [vmem:[%s177 + $0x40] sm:$0xff] %vm3838, %v3814
        %3848 = vst.msk [vmem:[%s177 + $0x48] sm:$0xff] %vm3838, %v3815
        %3849 = vst.msk [vmem:[%s177 + $0x50] sm:$0xff] %vm3838, %v3816
        %3850 = vst.msk [vmem:[%s177 + $0x58] sm:$0xff] %vm3838, %v3817
        %3851 = vst.msk [vmem:[%s177 + $0x60] sm:$0xff] %vm3838, %v3818
        %3852 = vst.msk [vmem:[%s177 + $0x68] sm:$0xff] %vm3838, %v3819
        %3853 = vst.msk [vmem:[%s177 + $0x70] sm:$0xff] %vm3838, %v3820
        %3854 = vst.msk [vmem:[%s177 + $0x78] sm:$0xff] %vm3838, %v3821
        %3855 = vst.msk [vmem:[%s177 + $0x80] sm:$0xff] %vm3838, %v3822
        %3856 = vst.msk [vmem:[%s177 + $0x88] sm:$0xff] %vm3838, %v3823
        %3857 = vst.msk [vmem:[%s177 + $0x90] sm:$0xff] %vm3838, %v3824
        %3858 = vst.msk [vmem:[%s177 + $0x98] sm:$0xff] %vm3838, %v3825
        %3859 = vst.msk [vmem:[%s177 + $0xa0] sm:$0xff] %vm3838, %v3826
        %3860 = vst.msk [vmem:[%s177 + $0xa8] sm:$0xff] %vm3838, %v3827
        %3861 = vst.msk [vmem:[%s177 + $0xb0] sm:$0xff] %vm3838, %v3828
        %3862 = vst.msk [vmem:[%s177 + $0xb8] sm:$0xff] %vm3838, %v3829
        %3863 = vst.msk [vmem:[%s177 + $0xc0] sm:$0xff] %vm3838, %v3830
        %3864 = vst.msk [vmem:[%s177 + $0xc8] sm:$0xff] %vm3838, %v3831
        %3865 = vst.msk [vmem:[%s177 + $0xd0] sm:$0xff] %vm3838, %v3832
        %3866 = vst.msk [vmem:[%s177 + $0xd8] sm:$0xff] %vm3838, %v3833
        %3867 = vst.msk [vmem:[%s177 + $0xe0] sm:$0xff] %vm3838, %v3834
        %3868 = vst.msk [vmem:[%s177 + $0xe8] sm:$0xff] %vm3838, %v3835
        %3869 = vst.msk [vmem:[%s177 + $0xf0] sm:$0xff] %vm3838, %v3836
        %3870 = vst.msk [vmem:[%s177 + $0xf8] sm:$0xff] %vm3838, %v3837
        %s3871 = sand.u32 %s107, 1
        %s3872 = scalar_lea.sflag [#allocation3], %s3871
        %s3873 = sand.u32 %s107, 1
        %s3874 = smul.addr %s3873, 256
        %s3875 = scalar_lea.vmem [#allocation2], %s3874
        // Predicated region
        $region33: #{tpu_custom_call.1} parent=31 // pred_check
          %p3876 = pneg %p117
        $region34: #{tpu_custom_call.1} parent=31 // pred_check_branch
          %3878 = sbr.rel (%p3876) target = $region36
        $region35: #{tpu_custom_call.1} parent=31 // pred_region
          %s3879 = smul.u32 16, %s22
          %s3881 = ssub.s32 4096, 4096
          %3882 = vsyncadd %s3872, %s3881
          %s3883 = smul.addr %s3879, 2
          %s3884 = smul.addr %s21, 32
          %s3885 = sadd.s32 %s3883, %s3884
          %s3886 = smul.addr %s3885, 128
          %s3887 = scalar_lea.hbm %s3, %s3886
          %s3888 = sshll.u32 %s3875, 4
          %s3889 = int_to_ptr.vmem [resolvable:$true] %s3888
          %3894 = dma.vmem_to_hbm [thread:$0]  %s3889, 4096, %s3887, %s3872, 128, 128, 8
        $region36: #{tpu_custom_call.1} parent=31 // pred_fallthru
          _
      $region32: #{tpu_custom_call.1} parent=5 // pred_fallthru
        _
      %p3895 = scmp.le.s32.totalorder 2, %s12
      // Predicated region
      $region37: #{tpu_custom_call.1} parent=5 // pred_check
        %p3896 = pneg %p3895
      $region38: #{tpu_custom_call.1} parent=5 // pred_check_branch
        %3898 = sbr.rel (%p3896) target = $region40
      $region39: #{tpu_custom_call.1} parent=5 // pred_region
        %s3899 = ssub.s32 %s12, 2
        // Predicated region
        $region41: #{tpu_custom_call.1} parent=39 // pred_check
          %p3900 = pneg %p123
        $region42: #{tpu_custom_call.1} parent=39 // pred_check_branch
          %3902 = sbr.rel (%p3900) target = $region44
        $region43: #{tpu_custom_call.1} parent=39 // pred_region
          %s3903 = sand.u32 %s108, 1
          %s3904 = scalar_lea.sflag [#allocation3], %s3903
          %s3905 = sand.u32 %s108, 1
          %s3906 = smul.addr %s3905, 256
          %s3907 = scalar_lea.vmem [#allocation2], %s3906
          %3908 = dma.done %s3904, 4096
        $region44: #{tpu_custom_call.1} parent=39 // pred_fallthru
          _
      $region40: #{tpu_custom_call.1} parent=5 // pred_fallthru
        _
    $region6: #{tpu_custom_call.1} parent=1 // loop_footer
      %s16 = sadd.s32 1, %s12
    $region7: #{tpu_custom_call.1} parent=1 // loop_footer_branch
      %11 = sbr.rel target = $region3
    $region8: #{tpu_custom_call.1} parent=1 // loop_exit
      _
    %3909 = vsyncpa [#allocation3], 1
    %s3910 = scalar_lea.sflag [#allocation3], 1
    %3911 = vsyncpa %s3910, 1

</llo_original>
